<compile_context>
chip_gen: v7x
topology: tpu7x:2x2x1
jax: 0.10.0
libtpu: 0.0.40
codegen_flags: <defaults>
</compile_context>

<pallas_src>
import functools

import jax
import jax.numpy as jnp
from jax import lax
from jax.experimental import pallas as pl
from jax.experimental.pallas import tpu as pltpu


C_IN = 512      # 256 + 256
C_H1 = 256
C_H2 = 64


def _selector_kernel(x_ref, w1_ref, b1_ref, w2_ref, b2_ref, w3_ref, b3_ref,
                     out_ref, acc_ref, *, bn, n_inner, tile, num_pixels,
                     ragged):
    # grid = (batch_blocks, n_outer, n_inner); the inner pixel axis reduces.
    k = pl.program_id(2)

    @pl.when(k == 0)
    def _():
        acc_ref[...] = jnp.zeros_like(acc_ref)

    # Mask for out-of-range pixels (only emitted when H*W % tile != 0).
    if ragged:
        start = (pl.program_id(1) * n_inner + k) * tile
        lane = lax.broadcasted_iota(jnp.int32, (1, tile), 1)
        pix_mask = (lane + start) < num_pixels
    else:
        pix_mask = None

    # Per-image compute; bn is a small static count (1..8), loop is unrolled.
    # TODO(synk): on v7x, if the bundle shows per-step weight re-push on the
    # MXU, keep w1/w2 stationary via pltpu.matmul_push_rhs / matmul_acc_lhs.
    for b in range(bn):
        xb = x_ref[b]                                       # (C_IN, tile)
        if xb.dtype != jnp.bfloat16:
            xb = xb.astype(jnp.bfloat16)

        # conv1 (1x1): (256, 512) @ (512, tile) -> f32 (256, tile).
        h1 = jnp.dot(w1_ref[...], xb,
                     preferred_element_type=jnp.float32) + b1_ref[...]
        h1 = jnp.maximum(h1, 0.0)

        # conv2 (1x1): (64, 256) @ (256, tile) -> f32 (64, tile).
        h2 = jnp.dot(w2_ref[...], h1.astype(jnp.bfloat16),
                     preferred_element_type=jnp.float32) + b2_ref[...]
        h2 = jnp.maximum(h2, 0.0)

        # conv3 (1x1, single out channel): weighted sublane reduce (VPU/XLU),
        # no padded 64x128 MXU matmul.
        h3 = jnp.sum(h2 * w3_ref[...], axis=0, keepdims=True) + b3_ref[...]
        h3 = jnp.maximum(h3, 0.0)                           # (1, tile)

        if pix_mask is not None:
            h3 = jnp.where(pix_mask, h3, 0.0)

        # Lane-wise accumulation only (cross-lane reduce deferred to epilogue).
        acc_ref[b:b + 1, :] += h3

    @pl.when(k == pl.num_programs(2) - 1)
    def _():
        # One XLU lane-reduce per (batch-block, outer) slot; rows >= bn are 0.
        sums = jnp.sum(acc_ref[...], axis=1, keepdims=True)        # (8, 1)
        out_ref[...] = jnp.broadcast_to(sums, (8, 128)).reshape(1, 1, 8, 128)


def _pick_tile(num_pixels, desired):
    """Pick (tile, n_tiles). tile is a multiple of 128.

    Prefers a divisor of num_pixels (no ragged tail); otherwise uses a fixed
    `desired`-sized tile with a ceil-div grid and in-kernel lane masking.
    """
    desired = max(128, desired - desired % 128)
    p128 = -(-num_pixels // 128) * 128
    if p128 <= desired:
        return p128, 1                      # one (possibly ragged) tile/image
    if num_pixels % 128 == 0:
        t = desired
        while t >= 512:                     # only accept reasonably big tiles
            if num_pixels % t == 0:
                return t, num_pixels // t
            t -= 128
    # Ragged: fixed tile, ceil-div grid, padded lanes masked in-kernel.
    return desired, -(-num_pixels // desired)


def _pick_bn(batch, tile, n_tiles):
    """Batch-block size: >1 only for small maps (one tile per image)."""
    if n_tiles != 1:
        return 1
    for b in (8, 4, 2):
        # Keep the x block <= 8 MiB f32 (<= 16 MiB double-buffered).
        if batch % b == 0 and b * tile <= 4096:
            return b
    return 1


def _tensorcores_per_chip():
    """Best-effort detection of 2-TensorCore parts (v7x-class)."""
    try:
        kind = jax.devices()[0].device_kind.lower()
    except Exception:
        return 1
    return 2 if "v7" in kind else 1


def selector_forward(x_nchw, params, *, tile_pixels=2048):
    """x_nchw: (N, 512, H, W) float32 or bfloat16.  Returns (N,1,1,1) f32."""
    w1, b1, w2, b2, w3, b3 = params
    N, C, H, W = x_nchw.shape
    assert C == C_IN
    P = H * W

    # Free reshape (no HBM transpose): NCHW -> (N, C, H*W).
    x = x_nchw.reshape(N, C, P)

    tile, n_tiles = _pick_tile(P, tile_pixels)
    ragged = (tile * n_tiles != P)

    bn = _pick_bn(N, tile, n_tiles)         # images per grid step
    nb = N // bn                            # batch blocks

    # Split the pixel axis across TensorCores only when (a) the part has two
    # TCs and (b) the batch axis alone cannot fill them.
    n_outer = 1
    if (_tensorcores_per_chip() >= 2 and nb < 2
            and n_tiles >= 2 and n_tiles % 2 == 0):
        n_outer = 2
    n_inner = n_tiles // n_outer

    # Weight prep: conv weights (out, in, 1, 1) kept channel-major, bf16 for
    # the MXU.  Biases / conv3 weights stay f32 on the VPU path.
    w1m = w1[:, :, 0, 0].astype(jnp.bfloat16)                  # (256, 512)
    w2m = w2[:, :, 0, 0].astype(jnp.bfloat16)                  # (64, 256)
    b1m = b1.reshape(C_H1, 1).astype(jnp.float32)              # (256, 1)
    b2m = b2.reshape(C_H2, 1).astype(jnp.float32)              # (64, 1)
    w3m = w3[0, :, 0, 0].reshape(C_H2, 1).astype(jnp.float32)  # (64, 1)
    b3m = b3.reshape(1, 1).astype(jnp.float32)                 # (1, 1)

    kernel = functools.partial(_selector_kernel, bn=bn, n_inner=n_inner,
                               tile=tile, num_pixels=P, ragged=ragged)

    grid = (nb, n_outer, n_inner)

    out = pl.pallas_call(
        kernel,
        out_shape=jax.ShapeDtypeStruct((nb, n_outer, 8, 128), jnp.float32),
        grid_spec=pltpu.PrefetchScalarGridSpec(
            num_scalar_prefetch=0,
            grid=grid,
            in_specs=[
                # NCHW-native activation block: (bn, C_IN, tile).
                pl.BlockSpec((bn, C_IN, tile),
                             lambda n, o, k: (n, 0, o * n_inner + k)),
                pl.BlockSpec((C_H1, C_IN), lambda n, o, k: (0, 0)),
                pl.BlockSpec((C_H1, 1), lambda n, o, k: (0, 0)),
                pl.BlockSpec((C_H2, C_H1), lambda n, o, k: (0, 0)),
                pl.BlockSpec((C_H2, 1), lambda n, o, k: (0, 0)),
                pl.BlockSpec((C_H2, 1), lambda n, o, k: (0, 0)),
                pl.BlockSpec((1, 1), lambda n, o, k: (0, 0)),
            ],
            out_specs=pl.BlockSpec((1, 1, 8, 128),
                                   lambda n, o, k: (n, o, 0, 0)),
            # Lane-wise accumulator: one sublane row per image in the block.
            scratch_shapes=[pltpu.VMEM((8, tile), jnp.float32)],
        ),
        compiler_params=pltpu.CompilerParams(
            dimension_semantics=("parallel", "parallel", "arbitrary"),
            # Explicit (v5e default scoped VMEM is only 16 MiB); NOT raised
            # toward 64 MiB so the 2-deep pipeline survives on v7x.
            vmem_limit_bytes=32 * 1024 * 1024,
        ),
    )(x, w1m, b1m, w2m, b2m, w3m, b3m)

    # Rows 0..bn-1 of each (batch-block, outer) slot hold that image's partial
    # pixel-sum; combine over outer chunks and divide by the TRUE pixel count.
    partial = out[:, :, :bn, 0]                       # (nb, n_outer, bn)
    sums = jnp.sum(partial, axis=1)                   # (nb, bn)
    return (sums.reshape(N) / jnp.float32(P)).reshape(N, 1, 1, 1)


def init_params(key):
    k1, k2, k3, k4, k5, k6 = jax.random.split(key, 6)
    w1 = jax.random.normal(k1, (C_H1, C_IN, 1, 1), jnp.float32) * 0.02
    b1 = jax.random.normal(k2, (C_H1,), jnp.float32) * 0.02
    w2 = jax.random.normal(k3, (C_H2, C_H1, 1, 1), jnp.float32) * 0.02
    b2 = jax.random.normal(k4, (C_H2,), jnp.float32) * 0.02
    w3 = jax.random.normal(k5, (1, C_H2, 1, 1), jnp.float32) * 0.02
    b3 = jax.random.normal(k6, (1,), jnp.float32) * 0.02
    return (w1, b1, w2, b2, w3, b3)


def reference_forward(x_nchw, params):
    w1, b1, w2, b2, w3, b3 = params
    N, C, H, W = x_nchw.shape
    x = jnp.transpose(x_nchw, (0, 2, 3, 1)).reshape(N * H * W, C)
    h1 = jnp.maximum(x @ w1[:, :, 0, 0].T + b1, 0.0)
    h2 = jnp.maximum(h1 @ w2[:, :, 0, 0].T + b2, 0.0)
    h3 = jnp.maximum(h2 @ w3[:, :, 0, 0].T + b3, 0.0)   # (N*H*W, 1)
    return jnp.mean(h3.reshape(N, H * W, 1), axis=1).reshape(N, 1, 1, 1)


if __name__ == "__main__":
    key = jax.random.PRNGKey(0)
    kx, kp = jax.random.split(key)
    N, H, W = 2, 16, 16
    x = jax.random.normal(kx, (N, C_IN, H, W), jnp.float32)
    params = init_params(kp)

    out = jax.block_until_ready(selector_forward(x, params))
    ref = reference_forward(x, params)

    assert out.shape == (N, 1, 1, 1)
    # bf16 MXU operands vs f32 reference -> documented, loosened tolerance.
    assert jnp.allclose(out, ref, rtol=2e-2, atol=2e-3), (out, ref)

    print("KERNEL_OK")
</pallas_src>

<mosaic_0001>
module attributes {stable_mosaic.version = 11 : i64} {
  func.func @_selector_kernel(%arg0: i32, %arg1: i32, %arg2: i32, %arg3: memref<2x512x256xf32, #tpu.memory_space<vmem>>, %arg4: memref<256x512xbf16, #tpu.memory_space<vmem>>, %arg5: memref<256x1xf32, #tpu.memory_space<vmem>>, %arg6: memref<64x256xbf16, #tpu.memory_space<vmem>>, %arg7: memref<64x1xf32, #tpu.memory_space<vmem>>, %arg8: memref<64x1xf32, #tpu.memory_space<vmem>>, %arg9: memref<1x1xf32, #tpu.memory_space<vmem>>, %arg10: memref<1x1x8x128xf32, #tpu.memory_space<vmem>>, %arg11: memref<8x256xf32, #tpu.memory_space<vmem>>) attributes {dimension_semantics = [#tpu.dimension_semantics<parallel>, #tpu.dimension_semantics<parallel>, #tpu.dimension_semantics<arbitrary>], iteration_bounds = array<i64: 1, 1, 1>, scalar_prefetch = 0 : i64, scratch_operands = 1 : i64, tpu.core_type = #tpu.core_type<tc>, window_params = [{transform_indices = @transform_0, window_bounds = array<i64: 2, 512, 256>}, {pipeline_mode = #tpu.pipeline_mode<synchronous>, transform_indices = @transform_1, window_bounds = array<i64: 256, 512>}, {pipeline_mode = #tpu.pipeline_mode<synchronous>, transform_indices = @transform_2, window_bounds = array<i64: 256, 1>}, {pipeline_mode = #tpu.pipeline_mode<synchronous>, transform_indices = @transform_3, window_bounds = array<i64: 64, 256>}, {pipeline_mode = #tpu.pipeline_mode<synchronous>, transform_indices = @transform_4, window_bounds = array<i64: 64, 1>}, {pipeline_mode = #tpu.pipeline_mode<synchronous>, transform_indices = @transform_5, window_bounds = array<i64: 64, 1>}, {pipeline_mode = #tpu.pipeline_mode<synchronous>, transform_indices = @transform_6, window_bounds = array<i64: 1, 1>}, {transform_indices = @transform_7, window_bounds = array<i64: 1, 1, 8, 128>}]} {
    %c0_i32 = arith.constant 0 : i32
    %0 = arith.cmpi eq, %arg2, %c0_i32 : i32
    %1 = arith.extui %0 : i1 to i32
    %c0_i32_0 = arith.constant 0 : i32
    %2 = arith.cmpi ne, %1, %c0_i32_0 : i32
    scf.if %2 {
      %cst_50 = arith.constant 0.000000e+00 : f32
      %68 = vector.broadcast %cst_50 : f32 to vector<8x256xf32>
      %c0_51 = arith.constant 0 : index
      %c0_52 = arith.constant 0 : index
      %69 = vector.load %arg11[%c0_51, %c0_52] : memref<8x256xf32, #tpu.memory_space<vmem>>, vector<8x256xf32>
      tpu.vector_store %arg11[%c0_51, %c0_52], %68 {strides = array<i32>} : memref<8x256xf32, #tpu.memory_space<vmem>>, vector<8x256xf32>,
    } else {
    }
    %c0 = arith.constant 0 : index
    %c0_1 = arith.constant 0 : index
    %c0_2 = arith.constant 0 : index
    %3 = vector.load %arg3[%c0, %c0_1, %c0_2] : memref<2x512x256xf32, #tpu.memory_space<vmem>>, vector<1x512x256xf32>
    %4 = vector.shape_cast %3 : vector<1x512x256xf32> to vector<512x256xf32>
    %5 = arith.truncf %4 : vector<512x256xf32> to vector<512x256xbf16>
    %c0_3 = arith.constant 0 : index
    %c0_4 = arith.constant 0 : index
    %6 = vector.load %arg4[%c0_3, %c0_4] : memref<256x512xbf16, #tpu.memory_space<vmem>>, vector<256x512xbf16>
    %cst = arith.constant dense<0.000000e+00> : vector<256x256xf32>
    %7 = tpu.matmul %6, %5, %cst {dimension_numbers = #tpu.dot_dimension_numbers<[1], [0], [0], [1], [0, 0, 1, 1], [], []>} : vector<256x512xbf16>, vector<512x256xbf16>, vector<256x256xf32> -> vector<256x256xf32>
    %c0_5 = arith.constant 0 : index
    %c0_6 = arith.constant 0 : index
    %8 = vector.load %arg5[%c0_5, %c0_6] : memref<256x1xf32, #tpu.memory_space<vmem>>, vector<256x1xf32>
    %9 = vector.broadcast %8 : vector<256x1xf32> to vector<256x256xf32>
    %10 = arith.addf %7, %9 : vector<256x256xf32>
    %cst_7 = arith.constant 0.000000e+00 : f32
    %11 = vector.broadcast %cst_7 : f32 to vector<256x256xf32>
    %12 = arith.maximumf %10, %11 : vector<256x256xf32>
    %c0_8 = arith.constant 0 : index
    %c0_9 = arith.constant 0 : index
    %13 = vector.load %arg6[%c0_8, %c0_9] : memref<64x256xbf16, #tpu.memory_space<vmem>>, vector<64x256xbf16>
    %14 = arith.truncf %12 : vector<256x256xf32> to vector<256x256xbf16>
    %cst_10 = arith.constant dense<0.000000e+00> : vector<64x256xf32>
    %15 = tpu.matmul %13, %14, %cst_10 {dimension_numbers = #tpu.dot_dimension_numbers<[1], [0], [0], [1], [0, 0, 1, 1], [], []>} : vector<64x256xbf16>, vector<256x256xbf16>, vector<64x256xf32> -> vector<64x256xf32>
    %c0_11 = arith.constant 0 : index
    %c0_12 = arith.constant 0 : index
    %16 = vector.load %arg7[%c0_11, %c0_12] : memref<64x1xf32, #tpu.memory_space<vmem>>, vector<64x1xf32>
    %17 = vector.broadcast %16 : vector<64x1xf32> to vector<64x256xf32>
    %18 = arith.addf %15, %17 : vector<64x256xf32>
    %cst_13 = arith.constant 0.000000e+00 : f32
    %19 = vector.broadcast %cst_13 : f32 to vector<64x256xf32>
    %20 = arith.maximumf %18, %19 : vector<64x256xf32>
    %c0_14 = arith.constant 0 : index
    %c0_15 = arith.constant 0 : index
    %21 = vector.load %arg8[%c0_14, %c0_15] : memref<64x1xf32, #tpu.memory_space<vmem>>, vector<64x1xf32>
    %22 = vector.broadcast %21 : vector<64x1xf32> to vector<64x256xf32>
    %23 = arith.mulf %20, %22 : vector<64x256xf32>
    %cst_16 = arith.constant dense<0.000000e+00> : vector<256xf32>
    %24 = vector.multi_reduction <add>, %23, %cst_16 [0] : vector<64x256xf32> to vector<256xf32>
    %25 = vector.shape_cast %24 : vector<256xf32> to vector<1x256xf32>
    %c0_17 = arith.constant 0 : index
    %c0_18 = arith.constant 0 : index
    %26 = vector.load %arg9[%c0_17, %c0_18] : memref<1x1xf32, #tpu.memory_space<vmem>>, vector<1x1xf32>
    %27 = vector.broadcast %26 : vector<1x1xf32> to vector<1x256xf32>
    %28 = arith.addf %25, %27 : vector<1x256xf32>
    %cst_19 = arith.constant 0.000000e+00 : f32
    %29 = vector.broadcast %cst_19 : f32 to vector<1x256xf32>
    %30 = arith.maximumf %28, %29 : vector<1x256xf32>
    %c0_20 = arith.constant 0 : index
    %c0_21 = arith.constant 0 : index
    %31 = vector.load %arg11[%c0_20, %c0_21] : memref<8x256xf32, #tpu.memory_space<vmem>>, vector<1x256xf32>
    %32 = arith.addf %31, %30 : vector<1x256xf32>
    %c0_22 = arith.constant 0 : index
    %c0_23 = arith.constant 0 : index
    %33 = vector.load %arg11[%c0_22, %c0_23] : memref<8x256xf32, #tpu.memory_space<vmem>>, vector<1x256xf32>
    tpu.vector_store %arg11[%c0_22, %c0_23], %32 {strides = array<i32>} : memref<8x256xf32, #tpu.memory_space<vmem>>, vector<1x256xf32>,
    %c1 = arith.constant 1 : index
    %c0_24 = arith.constant 0 : index
    %c0_25 = arith.constant 0 : index
    %34 = vector.load %arg3[%c1, %c0_24, %c0_25] : memref<2x512x256xf32, #tpu.memory_space<vmem>>, vector<1x512x256xf32>
    %35 = vector.shape_cast %34 : vector<1x512x256xf32> to vector<512x256xf32>
    %36 = arith.truncf %35 : vector<512x256xf32> to vector<512x256xbf16>
    %c0_26 = arith.constant 0 : index
    %c0_27 = arith.constant 0 : index
    %37 = vector.load %arg4[%c0_26, %c0_27] : memref<256x512xbf16, #tpu.memory_space<vmem>>, vector<256x512xbf16>
    %cst_28 = arith.constant dense<0.000000e+00> : vector<256x256xf32>
    %38 = tpu.matmul %37, %36, %cst_28 {dimension_numbers = #tpu.dot_dimension_numbers<[1], [0], [0], [1], [0, 0, 1, 1], [], []>} : vector<256x512xbf16>, vector<512x256xbf16>, vector<256x256xf32> -> vector<256x256xf32>
    %c0_29 = arith.constant 0 : index
    %c0_30 = arith.constant 0 : index
    %39 = vector.load %arg5[%c0_29, %c0_30] : memref<256x1xf32, #tpu.memory_space<vmem>>, vector<256x1xf32>
    %40 = vector.broadcast %39 : vector<256x1xf32> to vector<256x256xf32>
    %41 = arith.addf %38, %40 : vector<256x256xf32>
    %cst_31 = arith.constant 0.000000e+00 : f32
    %42 = vector.broadcast %cst_31 : f32 to vector<256x256xf32>
    %43 = arith.maximumf %41, %42 : vector<256x256xf32>
    %c0_32 = arith.constant 0 : index
    %c0_33 = arith.constant 0 : index
    %44 = vector.load %arg6[%c0_32, %c0_33] : memref<64x256xbf16, #tpu.memory_space<vmem>>, vector<64x256xbf16>
    %45 = arith.truncf %43 : vector<256x256xf32> to vector<256x256xbf16>
    %cst_34 = arith.constant dense<0.000000e+00> : vector<64x256xf32>
    %46 = tpu.matmul %44, %45, %cst_34 {dimension_numbers = #tpu.dot_dimension_numbers<[1], [0], [0], [1], [0, 0, 1, 1], [], []>} : vector<64x256xbf16>, vector<256x256xbf16>, vector<64x256xf32> -> vector<64x256xf32>
    %c0_35 = arith.constant 0 : index
    %c0_36 = arith.constant 0 : index
    %47 = vector.load %arg7[%c0_35, %c0_36] : memref<64x1xf32, #tpu.memory_space<vmem>>, vector<64x1xf32>
    %48 = vector.broadcast %47 : vector<64x1xf32> to vector<64x256xf32>
    %49 = arith.addf %46, %48 : vector<64x256xf32>
    %cst_37 = arith.constant 0.000000e+00 : f32
    %50 = vector.broadcast %cst_37 : f32 to vector<64x256xf32>
    %51 = arith.maximumf %49, %50 : vector<64x256xf32>
    %c0_38 = arith.constant 0 : index
    %c0_39 = arith.constant 0 : index
    %52 = vector.load %arg8[%c0_38, %c0_39] : memref<64x1xf32, #tpu.memory_space<vmem>>, vector<64x1xf32>
    %53 = vector.broadcast %52 : vector<64x1xf32> to vector<64x256xf32>
    %54 = arith.mulf %51, %53 : vector<64x256xf32>
    %cst_40 = arith.constant dense<0.000000e+00> : vector<256xf32>
    %55 = vector.multi_reduction <add>, %54, %cst_40 [0] : vector<64x256xf32> to vector<256xf32>
    %56 = vector.shape_cast %55 : vector<256xf32> to vector<1x256xf32>
    %c0_41 = arith.constant 0 : index
    %c0_42 = arith.constant 0 : index
    %57 = vector.load %arg9[%c0_41, %c0_42] : memref<1x1xf32, #tpu.memory_space<vmem>>, vector<1x1xf32>
    %58 = vector.broadcast %57 : vector<1x1xf32> to vector<1x256xf32>
    %59 = arith.addf %56, %58 : vector<1x256xf32>
    %cst_43 = arith.constant 0.000000e+00 : f32
    %60 = vector.broadcast %cst_43 : f32 to vector<1x256xf32>
    %61 = arith.maximumf %59, %60 : vector<1x256xf32>
    %c1_44 = arith.constant 1 : index
    %c0_45 = arith.constant 0 : index
    %62 = vector.load %arg11[%c1_44, %c0_45] : memref<8x256xf32, #tpu.memory_space<vmem>>, vector<1x256xf32>
    %63 = arith.addf %62, %61 : vector<1x256xf32>
    %c1_46 = arith.constant 1 : index
    %c0_47 = arith.constant 0 : index
    %64 = vector.load %arg11[%c1_46, %c0_47] : memref<8x256xf32, #tpu.memory_space<vmem>>, vector<1x256xf32>
    tpu.vector_store %arg11[%c1_46, %c0_47], %63 {strides = array<i32>} : memref<8x256xf32, #tpu.memory_space<vmem>>, vector<1x256xf32>,
    %c0_i32_48 = arith.constant 0 : i32
    %65 = arith.cmpi eq, %arg2, %c0_i32_48 : i32
    %66 = arith.extui %65 : i1 to i32
    %c0_i32_49 = arith.constant 0 : i32
    %67 = arith.cmpi ne, %66, %c0_i32_49 : i32
    scf.if %67 {
      %c0_50 = arith.constant 0 : index
      %c0_51 = arith.constant 0 : index
      %68 = vector.load %arg11[%c0_50, %c0_51] : memref<8x256xf32, #tpu.memory_space<vmem>>, vector<8x256xf32>
      %cst_52 = arith.constant dense<0.000000e+00> : vector<8xf32>
      %69 = vector.multi_reduction <add>, %68, %cst_52 [1] : vector<8x256xf32> to vector<8xf32>
      %70 = vector.shape_cast %69 : vector<8xf32> to vector<8x1xf32>
      %71 = vector.shape_cast %70 : vector<8x1xf32> to vector<8x1xf32>
      %72 = vector.broadcast %71 : vector<8x1xf32> to vector<8x128xf32>
      %73 = vector.shape_cast %72 : vector<8x128xf32> to vector<1x1x8x128xf32>
      %c0_53 = arith.constant 0 : index
      %c0_54 = arith.constant 0 : index
      %c0_55 = arith.constant 0 : index
      %c0_56 = arith.constant 0 : index
      %74 = vector.load %arg10[%c0_53, %c0_54, %c0_55, %c0_56] : memref<1x1x8x128xf32, #tpu.memory_space<vmem>>, vector<1x1x8x128xf32>
      tpu.vector_store %arg10[%c0_53, %c0_54, %c0_55, %c0_56], %73 {strides = array<i32>} : memref<1x1x8x128xf32, #tpu.memory_space<vmem>>, vector<1x1x8x128xf32>,
    } else {
    }
    return
  }
  func.func @transform_0(%arg0: i32, %arg1: i32, %arg2: i32) -> (i32, i32, i32) {
    %c1_i32 = arith.constant 1 : i32
    %0 = arith.muli %arg1, %c1_i32 : i32
    %1 = arith.addi %0, %arg2 : i32
    %c0_i32 = arith.constant 0 : i32
    %c0_i32_0 = arith.constant 0 : i32
    return %arg0, %c0_i32, %1 : i32, i32, i32
  }
  func.func @transform_1(%arg0: i32, %arg1: i32, %arg2: i32) -> (i32, i32) {
    %c0_i32 = arith.constant 0 : i32
    %c0_i32_0 = arith.constant 0 : i32
    %c0_i32_1 = arith.constant 0 : i32
    return %c0_i32, %c0_i32_0 : i32, i32
  }
  func.func @transform_2(%arg0: i32, %arg1: i32, %arg2: i32) -> (i32, i32) {
    %c0_i32 = arith.constant 0 : i32
    %c0_i32_0 = arith.constant 0 : i32
    %c0_i32_1 = arith.constant 0 : i32
    return %c0_i32, %c0_i32_0 : i32, i32
  }
  func.func @transform_3(%arg0: i32, %arg1: i32, %arg2: i32) -> (i32, i32) {
    %c0_i32 = arith.constant 0 : i32
    %c0_i32_0 = arith.constant 0 : i32
    %c0_i32_1 = arith.constant 0 : i32
    return %c0_i32, %c0_i32_0 : i32, i32
  }
  func.func @transform_4(%arg0: i32, %arg1: i32, %arg2: i32) -> (i32, i32) {
    %c0_i32 = arith.constant 0 : i32
    %c0_i32_0 = arith.constant 0 : i32
    %c0_i32_1 = arith.constant 0 : i32
    return %c0_i32, %c0_i32_0 : i32, i32
  }
  func.func @transform_5(%arg0: i32, %arg1: i32, %arg2: i32) -> (i32, i32) {
    %c0_i32 = arith.constant 0 : i32
    %c0_i32_0 = arith.constant 0 : i32
    %c0_i32_1 = arith.constant 0 : i32
    return %c0_i32, %c0_i32_0 : i32, i32
  }
  func.func @transform_6(%arg0: i32, %arg1: i32, %arg2: i32) -> (i32, i32) {
    %c0_i32 = arith.constant 0 : i32
    %c0_i32_0 = arith.constant 0 : i32
    %c0_i32_1 = arith.constant 0 : i32
    return %c0_i32, %c0_i32_0 : i32, i32
  }
  func.func @transform_7(%arg0: i32, %arg1: i32, %arg2: i32) -> (i32, i32, i32, i32) {
    %c0_i32 = arith.constant 0 : i32
    %c0_i32_0 = arith.constant 0 : i32
    %c0_i32_1 = arith.constant 0 : i32
    return %arg0, %arg1, %c0_i32, %c0_i32_0 : i32, i32, i32, i32
  }
}

</mosaic_0001>

<llo_original>
// kernel: tpu_custom_call.1
$region0: #{tpu_custom_call.1}
  #allocation0 [shape = 'u32[]', space=smem, size = 0x4, offset = 0x4, fixed_abs, tag = 'smem constant byte address 0x4 - core index']
  #allocation1 [shape = 'u32[144,128]{1,0:T(1,128)}', space=vmem, size = 0x12000, scoped, tag = 'internal scratch']
  #allocation2 [shape = 'f32[8,256]{1,0:T(8,128)}', space=vmem, size = 0x2000, scoped, tag = 'scratch operand']
  #allocation3 [shape = 'f32[1,1]{1,0:T(1,128)S(1)}', space=vmem, size = 0x200, scoped, tag = 'scoped memory for tpu_custom_call.1']
  %s0 = inlined_call_operand.hbm [shape: f32[2,512,256], index: 0, kind: input, shape index: {}]
  %s1 = inlined_call_operand.hbm [shape: bf16[256,512], index: 1, kind: input, shape index: {}]
  %s2 = inlined_call_operand.vmem [shape: f32[256,1], index: 2, kind: input, shape index: {}]
  %s3 = inlined_call_operand.vmem [shape: bf16[64,256], index: 3, kind: input, shape index: {}]
  %s4 = inlined_call_operand.vmem [shape: f32[64,1], index: 4, kind: input, shape index: {}]
  %s5 = inlined_call_operand.vmem [shape: f32[64,1], index: 5, kind: input, shape index: {}]
  %s6 = inlined_call_operand.<no memory space> [shape: f32[1,1], index: 6, kind: input, shape index: {}]
  %s7 = inlined_call_operand.hbm [shape: f32[1,1,8,128], index: 7, kind: output, shape index: {}]
  %s8 = sld [smem:[#allocation0]]
  $region54: #{tpu_custom_call.1} parent=0
    _
  %s10 = ssub.s32 1, %s8
  %s11 = scalar_select 0, %s10, %s8
  %v12 = vstv %s6
  %13 = vst [vmem:[#allocation3] sm:$0x1] %v12
  $region1: #{tpu_custom_call.1} parent=0
    #allocation4 [shape = 'u8[1048576]{0}', space=vmem, size = 0x100000, scoped, tag = 'input window, operand 0, single buffered']
    #allocation5 [shape = 's32[1]{0}', space=sflag, size = 0x4, scoped, tag = 'scoped memory for tpu_custom_call.1']
    #allocation6 [shape = 's32[1]{0}', space=sflag, size = 0x4, scoped, tag = 'scoped memory for tpu_custom_call.1']
    #allocation7 [shape = 'u8[262144]{0}', space=vmem, size = 0x40000, scoped, tag = 'input window, operand 1, single buffered']
    #allocation8 [shape = 's32[1]{0}', space=sflag, size = 0x4, scoped, tag = 'scoped memory for tpu_custom_call.1']
    #allocation9 [shape = 'u8[4096]{0}', space=vmem, size = 0x1000, scoped, tag = 'output window, operand 0, single buffered']
    %14 = vsyncpa [#allocation5], 0
    %15 = vsyncpa [#allocation8], 0
    %16 = vsyncpa [#allocation6], 0
    // Predicated region
    $region2: #{tpu_custom_call.1} parent=1 // pred_check
      _
    $region3: #{tpu_custom_call.1} parent=1 // pred_check_branch
      %18 = sbr.rel (0) target = $region5
    $region4: #{tpu_custom_call.1} parent=1 // pred_region
      %s19 = sadd.s32 0, 0
      %s20 = smul.u32 2, %s19
      %s22 = ssub.s32 32768, 32768
      %23 = vsyncadd [#allocation5], %s22
      %s24 = smul.addr %s20, 128
      %s25 = scalar_lea.hbm %s0, %s24
      %s26 = sshll.u32 [#allocation4], 4
      %s27 = int_to_ptr.vmem [resolvable:$true] %s26
      %32 = dma.hbm_to_vmem [thread:$0]  %s25, 32768, %s27, [#allocation5], 256, 256, 16
    $region5: #{tpu_custom_call.1} parent=1 // pred_fallthru
      _
    // Predicated region
    $region6: #{tpu_custom_call.1} parent=1 // pred_check
      _
    $region7: #{tpu_custom_call.1} parent=1 // pred_check_branch
      %34 = sbr.rel (0) target = $region9
    $region8: #{tpu_custom_call.1} parent=1 // pred_region
      %s36 = ssub.s32 8192, 8192
      %37 = vsyncadd [#allocation8], %s36
      %s38 = sshll.u32 [#allocation7], 4
      %s39 = int_to_ptr.vmem [resolvable:$true] %s38
      %44 = dma.hbm_to_vmem [thread:$0]  %s1, 8192, %s39, [#allocation8], 256, 256, 16
    $region9: #{tpu_custom_call.1} parent=1 // pred_fallthru
      _
    // Predicated region
    $region10: #{tpu_custom_call.1} parent=1 // pred_check
      _
    $region11: #{tpu_custom_call.1} parent=1 // pred_check_branch
      %46 = sbr.rel (0) target = $region13
    $region12: #{tpu_custom_call.1} parent=1 // pred_region
      _
    $region13: #{tpu_custom_call.1} parent=1 // pred_fallthru
      _
    // Predicated region
    $region14: #{tpu_custom_call.1} parent=1 // pred_check
      _
    $region15: #{tpu_custom_call.1} parent=1 // pred_check_branch
      %48 = sbr.rel (0) target = $region17
    $region16: #{tpu_custom_call.1} parent=1 // pred_region
      _
    $region17: #{tpu_custom_call.1} parent=1 // pred_fallthru
      _
    // Predicated region
    $region18: #{tpu_custom_call.1} parent=1 // pred_check
      _
    $region19: #{tpu_custom_call.1} parent=1 // pred_check_branch
      %50 = sbr.rel (0) target = $region21
    $region20: #{tpu_custom_call.1} parent=1 // pred_region
      _
    $region21: #{tpu_custom_call.1} parent=1 // pred_fallthru
      _
    // Predicated region
    $region22: #{tpu_custom_call.1} parent=1 // pred_check
      _
    $region23: #{tpu_custom_call.1} parent=1 // pred_check_branch
      %52 = sbr.rel (0) target = $region25
    $region24: #{tpu_custom_call.1} parent=1 // pred_region
      _
    $region25: #{tpu_custom_call.1} parent=1 // pred_fallthru
      _
    // Predicated region
    $region26: #{tpu_custom_call.1} parent=1 // pred_check
      _
    $region27: #{tpu_custom_call.1} parent=1 // pred_check_branch
      %54 = sbr.rel (0) target = $region29
    $region28: #{tpu_custom_call.1} parent=1 // pred_region
      _
    $region29: #{tpu_custom_call.1} parent=1 // pred_fallthru
      _
    // Predicated region
    $region30: #{tpu_custom_call.1} parent=1 // pred_check
      _
    $region31: #{tpu_custom_call.1} parent=1 // pred_check_branch
      %56 = sbr.rel (0) target = $region33
    $region32: #{tpu_custom_call.1} parent=1 // pred_region
      %57 = dma.done [#allocation5], 32768
    $region33: #{tpu_custom_call.1} parent=1 // pred_fallthru
      _
    // Predicated region
    $region34: #{tpu_custom_call.1} parent=1 // pred_check
      _
    $region35: #{tpu_custom_call.1} parent=1 // pred_check_branch
      %59 = sbr.rel (0) target = $region37
    $region36: #{tpu_custom_call.1} parent=1 // pred_region
      %60 = dma.done [#allocation8], 8192
    $region37: #{tpu_custom_call.1} parent=1 // pred_fallthru
      _
    %s61 = sadd.s32 0, 0
    %s62 = smul.u32 2, %s61
    %p63 = scmp.eq.s32.totalorder 0, 0
    // Predicated region
    $region38: #{tpu_custom_call.1} parent=1 // pred_check
      %p64 = pneg %p63
    $region39: #{tpu_custom_call.1} parent=1 // pred_check_branch
      %66 = sbr.rel (%p64) target = $region41
    $region40: #{tpu_custom_call.1} parent=1 // pred_region
      %67 = vst [vmem:[#allocation2] sm:$0xff] 0.0
      %68 = vst [vmem:[#allocation2 + $0x8] sm:$0xff] 0.0
    $region41: #{tpu_custom_call.1} parent=1 // pred_fallthru
      _
    %v69 = vld [vmem:[#allocation4] sm:$0xff]
    %v70 = vld [vmem:[#allocation4 + $0x8] sm:$0xff]
    %v71 = vld [vmem:[#allocation4 + $0x10] sm:$0xff]
    %v72 = vld [vmem:[#allocation4 + $0x18] sm:$0xff]
    %v73 = vld [vmem:[#allocation4 + $0x20] sm:$0xff]
    %v74 = vld [vmem:[#allocation4 + $0x28] sm:$0xff]
    %v75 = vld [vmem:[#allocation4 + $0x30] sm:$0xff]
    %v76 = vld [vmem:[#allocation4 + $0x38] sm:$0xff]
    %v77 = vld [vmem:[#allocation4 + $0x40] sm:$0xff]
    %v78 = vld [vmem:[#allocation4 + $0x48] sm:$0xff]
    %v79 = vld [vmem:[#allocation4 + $0x50] sm:$0xff]
    %v80 = vld [vmem:[#allocation4 + $0x58] sm:$0xff]
    %v81 = vld [vmem:[#allocation4 + $0x60] sm:$0xff]
    %v82 = vld [vmem:[#allocation4 + $0x68] sm:$0xff]
    %v83 = vld [vmem:[#allocation4 + $0x70] sm:$0xff]
    %v84 = vld [vmem:[#allocation4 + $0x78] sm:$0xff]
    %v85 = vld [vmem:[#allocation4 + $0x80] sm:$0xff]
    %v86 = vld [vmem:[#allocation4 + $0x88] sm:$0xff]
    %v87 = vld [vmem:[#allocation4 + $0x90] sm:$0xff]
    %v88 = vld [vmem:[#allocation4 + $0x98] sm:$0xff]
    %v89 = vld [vmem:[#allocation4 + $0xa0] sm:$0xff]
    %v90 = vld [vmem:[#allocation4 + $0xa8] sm:$0xff]
    %v91 = vld [vmem:[#allocation4 + $0xb0] sm:$0xff]
    %v92 = vld [vmem:[#allocation4 + $0xb8] sm:$0xff]
    %v93 = vld [vmem:[#allocation4 + $0xc0] sm:$0xff]
    %v94 = vld [vmem:[#allocation4 + $0xc8] sm:$0xff]
    %v95 = vld [vmem:[#allocation4 + $0xd0] sm:$0xff]
    %v96 = vld [vmem:[#allocation4 + $0xd8] sm:$0xff]
    %v97 = vld [vmem:[#allocation4 + $0xe0] sm:$0xff]
    %v98 = vld [vmem:[#allocation4 + $0xe8] sm:$0xff]
    %v99 = vld [vmem:[#allocation4 + $0xf0] sm:$0xff]
    %v100 = vld [vmem:[#allocation4 + $0xf8] sm:$0xff]
    %v101 = vld [vmem:[#allocation4 + $0x100] sm:$0xff]
    %v102 = vld [vmem:[#allocation4 + $0x108] sm:$0xff]
    %v103 = vld [vmem:[#allocation4 + $0x110] sm:$0xff]
    %v104 = vld [vmem:[#allocation4 + $0x118] sm:$0xff]
    %v105 = vld [vmem:[#allocation4 + $0x120] sm:$0xff]
    %v106 = vld [vmem:[#allocation4 + $0x128] sm:$0xff]
    %v107 = vld [vmem:[#allocation4 + $0x130] sm:$0xff]
    %v108 = vld [vmem:[#allocation4 + $0x138] sm:$0xff]
    %v109 = vld [vmem:[#allocation4 + $0x140] sm:$0xff]
    %v110 = vld [vmem:[#allocation4 + $0x148] sm:$0xff]
    %v111 = vld [vmem:[#allocation4 + $0x150] sm:$0xff]
    %v112 = vld [vmem:[#allocation4 + $0x158] sm:$0xff]
    %v113 = vld [vmem:[#allocation4 + $0x160] sm:$0xff]
    %v114 = vld [vmem:[#allocation4 + $0x168] sm:$0xff]
    %v115 = vld [vmem:[#allocation4 + $0x170] sm:$0xff]
    %v116 = vld [vmem:[#allocation4 + $0x178] sm:$0xff]
    %v117 = vld [vmem:[#allocation4 + $0x180] sm:$0xff]
    %v118 = vld [vmem:[#allocation4 + $0x188] sm:$0xff]
    %v119 = vld [vmem:[#allocation4 + $0x190] sm:$0xff]
    %v120 = vld [vmem:[#allocation4 + $0x198] sm:$0xff]
    %v121 = vld [vmem:[#allocation4 + $0x1a0] sm:$0xff]
    %v122 = vld [vmem:[#allocation4 + $0x1a8] sm:$0xff]
    %v123 = vld [vmem:[#allocation4 + $0x1b0] sm:$0xff]
    %v124 = vld [vmem:[#allocation4 + $0x1b8] sm:$0xff]
    %v125 = vld [vmem:[#allocation4 + $0x1c0] sm:$0xff]
    %v126 = vld [vmem:[#allocation4 + $0x1c8] sm:$0xff]
    %v127 = vld [vmem:[#allocation4 + $0x1d0] sm:$0xff]
    %v128 = vld [vmem:[#allocation4 + $0x1d8] sm:$0xff]
    %v129 = vld [vmem:[#allocation4 + $0x1e0] sm:$0xff]
    %v130 = vld [vmem:[#allocation4 + $0x1e8] sm:$0xff]
    %v131 = vld [vmem:[#allocation4 + $0x1f0] sm:$0xff]
    %v132 = vld [vmem:[#allocation4 + $0x1f8] sm:$0xff]
    %v133 = vld [vmem:[#allocation4 + $0x200] sm:$0xff]
    %v134 = vld [vmem:[#allocation4 + $0x208] sm:$0xff]
    %v135 = vld [vmem:[#allocation4 + $0x210] sm:$0xff]
    %v136 = vld [vmem:[#allocation4 + $0x218] sm:$0xff]
    %v137 = vld [vmem:[#allocation4 + $0x220] sm:$0xff]
    %v138 = vld [vmem:[#allocation4 + $0x228] sm:$0xff]
    %v139 = vld [vmem:[#allocation4 + $0x230] sm:$0xff]
    %v140 = vld [vmem:[#allocation4 + $0x238] sm:$0xff]
    %v141 = vld [vmem:[#allocation4 + $0x240] sm:$0xff]
    %v142 = vld [vmem:[#allocation4 + $0x248] sm:$0xff]
    %v143 = vld [vmem:[#allocation4 + $0x250] sm:$0xff]
    %v144 = vld [vmem:[#allocation4 + $0x258] sm:$0xff]
    %v145 = vld [vmem:[#allocation4 + $0x260] sm:$0xff]
    %v146 = vld [vmem:[#allocation4 + $0x268] sm:$0xff]
    %v147 = vld [vmem:[#allocation4 + $0x270] sm:$0xff]
    %v148 = vld [vmem:[#allocation4 + $0x278] sm:$0xff]
    %v149 = vld [vmem:[#allocation4 + $0x280] sm:$0xff]
    %v150 = vld [vmem:[#allocation4 + $0x288] sm:$0xff]
    %v151 = vld [vmem:[#allocation4 + $0x290] sm:$0xff]
    %v152 = vld [vmem:[#allocation4 + $0x298] sm:$0xff]
    %v153 = vld [vmem:[#allocation4 + $0x2a0] sm:$0xff]
    %v154 = vld [vmem:[#allocation4 + $0x2a8] sm:$0xff]
    %v155 = vld [vmem:[#allocation4 + $0x2b0] sm:$0xff]
    %v156 = vld [vmem:[#allocation4 + $0x2b8] sm:$0xff]
    %v157 = vld [vmem:[#allocation4 + $0x2c0] sm:$0xff]
    %v158 = vld [vmem:[#allocation4 + $0x2c8] sm:$0xff]
    %v159 = vld [vmem:[#allocation4 + $0x2d0] sm:$0xff]
    %v160 = vld [vmem:[#allocation4 + $0x2d8] sm:$0xff]
    %v161 = vld [vmem:[#allocation4 + $0x2e0] sm:$0xff]
    %v162 = vld [vmem:[#allocation4 + $0x2e8] sm:$0xff]
    %v163 = vld [vmem:[#allocation4 + $0x2f0] sm:$0xff]
    %v164 = vld [vmem:[#allocation4 + $0x2f8] sm:$0xff]
    %v165 = vld [vmem:[#allocation4 + $0x300] sm:$0xff]
    %v166 = vld [vmem:[#allocation4 + $0x308] sm:$0xff]
    %v167 = vld [vmem:[#allocation4 + $0x310] sm:$0xff]
    %v168 = vld [vmem:[#allocation4 + $0x318] sm:$0xff]
    %v169 = vld [vmem:[#allocation4 + $0x320] sm:$0xff]
    %v170 = vld [vmem:[#allocation4 + $0x328] sm:$0xff]
    %v171 = vld [vmem:[#allocation4 + $0x330] sm:$0xff]
    %v172 = vld [vmem:[#allocation4 + $0x338] sm:$0xff]
    %v173 = vld [vmem:[#allocation4 + $0x340] sm:$0xff]
    %v174 = vld [vmem:[#allocation4 + $0x348] sm:$0xff]
    %v175 = vld [vmem:[#allocation4 + $0x350] sm:$0xff]
    %v176 = vld [vmem:[#allocation4 + $0x358] sm:$0xff]
    %v177 = vld [vmem:[#allocation4 + $0x360] sm:$0xff]
    %v178 = vld [vmem:[#allocation4 + $0x368] sm:$0xff]
    %v179 = vld [vmem:[#allocation4 + $0x370] sm:$0xff]
    %v180 = vld [vmem:[#allocation4 + $0x378] sm:$0xff]
    %v181 = vld [vmem:[#allocation4 + $0x380] sm:$0xff]
    %v182 = vld [vmem:[#allocation4 + $0x388] sm:$0xff]
    %v183 = vld [vmem:[#allocation4 + $0x390] sm:$0xff]
    %v184 = vld [vmem:[#allocation4 + $0x398] sm:$0xff]
    %v185 = vld [vmem:[#allocation4 + $0x3a0] sm:$0xff]
    %v186 = vld [vmem:[#allocation4 + $0x3a8] sm:$0xff]
    %v187 = vld [vmem:[#allocation4 + $0x3b0] sm:$0xff]
    %v188 = vld [vmem:[#allocation4 + $0x3b8] sm:$0xff]
    %v189 = vld [vmem:[#allocation4 + $0x3c0] sm:$0xff]
    %v190 = vld [vmem:[#allocation4 + $0x3c8] sm:$0xff]
    %v191 = vld [vmem:[#allocation4 + $0x3d0] sm:$0xff]
    %v192 = vld [vmem:[#allocation4 + $0x3d8] sm:$0xff]
    %v193 = vld [vmem:[#allocation4 + $0x3e0] sm:$0xff]
    %v194 = vld [vmem:[#allocation4 + $0x3e8] sm:$0xff]
    %v195 = vld [vmem:[#allocation4 + $0x3f0] sm:$0xff]
    %v196 = vld [vmem:[#allocation4 + $0x3f8] sm:$0xff]
    %v197 = vpack.c.bf16 %v71, %v69
    %v198 = vpack.c.bf16 %v72, %v70
    %v199 = vpack.c.bf16 %v75, %v73
    %v200 = vpack.c.bf16 %v76, %v74
    %v201 = vpack.c.bf16 %v79, %v77
    %v202 = vpack.c.bf16 %v80, %v78
    %v203 = vpack.c.bf16 %v83, %v81
    %v204 = vpack.c.bf16 %v84, %v82
    %v205 = vpack.c.bf16 %v87, %v85
    %v206 = vpack.c.bf16 %v88, %v86
    %v207 = vpack.c.bf16 %v91, %v89
    %v208 = vpack.c.bf16 %v92, %v90
    %v209 = vpack.c.bf16 %v95, %v93
    %v210 = vpack.c.bf16 %v96, %v94
    %v211 = vpack.c.bf16 %v99, %v97
    %v212 = vpack.c.bf16 %v100, %v98
    %v213 = vpack.c.bf16 %v103, %v101
    %v214 = vpack.c.bf16 %v104, %v102
    %v215 = vpack.c.bf16 %v107, %v105
    %v216 = vpack.c.bf16 %v108, %v106
    %v217 = vpack.c.bf16 %v111, %v109
    %v218 = vpack.c.bf16 %v112, %v110
    %v219 = vpack.c.bf16 %v115, %v113
    %v220 = vpack.c.bf16 %v116, %v114
    %v221 = vpack.c.bf16 %v119, %v117
    %v222 = vpack.c.bf16 %v120, %v118
    %v223 = vpack.c.bf16 %v123, %v121
    %v224 = vpack.c.bf16 %v124, %v122
    %v225 = vpack.c.bf16 %v127, %v125
    %v226 = vpack.c.bf16 %v128, %v126
    %v227 = vpack.c.bf16 %v131, %v129
    %v228 = vpack.c.bf16 %v132, %v130
    %v229 = vpack.c.bf16 %v135, %v133
    %v230 = vpack.c.bf16 %v136, %v134
    %v231 = vpack.c.bf16 %v139, %v137
    %v232 = vpack.c.bf16 %v140, %v138
    %v233 = vpack.c.bf16 %v143, %v141
    %v234 = vpack.c.bf16 %v144, %v142
    %v235 = vpack.c.bf16 %v147, %v145
    %v236 = vpack.c.bf16 %v148, %v146
    %v237 = vpack.c.bf16 %v151, %v149
    %v238 = vpack.c.bf16 %v152, %v150
    %v239 = vpack.c.bf16 %v155, %v153
    %v240 = vpack.c.bf16 %v156, %v154
    %v241 = vpack.c.bf16 %v159, %v157
    %v242 = vpack.c.bf16 %v160, %v158
    %v243 = vpack.c.bf16 %v163, %v161
    %v244 = vpack.c.bf16 %v164, %v162
    %v245 = vpack.c.bf16 %v167, %v165
    %v246 = vpack.c.bf16 %v168, %v166
    %v247 = vpack.c.bf16 %v171, %v169
    %v248 = vpack.c.bf16 %v172, %v170
    %v249 = vpack.c.bf16 %v175, %v173
    %v250 = vpack.c.bf16 %v176, %v174
    %v251 = vpack.c.bf16 %v179, %v177
    %v252 = vpack.c.bf16 %v180, %v178
    %v253 = vpack.c.bf16 %v183, %v181
    %v254 = vpack.c.bf16 %v184, %v182
    %v255 = vpack.c.bf16 %v187, %v185
    %v256 = vpack.c.bf16 %v188, %v186
    %v257 = vpack.c.bf16 %v191, %v189
    %v258 = vpack.c.bf16 %v192, %v190
    %v259 = vpack.c.bf16 %v195, %v193
    %v260 = vpack.c.bf16 %v196, %v194
    %v261 = vld [vmem:[#allocation7] sm:$0xff]
    %v262 = vld [vmem:[#allocation7 + $0x8] sm:$0xff]
    %v263 = vld [vmem:[#allocation7 + $0x10] sm:$0xff]
    %v264 = vld [vmem:[#allocation7 + $0x18] sm:$0xff]
    %v265 = vld [vmem:[#allocation7 + $0x20] sm:$0xff]
    %v266 = vld [vmem:[#allocation7 + $0x28] sm:$0xff]
    %v267 = vld [vmem:[#allocation7 + $0x30] sm:$0xff]
    %v268 = vld [vmem:[#allocation7 + $0x38] sm:$0xff]
    %v269 = vld [vmem:[#allocation7 + $0x40] sm:$0xff]
    %v270 = vld [vmem:[#allocation7 + $0x48] sm:$0xff]
    %v271 = vld [vmem:[#allocation7 + $0x50] sm:$0xff]
    %v272 = vld [vmem:[#allocation7 + $0x58] sm:$0xff]
    %v273 = vld [vmem:[#allocation7 + $0x60] sm:$0xff]
    %v274 = vld [vmem:[#allocation7 + $0x68] sm:$0xff]
    %v275 = vld [vmem:[#allocation7 + $0x70] sm:$0xff]
    %v276 = vld [vmem:[#allocation7 + $0x78] sm:$0xff]
    %v277 = vld [vmem:[#allocation7 + $0x80] sm:$0xff]
    %v278 = vld [vmem:[#allocation7 + $0x88] sm:$0xff]
    %v279 = vld [vmem:[#allocation7 + $0x90] sm:$0xff]
    %v280 = vld [vmem:[#allocation7 + $0x98] sm:$0xff]
    %v281 = vld [vmem:[#allocation7 + $0xa0] sm:$0xff]
    %v282 = vld [vmem:[#allocation7 + $0xa8] sm:$0xff]
    %v283 = vld [vmem:[#allocation7 + $0xb0] sm:$0xff]
    %v284 = vld [vmem:[#allocation7 + $0xb8] sm:$0xff]
    %v285 = vld [vmem:[#allocation7 + $0xc0] sm:$0xff]
    %v286 = vld [vmem:[#allocation7 + $0xc8] sm:$0xff]
    %v287 = vld [vmem:[#allocation7 + $0xd0] sm:$0xff]
    %v288 = vld [vmem:[#allocation7 + $0xd8] sm:$0xff]
    %v289 = vld [vmem:[#allocation7 + $0xe0] sm:$0xff]
    %v290 = vld [vmem:[#allocation7 + $0xe8] sm:$0xff]
    %v291 = vld [vmem:[#allocation7 + $0xf0] sm:$0xff]
    %v292 = vld [vmem:[#allocation7 + $0xf8] sm:$0xff]
    %v293 = vld [vmem:[#allocation7 + $0x100] sm:$0xff]
    %v294 = vld [vmem:[#allocation7 + $0x108] sm:$0xff]
    %v295 = vld [vmem:[#allocation7 + $0x110] sm:$0xff]
    %v296 = vld [vmem:[#allocation7 + $0x118] sm:$0xff]
    %v297 = vld [vmem:[#allocation7 + $0x120] sm:$0xff]
    %v298 = vld [vmem:[#allocation7 + $0x128] sm:$0xff]
    %v299 = vld [vmem:[#allocation7 + $0x130] sm:$0xff]
    %v300 = vld [vmem:[#allocation7 + $0x138] sm:$0xff]
    %v301 = vld [vmem:[#allocation7 + $0x140] sm:$0xff]
    %v302 = vld [vmem:[#allocation7 + $0x148] sm:$0xff]
    %v303 = vld [vmem:[#allocation7 + $0x150] sm:$0xff]
    %v304 = vld [vmem:[#allocation7 + $0x158] sm:$0xff]
    %v305 = vld [vmem:[#allocation7 + $0x160] sm:$0xff]
    %v306 = vld [vmem:[#allocation7 + $0x168] sm:$0xff]
    %v307 = vld [vmem:[#allocation7 + $0x170] sm:$0xff]
    %v308 = vld [vmem:[#allocation7 + $0x178] sm:$0xff]
    %v309 = vld [vmem:[#allocation7 + $0x180] sm:$0xff]
    %v310 = vld [vmem:[#allocation7 + $0x188] sm:$0xff]
    %v311 = vld [vmem:[#allocation7 + $0x190] sm:$0xff]
    %v312 = vld [vmem:[#allocation7 + $0x198] sm:$0xff]
    %v313 = vld [vmem:[#allocation7 + $0x1a0] sm:$0xff]
    %v314 = vld [vmem:[#allocation7 + $0x1a8] sm:$0xff]
    %v315 = vld [vmem:[#allocation7 + $0x1b0] sm:$0xff]
    %v316 = vld [vmem:[#allocation7 + $0x1b8] sm:$0xff]
    %v317 = vld [vmem:[#allocation7 + $0x1c0] sm:$0xff]
    %v318 = vld [vmem:[#allocation7 + $0x1c8] sm:$0xff]
    %v319 = vld [vmem:[#allocation7 + $0x1d0] sm:$0xff]
    %v320 = vld [vmem:[#allocation7 + $0x1d8] sm:$0xff]
    %v321 = vld [vmem:[#allocation7 + $0x1e0] sm:$0xff]
    %v322 = vld [vmem:[#allocation7 + $0x1e8] sm:$0xff]
    %v323 = vld [vmem:[#allocation7 + $0x1f0] sm:$0xff]
    %v324 = vld [vmem:[#allocation7 + $0x1f8] sm:$0xff]
    %v325 = vld [vmem:[%s2] sm:$0xff]
    %v326 = vld [vmem:[%s2 + $0x8] sm:$0xff]
    %v327 = vld [vmem:[%s2 + $0x10] sm:$0xff]
    %v328 = vld [vmem:[%s2 + $0x18] sm:$0xff]
    %v329 = vld [vmem:[%s2 + $0x20] sm:$0xff]
    %v330 = vld [vmem:[%s2 + $0x28] sm:$0xff]
    %v331 = vld [vmem:[%s2 + $0x30] sm:$0xff]
    %v332 = vld [vmem:[%s2 + $0x38] sm:$0xff]
    %v333 = vld [vmem:[%s2 + $0x40] sm:$0xff]
    %v334 = vld [vmem:[%s2 + $0x48] sm:$0xff]
    %v335 = vld [vmem:[%s2 + $0x50] sm:$0xff]
    %v336 = vld [vmem:[%s2 + $0x58] sm:$0xff]
    %v337 = vld [vmem:[%s2 + $0x60] sm:$0xff]
    %v338 = vld [vmem:[%s2 + $0x68] sm:$0xff]
    %v339 = vld [vmem:[%s2 + $0x70] sm:$0xff]
    %v340 = vld [vmem:[%s2 + $0x78] sm:$0xff]
    %v341 = vld [vmem:[%s2 + $0x80] sm:$0xff]
    %v342 = vld [vmem:[%s2 + $0x88] sm:$0xff]
    %v343 = vld [vmem:[%s2 + $0x90] sm:$0xff]
    %v344 = vld [vmem:[%s2 + $0x98] sm:$0xff]
    %v345 = vld [vmem:[%s2 + $0xa0] sm:$0xff]
    %v346 = vld [vmem:[%s2 + $0xa8] sm:$0xff]
    %v347 = vld [vmem:[%s2 + $0xb0] sm:$0xff]
    %v348 = vld [vmem:[%s2 + $0xb8] sm:$0xff]
    %v349 = vld [vmem:[%s2 + $0xc0] sm:$0xff]
    %v350 = vld [vmem:[%s2 + $0xc8] sm:$0xff]
    %v351 = vld [vmem:[%s2 + $0xd0] sm:$0xff]
    %v352 = vld [vmem:[%s2 + $0xd8] sm:$0xff]
    %v353 = vld [vmem:[%s2 + $0xe0] sm:$0xff]
    %v354 = vld [vmem:[%s2 + $0xe8] sm:$0xff]
    %v355 = vld [vmem:[%s2 + $0xf0] sm:$0xff]
    %v356 = vld [vmem:[%s2 + $0xf8] sm:$0xff]
    %358 = vset.pattern.permute.xlu0 0
    %359 = vperm.xlu0 %358, %v325
    %v360 = vpop.permute.xlu0 %359
    %363 = vset.pattern.permute.xlu0 0
    %364 = vperm.xlu0 %363, %v326
    %v365 = vpop.permute.xlu0 %364
    %368 = vset.pattern.permute.xlu0 0
    %369 = vperm.xlu0 %368, %v327
    %v370 = vpop.permute.xlu0 %369
    %373 = vset.pattern.permute.xlu0 0
    %374 = vperm.xlu0 %373, %v328
    %v375 = vpop.permute.xlu0 %374
    %378 = vset.pattern.permute.xlu0 0
    %379 = vperm.xlu0 %378, %v329
    %v380 = vpop.permute.xlu0 %379
    %383 = vset.pattern.permute.xlu0 0
    %384 = vperm.xlu0 %383, %v330
    %v385 = vpop.permute.xlu0 %384
    %388 = vset.pattern.permute.xlu0 0
    %389 = vperm.xlu0 %388, %v331
    %v390 = vpop.permute.xlu0 %389
    %393 = vset.pattern.permute.xlu0 0
    %394 = vperm.xlu0 %393, %v332
    %v395 = vpop.permute.xlu0 %394
    %398 = vset.pattern.permute.xlu0 0
    %399 = vperm.xlu0 %398, %v333
    %v400 = vpop.permute.xlu0 %399
    %403 = vset.pattern.permute.xlu0 0
    %404 = vperm.xlu0 %403, %v334
    %v405 = vpop.permute.xlu0 %404
    %408 = vset.pattern.permute.xlu0 0
    %409 = vperm.xlu0 %408, %v335
    %v410 = vpop.permute.xlu0 %409
    %413 = vset.pattern.permute.xlu0 0
    %414 = vperm.xlu0 %413, %v336
    %v415 = vpop.permute.xlu0 %414
    %418 = vset.pattern.permute.xlu0 0
    %419 = vperm.xlu0 %418, %v337
    %v420 = vpop.permute.xlu0 %419
    %423 = vset.pattern.permute.xlu0 0
    %424 = vperm.xlu0 %423, %v338
    %v425 = vpop.permute.xlu0 %424
    %428 = vset.pattern.permute.xlu0 0
    %429 = vperm.xlu0 %428, %v339
    %v430 = vpop.permute.xlu0 %429
    %433 = vset.pattern.permute.xlu0 0
    %434 = vperm.xlu0 %433, %v340
    %v435 = vpop.permute.xlu0 %434
    %438 = vset.pattern.permute.xlu0 0
    %439 = vperm.xlu0 %438, %v341
    %v440 = vpop.permute.xlu0 %439
    %443 = vset.pattern.permute.xlu0 0
    %444 = vperm.xlu0 %443, %v342
    %v445 = vpop.permute.xlu0 %444
    %448 = vset.pattern.permute.xlu0 0
    %449 = vperm.xlu0 %448, %v343
    %v450 = vpop.permute.xlu0 %449
    %453 = vset.pattern.permute.xlu0 0
    %454 = vperm.xlu0 %453, %v344
    %v455 = vpop.permute.xlu0 %454
    %458 = vset.pattern.permute.xlu0 0
    %459 = vperm.xlu0 %458, %v345
    %v460 = vpop.permute.xlu0 %459
    %463 = vset.pattern.permute.xlu0 0
    %464 = vperm.xlu0 %463, %v346
    %v465 = vpop.permute.xlu0 %464
    %468 = vset.pattern.permute.xlu0 0
    %469 = vperm.xlu0 %468, %v347
    %v470 = vpop.permute.xlu0 %469
    %473 = vset.pattern.permute.xlu0 0
    %474 = vperm.xlu0 %473, %v348
    %v475 = vpop.permute.xlu0 %474
    %478 = vset.pattern.permute.xlu0 0
    %479 = vperm.xlu0 %478, %v349
    %v480 = vpop.permute.xlu0 %479
    %483 = vset.pattern.permute.xlu0 0
    %484 = vperm.xlu0 %483, %v350
    %v485 = vpop.permute.xlu0 %484
    %488 = vset.pattern.permute.xlu0 0
    %489 = vperm.xlu0 %488, %v351
    %v490 = vpop.permute.xlu0 %489
    %493 = vset.pattern.permute.xlu0 0
    %494 = vperm.xlu0 %493, %v352
    %v495 = vpop.permute.xlu0 %494
    %498 = vset.pattern.permute.xlu0 0
    %499 = vperm.xlu0 %498, %v353
    %v500 = vpop.permute.xlu0 %499
    %503 = vset.pattern.permute.xlu0 0
    %504 = vperm.xlu0 %503, %v354
    %v505 = vpop.permute.xlu0 %504
    %508 = vset.pattern.permute.xlu0 0
    %509 = vperm.xlu0 %508, %v355
    %v510 = vpop.permute.xlu0 %509
    %513 = vset.pattern.permute.xlu0 0
    %514 = vperm.xlu0 %513, %v356
    %v515 = vpop.permute.xlu0 %514
    %v581 = vunpack.c.l.b16 %v261
    %v582 = vunpack.c.h.b16 %v261
    %v583 = vunpack.c.l.b16 %v262
    %v584 = vunpack.c.h.b16 %v262
    %v585 = vunpack.c.l.b16 %v263
    %v586 = vunpack.c.h.b16 %v263
    %v587 = vunpack.c.l.b16 %v264
    %v588 = vunpack.c.h.b16 %v264
    %v589 = vunpack.c.l.b16 %v265
    %v590 = vunpack.c.h.b16 %v265
    %v591 = vunpack.c.l.b16 %v266
    %v592 = vunpack.c.h.b16 %v266
    %v593 = vunpack.c.l.b16 %v267
    %v594 = vunpack.c.h.b16 %v267
    %v595 = vunpack.c.l.b16 %v268
    %v596 = vunpack.c.h.b16 %v268
    %v597 = vunpack.c.l.b16 %v269
    %v598 = vunpack.c.h.b16 %v269
    %v599 = vunpack.c.l.b16 %v270
    %v600 = vunpack.c.h.b16 %v270
    %v601 = vunpack.c.l.b16 %v271
    %v602 = vunpack.c.h.b16 %v271
    %v603 = vunpack.c.l.b16 %v272
    %v604 = vunpack.c.h.b16 %v272
    %v605 = vunpack.c.l.b16 %v273
    %v606 = vunpack.c.h.b16 %v273
    %v607 = vunpack.c.l.b16 %v274
    %v608 = vunpack.c.h.b16 %v274
    %v609 = vunpack.c.l.b16 %v275
    %v610 = vunpack.c.h.b16 %v275
    %v611 = vunpack.c.l.b16 %v276
    %v612 = vunpack.c.h.b16 %v276
    %v613 = vunpack.c.l.b16 %v277
    %v614 = vunpack.c.h.b16 %v277
    %v615 = vunpack.c.l.b16 %v278
    %v616 = vunpack.c.h.b16 %v278
    %v617 = vunpack.c.l.b16 %v279
    %v618 = vunpack.c.h.b16 %v279
    %v619 = vunpack.c.l.b16 %v280
    %v620 = vunpack.c.h.b16 %v280
    %v621 = vunpack.c.l.b16 %v281
    %v622 = vunpack.c.h.b16 %v281
    %v623 = vunpack.c.l.b16 %v282
    %v624 = vunpack.c.h.b16 %v282
    %v625 = vunpack.c.l.b16 %v283
    %v626 = vunpack.c.h.b16 %v283
    %v627 = vunpack.c.l.b16 %v284
    %v628 = vunpack.c.h.b16 %v284
    %v629 = vunpack.c.l.b16 %v285
    %v630 = vunpack.c.h.b16 %v285
    %v631 = vunpack.c.l.b16 %v286
    %v632 = vunpack.c.h.b16 %v286
    %v633 = vunpack.c.l.b16 %v287
    %v634 = vunpack.c.h.b16 %v287
    %v635 = vunpack.c.l.b16 %v288
    %v636 = vunpack.c.h.b16 %v288
    %v637 = vunpack.c.l.b16 %v289
    %v638 = vunpack.c.h.b16 %v289
    %v639 = vunpack.c.l.b16 %v290
    %v640 = vunpack.c.h.b16 %v290
    %v641 = vunpack.c.l.b16 %v291
    %v642 = vunpack.c.h.b16 %v291
    %v643 = vunpack.c.l.b16 %v292
    %v644 = vunpack.c.h.b16 %v292
    %v645 = vunpack.c.l.b16 %v293
    %v646 = vunpack.c.h.b16 %v293
    %v647 = vunpack.c.l.b16 %v294
    %v648 = vunpack.c.h.b16 %v294
    %v649 = vunpack.c.l.b16 %v295
    %v650 = vunpack.c.h.b16 %v295
    %v651 = vunpack.c.l.b16 %v296
    %v652 = vunpack.c.h.b16 %v296
    %v653 = vunpack.c.l.b16 %v297
    %v654 = vunpack.c.h.b16 %v297
    %v655 = vunpack.c.l.b16 %v298
    %v656 = vunpack.c.h.b16 %v298
    %v657 = vunpack.c.l.b16 %v299
    %v658 = vunpack.c.h.b16 %v299
    %v659 = vunpack.c.l.b16 %v300
    %v660 = vunpack.c.h.b16 %v300
    %v661 = vunpack.c.l.b16 %v301
    %v662 = vunpack.c.h.b16 %v301
    %v663 = vunpack.c.l.b16 %v302
    %v664 = vunpack.c.h.b16 %v302
    %v665 = vunpack.c.l.b16 %v303
    %v666 = vunpack.c.h.b16 %v303
    %v667 = vunpack.c.l.b16 %v304
    %v668 = vunpack.c.h.b16 %v304
    %v669 = vunpack.c.l.b16 %v305
    %v670 = vunpack.c.h.b16 %v305
    %v671 = vunpack.c.l.b16 %v306
    %v672 = vunpack.c.h.b16 %v306
    %v673 = vunpack.c.l.b16 %v307
    %v674 = vunpack.c.h.b16 %v307
    %v675 = vunpack.c.l.b16 %v308
    %v676 = vunpack.c.h.b16 %v308
    %v677 = vunpack.c.l.b16 %v309
    %v678 = vunpack.c.h.b16 %v309
    %v679 = vunpack.c.l.b16 %v310
    %v680 = vunpack.c.h.b16 %v310
    %v681 = vunpack.c.l.b16 %v311
    %v682 = vunpack.c.h.b16 %v311
    %v683 = vunpack.c.l.b16 %v312
    %v684 = vunpack.c.h.b16 %v312
    %v685 = vunpack.c.l.b16 %v313
    %v686 = vunpack.c.h.b16 %v313
    %v687 = vunpack.c.l.b16 %v314
    %v688 = vunpack.c.h.b16 %v314
    %v689 = vunpack.c.l.b16 %v315
    %v690 = vunpack.c.h.b16 %v315
    %v691 = vunpack.c.l.b16 %v316
    %v692 = vunpack.c.h.b16 %v316
    %v693 = vunpack.c.l.b16 %v317
    %v694 = vunpack.c.h.b16 %v317
    %v695 = vunpack.c.l.b16 %v318
    %v696 = vunpack.c.h.b16 %v318
    %v697 = vunpack.c.l.b16 %v319
    %v698 = vunpack.c.h.b16 %v319
    %v699 = vunpack.c.l.b16 %v320
    %v700 = vunpack.c.h.b16 %v320
    %v701 = vunpack.c.l.b16 %v321
    %v702 = vunpack.c.h.b16 %v321
    %v703 = vunpack.c.l.b16 %v322
    %v704 = vunpack.c.h.b16 %v322
    %v705 = vunpack.c.l.b16 %v323
    %v706 = vunpack.c.h.b16 %v323
    %v707 = vunpack.c.l.b16 %v324
    %v708 = vunpack.c.h.b16 %v324
    %v709 = vpack.c.b16 %v585, %v581
    %v710 = vpack.c.b16 %v586, %v582
    %v711 = vpack.c.b16 %v587, %v583
    %v712 = vpack.c.b16 %v588, %v584
    %v713 = vpack.c.b16 %v593, %v589
    %v714 = vpack.c.b16 %v594, %v590
    %v715 = vpack.c.b16 %v595, %v591
    %v716 = vpack.c.b16 %v596, %v592
    %v717 = vpack.c.b16 %v601, %v597
    %v718 = vpack.c.b16 %v602, %v598
    %v719 = vpack.c.b16 %v603, %v599
    %v720 = vpack.c.b16 %v604, %v600
    %v721 = vpack.c.b16 %v609, %v605
    %v722 = vpack.c.b16 %v610, %v606
    %v723 = vpack.c.b16 %v611, %v607
    %v724 = vpack.c.b16 %v612, %v608
    %v725 = vpack.c.b16 %v617, %v613
    %v726 = vpack.c.b16 %v618, %v614
    %v727 = vpack.c.b16 %v619, %v615
    %v728 = vpack.c.b16 %v620, %v616
    %v729 = vpack.c.b16 %v625, %v621
    %v730 = vpack.c.b16 %v626, %v622
    %v731 = vpack.c.b16 %v627, %v623
    %v732 = vpack.c.b16 %v628, %v624
    %v733 = vpack.c.b16 %v633, %v629
    %v734 = vpack.c.b16 %v634, %v630
    %v735 = vpack.c.b16 %v635, %v631
    %v736 = vpack.c.b16 %v636, %v632
    %v737 = vpack.c.b16 %v641, %v637
    %v738 = vpack.c.b16 %v642, %v638
    %v739 = vpack.c.b16 %v643, %v639
    %v740 = vpack.c.b16 %v644, %v640
    %v741 = vpack.c.b16 %v649, %v645
    %v742 = vpack.c.b16 %v650, %v646
    %v743 = vpack.c.b16 %v651, %v647
    %v744 = vpack.c.b16 %v652, %v648
    %v745 = vpack.c.b16 %v657, %v653
    %v746 = vpack.c.b16 %v658, %v654
    %v747 = vpack.c.b16 %v659, %v655
    %v748 = vpack.c.b16 %v660, %v656
    %v749 = vpack.c.b16 %v665, %v661
    %v750 = vpack.c.b16 %v666, %v662
    %v751 = vpack.c.b16 %v667, %v663
    %v752 = vpack.c.b16 %v668, %v664
    %v753 = vpack.c.b16 %v673, %v669
    %v754 = vpack.c.b16 %v674, %v670
    %v755 = vpack.c.b16 %v675, %v671
    %v756 = vpack.c.b16 %v676, %v672
    %v757 = vpack.c.b16 %v681, %v677
    %v758 = vpack.c.b16 %v682, %v678
    %v759 = vpack.c.b16 %v683, %v679
    %v760 = vpack.c.b16 %v684, %v680
    %v761 = vpack.c.b16 %v689, %v685
    %v762 = vpack.c.b16 %v690, %v686
    %v763 = vpack.c.b16 %v691, %v687
    %v764 = vpack.c.b16 %v692, %v688
    %v765 = vpack.c.b16 %v697, %v693
    %v766 = vpack.c.b16 %v698, %v694
    %v767 = vpack.c.b16 %v699, %v695
    %v768 = vpack.c.b16 %v700, %v696
    %v769 = vpack.c.b16 %v705, %v701
    %v770 = vpack.c.b16 %v706, %v702
    %v771 = vpack.c.b16 %v707, %v703
    %v772 = vpack.c.b16 %v708, %v704
    %837 = vmatprep.subr.bf16.mxu0 %v198
    %838 = vmatpush1.bf16.msra.mxu0 %v197
    %839 = vmatprep.subr.bf16.mxu0 %v200
    %840 = vmatpush1.bf16.msra.mxu0 %v199
    %841 = vmatprep.subr.bf16.mxu0 %v202
    %842 = vmatpush1.bf16.msra.mxu0 %v201
    %843 = vmatprep.subr.bf16.mxu0 %v204
    %844 = vmatpush1.bf16.msra.mxu0 %v203
    %845 = vmatprep.subr.bf16.mxu0 %v206
    %846 = vmatpush1.bf16.msra.mxu0 %v205
    %847 = vmatprep.subr.bf16.mxu0 %v208
    %848 = vmatpush1.bf16.msra.mxu0 %v207
    %849 = vmatprep.subr.bf16.mxu0 %v210
    %850 = vmatpush1.bf16.msra.mxu0 %v209
    %851 = vmatprep.subr.bf16.mxu0 %v212
    %852 = vmatpush1.bf16.msra.mxu0 %v211
    %853 = vmatprep.subr.bf16.mxu0 %v214
    %854 = vmatpush1.bf16.msra.mxu0 %v213
    %855 = vmatprep.subr.bf16.mxu0 %v216
    %856 = vmatpush1.bf16.msra.mxu0 %v215
    %857 = vmatprep.subr.bf16.mxu0 %v218
    %858 = vmatpush1.bf16.msra.mxu0 %v217
    %859 = vmatprep.subr.bf16.mxu0 %v220
    %860 = vmatpush1.bf16.msra.mxu0 %v219
    %861 = vmatprep.subr.bf16.mxu0 %v222
    %862 = vmatpush1.bf16.msra.mxu0 %v221
    %863 = vmatprep.subr.bf16.mxu0 %v224
    %864 = vmatpush1.bf16.msra.mxu0 %v223
    %865 = vmatprep.subr.bf16.mxu0 %v226
    %866 = vmatpush1.bf16.msra.mxu0 %v225
    %867 = vmatprep.subr.bf16.mxu0 %v228
    %868 = vmatpush1.bf16.msra.mxu0 %v227
    %869 = vmatprep.mubr.bf16.mxu0 %v710
    %870 = vmatmul.mubr.bf16.gmra.mrb[0].mxu0 %v709
    %v871 = vpop.f32.mrb[0].mxu0
    %v872 = vadd.f32 %v360, %v871
    %v873 = vpop.f32.mrb[0].mxu0
    %v874 = vadd.f32 %v360, %v873
    %v875 = vpop.f32.mrb[0].mxu0
    %v876 = vadd.f32 %v365, %v875
    %v877 = vpop.f32.mrb[0].mxu0
    %v878 = vadd.f32 %v365, %v877
    %879 = vmatprep.mubr.bf16.mxu0 %v714
    %880 = vmatmul.mubr.bf16.gmra.mrb[0].mxu0 %v713
    %v881 = vpop.f32.mrb[0].mxu0
    %v882 = vadd.f32 %v370, %v881
    %v883 = vpop.f32.mrb[0].mxu0
    %v884 = vadd.f32 %v370, %v883
    %v885 = vpop.f32.mrb[0].mxu0
    %v886 = vadd.f32 %v375, %v885
    %v887 = vpop.f32.mrb[0].mxu0
    %v888 = vadd.f32 %v375, %v887
    %889 = vmatprep.mubr.bf16.mxu0 %v718
    %890 = vmatmul.mubr.bf16.gmra.mrb[0].mxu0 %v717
    %v891 = vpop.f32.mrb[0].mxu0
    %v892 = vadd.f32 %v380, %v891
    %v893 = vpop.f32.mrb[0].mxu0
    %v894 = vadd.f32 %v380, %v893
    %v895 = vpop.f32.mrb[0].mxu0
    %v896 = vadd.f32 %v385, %v895
    %v897 = vpop.f32.mrb[0].mxu0
    %v898 = vadd.f32 %v385, %v897
    %899 = vmatprep.mubr.bf16.mxu0 %v722
    %900 = vmatmul.mubr.bf16.gmra.mrb[0].mxu0 %v721
    %v901 = vpop.f32.mrb[0].mxu0
    %v902 = vadd.f32 %v390, %v901
    %v903 = vpop.f32.mrb[0].mxu0
    %v904 = vadd.f32 %v390, %v903
    %v905 = vpop.f32.mrb[0].mxu0
    %v906 = vadd.f32 %v395, %v905
    %v907 = vpop.f32.mrb[0].mxu0
    %v908 = vadd.f32 %v395, %v907
    %909 = vmatprep.mubr.bf16.mxu0 %v726
    %910 = vmatmul.mubr.bf16.gmra.mrb[0].mxu0 %v725
    %v911 = vpop.f32.mrb[0].mxu0
    %v912 = vadd.f32 %v400, %v911
    %v913 = vpop.f32.mrb[0].mxu0
    %v914 = vadd.f32 %v400, %v913
    %v915 = vpop.f32.mrb[0].mxu0
    %v916 = vadd.f32 %v405, %v915
    %v917 = vpop.f32.mrb[0].mxu0
    %v918 = vadd.f32 %v405, %v917
    %919 = vmatprep.mubr.bf16.mxu0 %v730
    %920 = vmatmul.mubr.bf16.gmra.mrb[0].mxu0 %v729
    %v921 = vpop.f32.mrb[0].mxu0
    %v922 = vadd.f32 %v410, %v921
    %v923 = vpop.f32.mrb[0].mxu0
    %v924 = vadd.f32 %v410, %v923
    %v925 = vpop.f32.mrb[0].mxu0
    %v926 = vadd.f32 %v415, %v925
    %v927 = vpop.f32.mrb[0].mxu0
    %v928 = vadd.f32 %v415, %v927
    %929 = vmatprep.mubr.bf16.mxu0 %v734
    %930 = vmatmul.mubr.bf16.gmra.mrb[0].mxu0 %v733
    %v931 = vpop.f32.mrb[0].mxu0
    %v932 = vadd.f32 %v420, %v931
    %v933 = vpop.f32.mrb[0].mxu0
    %v934 = vadd.f32 %v420, %v933
    %v935 = vpop.f32.mrb[0].mxu0
    %v936 = vadd.f32 %v425, %v935
    %v937 = vpop.f32.mrb[0].mxu0
    %v938 = vadd.f32 %v425, %v937
    %939 = vmatprep.mubr.bf16.mxu0 %v738
    %940 = vmatmul.mubr.bf16.gmra.mrb[0].mxu0 %v737
    %v941 = vpop.f32.mrb[0].mxu0
    %v942 = vadd.f32 %v430, %v941
    %v943 = vpop.f32.mrb[0].mxu0
    %v944 = vadd.f32 %v430, %v943
    %v945 = vpop.f32.mrb[0].mxu0
    %v946 = vadd.f32 %v435, %v945
    %v947 = vpop.f32.mrb[0].mxu0
    %v948 = vadd.f32 %v435, %v947
    %949 = vmatprep.mubr.bf16.mxu0 %v742
    %950 = vmatmul.mubr.bf16.gmra.mrb[0].mxu0 %v741
    %v951 = vpop.f32.mrb[0].mxu0
    %v952 = vadd.f32 %v440, %v951
    %v953 = vpop.f32.mrb[0].mxu0
    %v954 = vadd.f32 %v440, %v953
    %v955 = vpop.f32.mrb[0].mxu0
    %v956 = vadd.f32 %v445, %v955
    %v957 = vpop.f32.mrb[0].mxu0
    %v958 = vadd.f32 %v445, %v957
    %959 = vmatprep.mubr.bf16.mxu0 %v746
    %960 = vmatmul.mubr.bf16.gmra.mrb[0].mxu0 %v745
    %v961 = vpop.f32.mrb[0].mxu0
    %v962 = vadd.f32 %v450, %v961
    %v963 = vpop.f32.mrb[0].mxu0
    %v964 = vadd.f32 %v450, %v963
    %v965 = vpop.f32.mrb[0].mxu0
    %v966 = vadd.f32 %v455, %v965
    %v967 = vpop.f32.mrb[0].mxu0
    %v968 = vadd.f32 %v455, %v967
    %969 = vmatprep.mubr.bf16.mxu0 %v750
    %970 = vmatmul.mubr.bf16.gmra.mrb[0].mxu0 %v749
    %v971 = vpop.f32.mrb[0].mxu0
    %v972 = vadd.f32 %v460, %v971
    %v973 = vpop.f32.mrb[0].mxu0
    %v974 = vadd.f32 %v460, %v973
    %v975 = vpop.f32.mrb[0].mxu0
    %v976 = vadd.f32 %v465, %v975
    %v977 = vpop.f32.mrb[0].mxu0
    %v978 = vadd.f32 %v465, %v977
    %979 = vmatprep.mubr.bf16.mxu0 %v754
    %980 = vmatmul.mubr.bf16.gmra.mrb[0].mxu0 %v753
    %v981 = vpop.f32.mrb[0].mxu0
    %v982 = vadd.f32 %v470, %v981
    %v983 = vpop.f32.mrb[0].mxu0
    %v984 = vadd.f32 %v470, %v983
    %v985 = vpop.f32.mrb[0].mxu0
    %v986 = vadd.f32 %v475, %v985
    %v987 = vpop.f32.mrb[0].mxu0
    %v988 = vadd.f32 %v475, %v987
    %989 = vmatprep.mubr.bf16.mxu0 %v758
    %990 = vmatmul.mubr.bf16.gmra.mrb[0].mxu0 %v757
    %v991 = vpop.f32.mrb[0].mxu0
    %v992 = vadd.f32 %v480, %v991
    %v993 = vpop.f32.mrb[0].mxu0
    %v994 = vadd.f32 %v480, %v993
    %v995 = vpop.f32.mrb[0].mxu0
    %v996 = vadd.f32 %v485, %v995
    %v997 = vpop.f32.mrb[0].mxu0
    %v998 = vadd.f32 %v485, %v997
    %999 = vmatprep.mubr.bf16.mxu0 %v762
    %1000 = vmatmul.mubr.bf16.gmra.mrb[0].mxu0 %v761
    %v1001 = vpop.f32.mrb[0].mxu0
    %v1002 = vadd.f32 %v490, %v1001
    %v1003 = vpop.f32.mrb[0].mxu0
    %v1004 = vadd.f32 %v490, %v1003
    %v1005 = vpop.f32.mrb[0].mxu0
    %v1006 = vadd.f32 %v495, %v1005
    %v1007 = vpop.f32.mrb[0].mxu0
    %v1008 = vadd.f32 %v495, %v1007
    %1009 = vmatprep.mubr.bf16.mxu0 %v766
    %1010 = vmatmul.mubr.bf16.gmra.mrb[0].mxu0 %v765
    %v1011 = vpop.f32.mrb[0].mxu0
    %v1012 = vadd.f32 %v500, %v1011
    %v1013 = vpop.f32.mrb[0].mxu0
    %v1014 = vadd.f32 %v500, %v1013
    %v1015 = vpop.f32.mrb[0].mxu0
    %v1016 = vadd.f32 %v505, %v1015
    %v1017 = vpop.f32.mrb[0].mxu0
    %v1018 = vadd.f32 %v505, %v1017
    %1019 = vmatprep.mubr.bf16.mxu0 %v770
    %1020 = vmatmul.mubr.bf16.gmra.mrb[0].mxu0 %v769
    %v1021 = vpop.f32.mrb[0].mxu0
    %v1022 = vadd.f32 %v510, %v1021
    %v1023 = vpop.f32.mrb[0].mxu0
    %v1024 = vadd.f32 %v510, %v1023
    %v1025 = vpop.f32.mrb[0].mxu0
    %v1026 = vadd.f32 %v515, %v1025
    %v1027 = vpop.f32.mrb[0].mxu0
    %v1028 = vadd.f32 %v515, %v1027
    %1029 = vdwg.mxu0
    %1030 = vmatprep.subr.bf16.mxu0 %v230
    %1031 = vmatpush1.bf16.msra.mxu0 %v229
    %1032 = vmatprep.subr.bf16.mxu0 %v232
    %1033 = vmatpush1.bf16.msra.mxu0 %v231
    %1034 = vmatprep.subr.bf16.mxu0 %v234
    %1035 = vmatpush1.bf16.msra.mxu0 %v233
    %1036 = vmatprep.subr.bf16.mxu0 %v236
    %1037 = vmatpush1.bf16.msra.mxu0 %v235
    %1038 = vmatprep.subr.bf16.mxu0 %v238
    %1039 = vmatpush1.bf16.msra.mxu0 %v237
    %1040 = vmatprep.subr.bf16.mxu0 %v240
    %1041 = vmatpush1.bf16.msra.mxu0 %v239
    %1042 = vmatprep.subr.bf16.mxu0 %v242
    %1043 = vmatpush1.bf16.msra.mxu0 %v241
    %1044 = vmatprep.subr.bf16.mxu0 %v244
    %1045 = vmatpush1.bf16.msra.mxu0 %v243
    %1046 = vmatprep.subr.bf16.mxu0 %v246
    %1047 = vmatpush1.bf16.msra.mxu0 %v245
    %1048 = vmatprep.subr.bf16.mxu0 %v248
    %1049 = vmatpush1.bf16.msra.mxu0 %v247
    %1050 = vmatprep.subr.bf16.mxu0 %v250
    %1051 = vmatpush1.bf16.msra.mxu0 %v249
    %1052 = vmatprep.subr.bf16.mxu0 %v252
    %1053 = vmatpush1.bf16.msra.mxu0 %v251
    %1054 = vmatprep.subr.bf16.mxu0 %v254
    %1055 = vmatpush1.bf16.msra.mxu0 %v253
    %1056 = vmatprep.subr.bf16.mxu0 %v256
    %1057 = vmatpush1.bf16.msra.mxu0 %v255
    %1058 = vmatprep.subr.bf16.mxu0 %v258
    %1059 = vmatpush1.bf16.msra.mxu0 %v257
    %1060 = vmatprep.subr.bf16.mxu0 %v260
    %1061 = vmatpush1.bf16.msra.mxu0 %v259
    %1062 = vmatprep.mubr.bf16.mxu0 %v712
    %1063 = vmatmul.mubr.bf16.gmra.mrb[0].mxu0 %v711
    %v1064 = vpop.f32.mrb[0].mxu0
    %v1065 = vadd.f32 %v872, %v1064
    %v1066 = vpop.f32.mrb[0].mxu0
    %v1067 = vadd.f32 %v874, %v1066
    %v1068 = vpop.f32.mrb[0].mxu0
    %v1069 = vadd.f32 %v876, %v1068
    %v1070 = vpop.f32.mrb[0].mxu0
    %v1071 = vadd.f32 %v878, %v1070
    %1072 = vmatprep.mubr.bf16.mxu0 %v716
    %1073 = vmatmul.mubr.bf16.gmra.mrb[0].mxu0 %v715
    %v1074 = vpop.f32.mrb[0].mxu0
    %v1075 = vadd.f32 %v882, %v1074
    %v1076 = vpop.f32.mrb[0].mxu0
    %v1077 = vadd.f32 %v884, %v1076
    %v1078 = vpop.f32.mrb[0].mxu0
    %v1079 = vadd.f32 %v886, %v1078
    %v1080 = vpop.f32.mrb[0].mxu0
    %v1081 = vadd.f32 %v888, %v1080
    %1082 = vmatprep.mubr.bf16.mxu0 %v720
    %1083 = vmatmul.mubr.bf16.gmra.mrb[0].mxu0 %v719
    %v1084 = vpop.f32.mrb[0].mxu0
    %v1085 = vadd.f32 %v892, %v1084
    %v1086 = vpop.f32.mrb[0].mxu0
    %v1087 = vadd.f32 %v894, %v1086
    %v1088 = vpop.f32.mrb[0].mxu0
    %v1089 = vadd.f32 %v896, %v1088
    %v1090 = vpop.f32.mrb[0].mxu0
    %v1091 = vadd.f32 %v898, %v1090
    %1092 = vmatprep.mubr.bf16.mxu0 %v724
    %1093 = vmatmul.mubr.bf16.gmra.mrb[0].mxu0 %v723
    %v1094 = vpop.f32.mrb[0].mxu0
    %v1095 = vadd.f32 %v902, %v1094
    %v1096 = vpop.f32.mrb[0].mxu0
    %v1097 = vadd.f32 %v904, %v1096
    %v1098 = vpop.f32.mrb[0].mxu0
    %v1099 = vadd.f32 %v906, %v1098
    %v1100 = vpop.f32.mrb[0].mxu0
    %v1101 = vadd.f32 %v908, %v1100
    %1102 = vmatprep.mubr.bf16.mxu0 %v728
    %1103 = vmatmul.mubr.bf16.gmra.mrb[0].mxu0 %v727
    %v1104 = vpop.f32.mrb[0].mxu0
    %v1105 = vadd.f32 %v912, %v1104
    %v1106 = vpop.f32.mrb[0].mxu0
    %v1107 = vadd.f32 %v914, %v1106
    %v1108 = vpop.f32.mrb[0].mxu0
    %v1109 = vadd.f32 %v916, %v1108
    %v1110 = vpop.f32.mrb[0].mxu0
    %v1111 = vadd.f32 %v918, %v1110
    %1112 = vmatprep.mubr.bf16.mxu0 %v732
    %1113 = vmatmul.mubr.bf16.gmra.mrb[0].mxu0 %v731
    %v1114 = vpop.f32.mrb[0].mxu0
    %v1115 = vadd.f32 %v922, %v1114
    %v1116 = vpop.f32.mrb[0].mxu0
    %v1117 = vadd.f32 %v924, %v1116
    %v1118 = vpop.f32.mrb[0].mxu0
    %v1119 = vadd.f32 %v926, %v1118
    %v1120 = vpop.f32.mrb[0].mxu0
    %v1121 = vadd.f32 %v928, %v1120
    %1122 = vmatprep.mubr.bf16.mxu0 %v736
    %1123 = vmatmul.mubr.bf16.gmra.mrb[0].mxu0 %v735
    %v1124 = vpop.f32.mrb[0].mxu0
    %v1125 = vadd.f32 %v932, %v1124
    %v1126 = vpop.f32.mrb[0].mxu0
    %v1127 = vadd.f32 %v934, %v1126
    %v1128 = vpop.f32.mrb[0].mxu0
    %v1129 = vadd.f32 %v936, %v1128
    %v1130 = vpop.f32.mrb[0].mxu0
    %v1131 = vadd.f32 %v938, %v1130
    %1132 = vmatprep.mubr.bf16.mxu0 %v740
    %1133 = vmatmul.mubr.bf16.gmra.mrb[0].mxu0 %v739
    %v1134 = vpop.f32.mrb[0].mxu0
    %v1135 = vadd.f32 %v942, %v1134
    %v1136 = vpop.f32.mrb[0].mxu0
    %v1137 = vadd.f32 %v944, %v1136
    %v1138 = vpop.f32.mrb[0].mxu0
    %v1139 = vadd.f32 %v946, %v1138
    %v1140 = vpop.f32.mrb[0].mxu0
    %v1141 = vadd.f32 %v948, %v1140
    %1142 = vmatprep.mubr.bf16.mxu0 %v744
    %1143 = vmatmul.mubr.bf16.gmra.mrb[0].mxu0 %v743
    %v1144 = vpop.f32.mrb[0].mxu0
    %v1145 = vadd.f32 %v952, %v1144
    %v1146 = vpop.f32.mrb[0].mxu0
    %v1147 = vadd.f32 %v954, %v1146
    %v1148 = vpop.f32.mrb[0].mxu0
    %v1149 = vadd.f32 %v956, %v1148
    %v1150 = vpop.f32.mrb[0].mxu0
    %v1151 = vadd.f32 %v958, %v1150
    %1152 = vmatprep.mubr.bf16.mxu0 %v748
    %1153 = vmatmul.mubr.bf16.gmra.mrb[0].mxu0 %v747
    %v1154 = vpop.f32.mrb[0].mxu0
    %v1155 = vadd.f32 %v962, %v1154
    %v1156 = vpop.f32.mrb[0].mxu0
    %v1157 = vadd.f32 %v964, %v1156
    %v1158 = vpop.f32.mrb[0].mxu0
    %v1159 = vadd.f32 %v966, %v1158
    %v1160 = vpop.f32.mrb[0].mxu0
    %v1161 = vadd.f32 %v968, %v1160
    %1162 = vmatprep.mubr.bf16.mxu0 %v752
    %1163 = vmatmul.mubr.bf16.gmra.mrb[0].mxu0 %v751
    %v1164 = vpop.f32.mrb[0].mxu0
    %v1165 = vadd.f32 %v972, %v1164
    %v1166 = vpop.f32.mrb[0].mxu0
    %v1167 = vadd.f32 %v974, %v1166
    %v1168 = vpop.f32.mrb[0].mxu0
    %v1169 = vadd.f32 %v976, %v1168
    %v1170 = vpop.f32.mrb[0].mxu0
    %v1171 = vadd.f32 %v978, %v1170
    %1172 = vmatprep.mubr.bf16.mxu0 %v756
    %1173 = vmatmul.mubr.bf16.gmra.mrb[0].mxu0 %v755
    %v1174 = vpop.f32.mrb[0].mxu0
    %v1175 = vadd.f32 %v982, %v1174
    %v1176 = vpop.f32.mrb[0].mxu0
    %v1177 = vadd.f32 %v984, %v1176
    %v1178 = vpop.f32.mrb[0].mxu0
    %v1179 = vadd.f32 %v986, %v1178
    %v1180 = vpop.f32.mrb[0].mxu0
    %v1181 = vadd.f32 %v988, %v1180
    %1182 = vmatprep.mubr.bf16.mxu0 %v760
    %1183 = vmatmul.mubr.bf16.gmra.mrb[0].mxu0 %v759
    %v1184 = vpop.f32.mrb[0].mxu0
    %v1185 = vadd.f32 %v992, %v1184
    %v1186 = vpop.f32.mrb[0].mxu0
    %v1187 = vadd.f32 %v994, %v1186
    %v1188 = vpop.f32.mrb[0].mxu0
    %v1189 = vadd.f32 %v996, %v1188
    %v1190 = vpop.f32.mrb[0].mxu0
    %v1191 = vadd.f32 %v998, %v1190
    %1192 = vmatprep.mubr.bf16.mxu0 %v764
    %1193 = vmatmul.mubr.bf16.gmra.mrb[0].mxu0 %v763
    %v1194 = vpop.f32.mrb[0].mxu0
    %v1195 = vadd.f32 %v1002, %v1194
    %v1196 = vpop.f32.mrb[0].mxu0
    %v1197 = vadd.f32 %v1004, %v1196
    %v1198 = vpop.f32.mrb[0].mxu0
    %v1199 = vadd.f32 %v1006, %v1198
    %v1200 = vpop.f32.mrb[0].mxu0
    %v1201 = vadd.f32 %v1008, %v1200
    %1202 = vmatprep.mubr.bf16.mxu0 %v768
    %1203 = vmatmul.mubr.bf16.gmra.mrb[0].mxu0 %v767
    %v1204 = vpop.f32.mrb[0].mxu0
    %v1205 = vadd.f32 %v1012, %v1204
    %v1206 = vpop.f32.mrb[0].mxu0
    %v1207 = vadd.f32 %v1014, %v1206
    %v1208 = vpop.f32.mrb[0].mxu0
    %v1209 = vadd.f32 %v1016, %v1208
    %v1210 = vpop.f32.mrb[0].mxu0
    %v1211 = vadd.f32 %v1018, %v1210
    %1212 = vmatprep.mubr.bf16.mxu0 %v772
    %1213 = vmatmul.mubr.bf16.gmra.mrb[0].mxu0 %v771
    %v1214 = vpop.f32.mrb[0].mxu0
    %v1215 = vadd.f32 %v1022, %v1214
    %v1216 = vpop.f32.mrb[0].mxu0
    %v1217 = vadd.f32 %v1024, %v1216
    %v1218 = vpop.f32.mrb[0].mxu0
    %v1219 = vadd.f32 %v1026, %v1218
    %v1220 = vpop.f32.mrb[0].mxu0
    %v1221 = vadd.f32 %v1028, %v1220
    %1222 = vdwg.mxu0
    %v1223 = vmax.f32 %v1065, 0.0
    %v1224 = vmax.f32 %v1067, 0.0
    %v1225 = vmax.f32 %v1069, 0.0
    %v1226 = vmax.f32 %v1071, 0.0
    %v1227 = vmax.f32 %v1075, 0.0
    %v1228 = vmax.f32 %v1077, 0.0
    %v1229 = vmax.f32 %v1079, 0.0
    %v1230 = vmax.f32 %v1081, 0.0
    %v1231 = vmax.f32 %v1085, 0.0
    %v1232 = vmax.f32 %v1087, 0.0
    %v1233 = vmax.f32 %v1089, 0.0
    %v1234 = vmax.f32 %v1091, 0.0
    %v1235 = vmax.f32 %v1095, 0.0
    %v1236 = vmax.f32 %v1097, 0.0
    %v1237 = vmax.f32 %v1099, 0.0
    %v1238 = vmax.f32 %v1101, 0.0
    %v1239 = vmax.f32 %v1105, 0.0
    %v1240 = vmax.f32 %v1107, 0.0
    %v1241 = vmax.f32 %v1109, 0.0
    %v1242 = vmax.f32 %v1111, 0.0
    %v1243 = vmax.f32 %v1115, 0.0
    %v1244 = vmax.f32 %v1117, 0.0
    %v1245 = vmax.f32 %v1119, 0.0
    %v1246 = vmax.f32 %v1121, 0.0
    %v1247 = vmax.f32 %v1125, 0.0
    %v1248 = vmax.f32 %v1127, 0.0
    %v1249 = vmax.f32 %v1129, 0.0
    %v1250 = vmax.f32 %v1131, 0.0
    %v1251 = vmax.f32 %v1135, 0.0
    %v1252 = vmax.f32 %v1137, 0.0
    %v1253 = vmax.f32 %v1139, 0.0
    %v1254 = vmax.f32 %v1141, 0.0
    %v1255 = vmax.f32 %v1145, 0.0
    %v1256 = vmax.f32 %v1147, 0.0
    %v1257 = vmax.f32 %v1149, 0.0
    %v1258 = vmax.f32 %v1151, 0.0
    %v1259 = vmax.f32 %v1155, 0.0
    %v1260 = vmax.f32 %v1157, 0.0
    %v1261 = vmax.f32 %v1159, 0.0
    %v1262 = vmax.f32 %v1161, 0.0
    %v1263 = vmax.f32 %v1165, 0.0
    %v1264 = vmax.f32 %v1167, 0.0
    %v1265 = vmax.f32 %v1169, 0.0
    %v1266 = vmax.f32 %v1171, 0.0
    %v1267 = vmax.f32 %v1175, 0.0
    %v1268 = vmax.f32 %v1177, 0.0
    %v1269 = vmax.f32 %v1179, 0.0
    %v1270 = vmax.f32 %v1181, 0.0
    %v1271 = vmax.f32 %v1185, 0.0
    %v1272 = vmax.f32 %v1187, 0.0
    %v1273 = vmax.f32 %v1189, 0.0
    %v1274 = vmax.f32 %v1191, 0.0
    %v1275 = vmax.f32 %v1195, 0.0
    %v1276 = vmax.f32 %v1197, 0.0
    %v1277 = vmax.f32 %v1199, 0.0
    %v1278 = vmax.f32 %v1201, 0.0
    %v1279 = vmax.f32 %v1205, 0.0
    %v1280 = vmax.f32 %v1207, 0.0
    %v1281 = vmax.f32 %v1209, 0.0
    %v1282 = vmax.f32 %v1211, 0.0
    %v1283 = vmax.f32 %v1215, 0.0
    %v1284 = vmax.f32 %v1217, 0.0
    %v1285 = vmax.f32 %v1219, 0.0
    %v1286 = vmax.f32 %v1221, 0.0
    %v1287 = vld [vmem:[%s3] sm:$0xff]
    %v1288 = vld [vmem:[%s3 + $0x8] sm:$0xff]
    %v1289 = vld [vmem:[%s3 + $0x10] sm:$0xff]
    %v1290 = vld [vmem:[%s3 + $0x18] sm:$0xff]
    %v1291 = vld [vmem:[%s3 + $0x20] sm:$0xff]
    %v1292 = vld [vmem:[%s3 + $0x28] sm:$0xff]
    %v1293 = vld [vmem:[%s3 + $0x30] sm:$0xff]
    %v1294 = vld [vmem:[%s3 + $0x38] sm:$0xff]
    %v1295 = vpack.c.bf16 %v1225, %v1223
    %v1296 = vpack.c.bf16 %v1226, %v1224
    %v1297 = vpack.c.bf16 %v1229, %v1227
    %v1298 = vpack.c.bf16 %v1230, %v1228
    %v1299 = vpack.c.bf16 %v1233, %v1231
    %v1300 = vpack.c.bf16 %v1234, %v1232
    %v1301 = vpack.c.bf16 %v1237, %v1235
    %v1302 = vpack.c.bf16 %v1238, %v1236
    %v1303 = vpack.c.bf16 %v1241, %v1239
    %v1304 = vpack.c.bf16 %v1242, %v1240
    %v1305 = vpack.c.bf16 %v1245, %v1243
    %v1306 = vpack.c.bf16 %v1246, %v1244
    %v1307 = vpack.c.bf16 %v1249, %v1247
    %v1308 = vpack.c.bf16 %v1250, %v1248
    %v1309 = vpack.c.bf16 %v1253, %v1251
    %v1310 = vpack.c.bf16 %v1254, %v1252
    %v1311 = vpack.c.bf16 %v1257, %v1255
    %v1312 = vpack.c.bf16 %v1258, %v1256
    %v1313 = vpack.c.bf16 %v1261, %v1259
    %v1314 = vpack.c.bf16 %v1262, %v1260
    %v1315 = vpack.c.bf16 %v1265, %v1263
    %v1316 = vpack.c.bf16 %v1266, %v1264
    %v1317 = vpack.c.bf16 %v1269, %v1267
    %v1318 = vpack.c.bf16 %v1270, %v1268
    %v1319 = vpack.c.bf16 %v1273, %v1271
    %v1320 = vpack.c.bf16 %v1274, %v1272
    %v1321 = vpack.c.bf16 %v1277, %v1275
    %v1322 = vpack.c.bf16 %v1278, %v1276
    %v1323 = vpack.c.bf16 %v1281, %v1279
    %v1324 = vpack.c.bf16 %v1282, %v1280
    %v1325 = vpack.c.bf16 %v1285, %v1283
    %v1326 = vpack.c.bf16 %v1286, %v1284
    %v1327 = vld [vmem:[%s4] sm:$0xff]
    %v1328 = vld [vmem:[%s4 + $0x8] sm:$0xff]
    %v1329 = vld [vmem:[%s4 + $0x10] sm:$0xff]
    %v1330 = vld [vmem:[%s4 + $0x18] sm:$0xff]
    %v1331 = vld [vmem:[%s4 + $0x20] sm:$0xff]
    %v1332 = vld [vmem:[%s4 + $0x28] sm:$0xff]
    %v1333 = vld [vmem:[%s4 + $0x30] sm:$0xff]
    %v1334 = vld [vmem:[%s4 + $0x38] sm:$0xff]
    %1336 = vset.pattern.permute.xlu0 0
    %1337 = vperm.xlu0 %1336, %v1327
    %v1338 = vpop.permute.xlu0 %1337
    %1341 = vset.pattern.permute.xlu0 0
    %1342 = vperm.xlu0 %1341, %v1328
    %v1343 = vpop.permute.xlu0 %1342
    %1346 = vset.pattern.permute.xlu0 0
    %1347 = vperm.xlu0 %1346, %v1329
    %v1348 = vpop.permute.xlu0 %1347
    %1351 = vset.pattern.permute.xlu0 0
    %1352 = vperm.xlu0 %1351, %v1330
    %v1353 = vpop.permute.xlu0 %1352
    %1356 = vset.pattern.permute.xlu0 0
    %1357 = vperm.xlu0 %1356, %v1331
    %v1358 = vpop.permute.xlu0 %1357
    %1361 = vset.pattern.permute.xlu0 0
    %1362 = vperm.xlu0 %1361, %v1332
    %v1363 = vpop.permute.xlu0 %1362
    %1366 = vset.pattern.permute.xlu0 0
    %1367 = vperm.xlu0 %1366, %v1333
    %v1368 = vpop.permute.xlu0 %1367
    %1371 = vset.pattern.permute.xlu0 0
    %1372 = vperm.xlu0 %1371, %v1334
    %v1373 = vpop.permute.xlu0 %1372
    %v1383 = vunpack.c.l.b16 %v1287
    %v1384 = vunpack.c.h.b16 %v1287
    %v1385 = vunpack.c.l.b16 %v1288
    %v1386 = vunpack.c.h.b16 %v1288
    %v1387 = vunpack.c.l.b16 %v1289
    %v1388 = vunpack.c.h.b16 %v1289
    %v1389 = vunpack.c.l.b16 %v1290
    %v1390 = vunpack.c.h.b16 %v1290
    %v1391 = vunpack.c.l.b16 %v1291
    %v1392 = vunpack.c.h.b16 %v1291
    %v1393 = vunpack.c.l.b16 %v1292
    %v1394 = vunpack.c.h.b16 %v1292
    %v1395 = vunpack.c.l.b16 %v1293
    %v1396 = vunpack.c.h.b16 %v1293
    %v1397 = vunpack.c.l.b16 %v1294
    %v1398 = vunpack.c.h.b16 %v1294
    %v1399 = vpack.c.b16 %v1385, %v1383
    %v1400 = vpack.c.b16 %v1386, %v1384
    %v1401 = vpack.c.b16 %v1389, %v1387
    %v1402 = vpack.c.b16 %v1390, %v1388
    %v1403 = vpack.c.b16 %v1393, %v1391
    %v1404 = vpack.c.b16 %v1394, %v1392
    %v1405 = vpack.c.b16 %v1397, %v1395
    %v1406 = vpack.c.b16 %v1398, %v1396
    %1415 = vmatprep.subr.bf16.mxu0 %v1296
    %1416 = vmatpush1.bf16.msra.mxu0 %v1295
    %1417 = vmatprep.subr.bf16.mxu0 %v1298
    %1418 = vmatpush1.bf16.msra.mxu0 %v1297
    %1419 = vmatprep.subr.bf16.mxu0 %v1300
    %1420 = vmatpush1.bf16.msra.mxu0 %v1299
    %1421 = vmatprep.subr.bf16.mxu0 %v1302
    %1422 = vmatpush1.bf16.msra.mxu0 %v1301
    %1423 = vmatprep.subr.bf16.mxu0 %v1304
    %1424 = vmatpush1.bf16.msra.mxu0 %v1303
    %1425 = vmatprep.subr.bf16.mxu0 %v1306
    %1426 = vmatpush1.bf16.msra.mxu0 %v1305
    %1427 = vmatprep.subr.bf16.mxu0 %v1308
    %1428 = vmatpush1.bf16.msra.mxu0 %v1307
    %1429 = vmatprep.subr.bf16.mxu0 %v1310
    %1430 = vmatpush1.bf16.msra.mxu0 %v1309
    %1431 = vmatprep.subr.bf16.mxu0 %v1312
    %1432 = vmatpush1.bf16.msra.mxu0 %v1311
    %1433 = vmatprep.subr.bf16.mxu0 %v1314
    %1434 = vmatpush1.bf16.msra.mxu0 %v1313
    %1435 = vmatprep.subr.bf16.mxu0 %v1316
    %1436 = vmatpush1.bf16.msra.mxu0 %v1315
    %1437 = vmatprep.subr.bf16.mxu0 %v1318
    %1438 = vmatpush1.bf16.msra.mxu0 %v1317
    %1439 = vmatprep.subr.bf16.mxu0 %v1320
    %1440 = vmatpush1.bf16.msra.mxu0 %v1319
    %1441 = vmatprep.subr.bf16.mxu0 %v1322
    %1442 = vmatpush1.bf16.msra.mxu0 %v1321
    %1443 = vmatprep.subr.bf16.mxu0 %v1324
    %1444 = vmatpush1.bf16.msra.mxu0 %v1323
    %1445 = vmatprep.subr.bf16.mxu0 %v1326
    %1446 = vmatpush1.bf16.msra.mxu0 %v1325
    %1447 = vmatprep.mubr.bf16.mxu0 %v1400
    %1448 = vmatmul.mubr.bf16.gmra.mrb[0].mxu0 %v1399
    %v1449 = vpop.f32.mrb[0].mxu0
    %v1450 = vadd.f32 %v1338, %v1449
    %v1451 = vpop.f32.mrb[0].mxu0
    %v1452 = vadd.f32 %v1338, %v1451
    %v1453 = vpop.f32.mrb[0].mxu0
    %v1454 = vadd.f32 %v1343, %v1453
    %v1455 = vpop.f32.mrb[0].mxu0
    %v1456 = vadd.f32 %v1343, %v1455
    %1457 = vmatprep.mubr.bf16.mxu0 %v1402
    %1458 = vmatmul.mubr.bf16.gmra.mrb[0].mxu0 %v1401
    %v1459 = vpop.f32.mrb[0].mxu0
    %v1460 = vadd.f32 %v1348, %v1459
    %v1461 = vpop.f32.mrb[0].mxu0
    %v1462 = vadd.f32 %v1348, %v1461
    %v1463 = vpop.f32.mrb[0].mxu0
    %v1464 = vadd.f32 %v1353, %v1463
    %v1465 = vpop.f32.mrb[0].mxu0
    %v1466 = vadd.f32 %v1353, %v1465
    %1467 = vmatprep.mubr.bf16.mxu0 %v1404
    %1468 = vmatmul.mubr.bf16.gmra.mrb[0].mxu0 %v1403
    %v1469 = vpop.f32.mrb[0].mxu0
    %v1470 = vadd.f32 %v1358, %v1469
    %v1471 = vpop.f32.mrb[0].mxu0
    %v1472 = vadd.f32 %v1358, %v1471
    %v1473 = vpop.f32.mrb[0].mxu0
    %v1474 = vadd.f32 %v1363, %v1473
    %v1475 = vpop.f32.mrb[0].mxu0
    %v1476 = vadd.f32 %v1363, %v1475
    %1477 = vmatprep.mubr.bf16.mxu0 %v1406
    %1478 = vmatmul.mubr.bf16.gmra.mrb[0].mxu0 %v1405
    %v1479 = vpop.f32.mrb[0].mxu0
    %v1480 = vadd.f32 %v1368, %v1479
    %v1481 = vpop.f32.mrb[0].mxu0
    %v1482 = vadd.f32 %v1368, %v1481
    %v1483 = vpop.f32.mrb[0].mxu0
    %v1484 = vadd.f32 %v1373, %v1483
    %v1485 = vpop.f32.mrb[0].mxu0
    %v1486 = vadd.f32 %v1373, %v1485
    %1487 = vdwg.mxu0
    %v1488 = vmax.f32 %v1450, 0.0
    %v1489 = vmax.f32 %v1452, 0.0
    %v1490 = vmax.f32 %v1454, 0.0
    %v1491 = vmax.f32 %v1456, 0.0
    %v1492 = vmax.f32 %v1460, 0.0
    %v1493 = vmax.f32 %v1462, 0.0
    %v1494 = vmax.f32 %v1464, 0.0
    %v1495 = vmax.f32 %v1466, 0.0
    %v1496 = vmax.f32 %v1470, 0.0
    %v1497 = vmax.f32 %v1472, 0.0
    %v1498 = vmax.f32 %v1474, 0.0
    %v1499 = vmax.f32 %v1476, 0.0
    %v1500 = vmax.f32 %v1480, 0.0
    %v1501 = vmax.f32 %v1482, 0.0
    %v1502 = vmax.f32 %v1484, 0.0
    %v1503 = vmax.f32 %v1486, 0.0
    %v1504 = vld [vmem:[%s5] sm:$0xff]
    %v1505 = vld [vmem:[%s5 + $0x8] sm:$0xff]
    %v1506 = vld [vmem:[%s5 + $0x10] sm:$0xff]
    %v1507 = vld [vmem:[%s5 + $0x18] sm:$0xff]
    %v1508 = vld [vmem:[%s5 + $0x20] sm:$0xff]
    %v1509 = vld [vmem:[%s5 + $0x28] sm:$0xff]
    %v1510 = vld [vmem:[%s5 + $0x30] sm:$0xff]
    %v1511 = vld [vmem:[%s5 + $0x38] sm:$0xff]
    %1513 = vset.pattern.permute.xlu0 0
    %1514 = vperm.xlu0 %1513, %v1504
    %v1515 = vpop.permute.xlu0 %1514
    %1518 = vset.pattern.permute.xlu0 0
    %1519 = vperm.xlu0 %1518, %v1505
    %v1520 = vpop.permute.xlu0 %1519
    %1523 = vset.pattern.permute.xlu0 0
    %1524 = vperm.xlu0 %1523, %v1506
    %v1525 = vpop.permute.xlu0 %1524
    %1528 = vset.pattern.permute.xlu0 0
    %1529 = vperm.xlu0 %1528, %v1507
    %v1530 = vpop.permute.xlu0 %1529
    %1533 = vset.pattern.permute.xlu0 0
    %1534 = vperm.xlu0 %1533, %v1508
    %v1535 = vpop.permute.xlu0 %1534
    %1538 = vset.pattern.permute.xlu0 0
    %1539 = vperm.xlu0 %1538, %v1509
    %v1540 = vpop.permute.xlu0 %1539
    %1543 = vset.pattern.permute.xlu0 0
    %1544 = vperm.xlu0 %1543, %v1510
    %v1545 = vpop.permute.xlu0 %1544
    %1548 = vset.pattern.permute.xlu0 0
    %1549 = vperm.xlu0 %1548, %v1511
    %v1550 = vpop.permute.xlu0 %1549
    %v1552 = vmul.f32 %v1488, %v1515
    %v1553 = vmul.f32 %v1489, %v1515
    %v1554 = vmul.f32 %v1490, %v1520
    %v1555 = vmul.f32 %v1491, %v1520
    %v1556 = vmul.f32 %v1492, %v1525
    %v1557 = vmul.f32 %v1493, %v1525
    %v1558 = vmul.f32 %v1494, %v1530
    %v1559 = vmul.f32 %v1495, %v1530
    %v1560 = vmul.f32 %v1496, %v1535
    %v1561 = vmul.f32 %v1497, %v1535
    %v1562 = vmul.f32 %v1498, %v1540
    %v1563 = vmul.f32 %v1499, %v1540
    %v1564 = vmul.f32 %v1500, %v1545
    %v1565 = vmul.f32 %v1501, %v1545
    %v1566 = vmul.f32 %v1502, %v1550
    %v1567 = vmul.f32 %v1503, %v1550
    %v1568 = vadd.f32 %v1552, %v1554
    %v1569 = vadd.f32 %v1568, %v1556
    %v1570 = vadd.f32 %v1569, %v1558
    %v1571 = vadd.f32 %v1570, %v1560
    %v1572 = vadd.f32 %v1571, %v1562
    %v1573 = vadd.f32 %v1572, %v1564
    %v1574 = vadd.f32 %v1573, %v1566
    %v1575 = vrot.slane %v1574, 4
    %v1576 = vadd.f32 %v1574, %v1575
    %v1577 = vrot.slane %v1576, 2
    %v1578 = vadd.f32 %v1576, %v1577
    %v1579 = vrot.slane %v1578, 1
    %v1580 = vadd.f32 %v1578, %v1579
    %v1581 = vadd.f32 %v1553, %v1555
    %v1582 = vadd.f32 %v1581, %v1557
    %v1583 = vadd.f32 %v1582, %v1559
    %v1584 = vadd.f32 %v1583, %v1561
    %v1585 = vadd.f32 %v1584, %v1563
    %v1586 = vadd.f32 %v1585, %v1565
    %v1587 = vadd.f32 %v1586, %v1567
    %v1588 = vrot.slane %v1587, 4
    %v1589 = vadd.f32 %v1587, %v1588
    %v1590 = vrot.slane %v1589, 2
    %v1591 = vadd.f32 %v1589, %v1590
    %v1592 = vrot.slane %v1591, 1
    %v1593 = vadd.f32 %v1591, %v1592
    %v1594 = vld [vmem:[#allocation3] sm:$0x1]
    %1596 = vset.pattern.permute.xlu0 0
    %1597 = vperm.xlu0 %1596, %v1594
    %v1598 = vpop.permute.xlu0 %1597
    %v1600 = vlaneseq
    %v1601 = vshrl.u32 %v1600, 7
    %v1602 = vsub.s32 0, %v1601
    %v1603 = vrot.slane %v1598, %v1602
    %v1604 = vadd.f32 %v1580, %v1603
    %v1605 = vadd.f32 %v1593, %v1603
    %v1606 = vmax.f32 %v1604, 0.0
    %v1607 = vmax.f32 %v1605, 0.0
    %v1608 = vld [vmem:[#allocation2] ss:$8 sm:$0x3]
    %v1611 = vcombine.low %v1606, %v1607
    %v1613 = vunpack.c.l.s4 1966171168
    %v1614 = vunpack.c.0.s8 %v1613
    %v1615 = vlaneseq
    %v1616 = vshrl.u32 %v1615, 7
    %v1617 = vsub.s32 %v1614, %v1616
    %v1618 = vrot.slane %v1611, %v1617
    %v1620 = vunpack.c.l.s4 1966171168
    %v1621 = vunpack.c.0.s8 %v1620
    %v1622 = vlaneseq
    %v1623 = vshrl.u32 %v1622, 7
    %v1624 = vsub.s32 %v1621, %v1623
    %v1625 = vrot.slane %v1618, %v1624
    %v1627 = vadd.f32 %v1608, %v1625
    %v1628 = vlaneseq
    %vm1629 = vcmp.ge.s32.totalorder %v1628, 0
    %vm1630 = vcmp.lt.s32.totalorder %v1628, 256
    %vm1631 = vmand %vm1629, %vm1630
    %1632 = vst.msk [vmem:[#allocation2] ss:$8 sm:$0x3] %vm1631, %v1627
    %1633 = vst.msk [vmem:[#allocation2] ss:$8 sm:$0x0] %vm1631, %v1627
    %s1634 = scalar_lea.vmem [#allocation4], 1024
    %v1635 = vld [vmem:[%s1634] sm:$0xff]
    %v1636 = vld [vmem:[%s1634 + $0x8] sm:$0xff]
    %v1637 = vld [vmem:[%s1634 + $0x10] sm:$0xff]
    %v1638 = vld [vmem:[%s1634 + $0x18] sm:$0xff]
    %v1639 = vld [vmem:[%s1634 + $0x20] sm:$0xff]
    %v1640 = vld [vmem:[%s1634 + $0x28] sm:$0xff]
    %v1641 = vld [vmem:[%s1634 + $0x30] sm:$0xff]
    %v1642 = vld [vmem:[%s1634 + $0x38] sm:$0xff]
    %v1643 = vld [vmem:[%s1634 + $0x40] sm:$0xff]
    %v1644 = vld [vmem:[%s1634 + $0x48] sm:$0xff]
    %v1645 = vld [vmem:[%s1634 + $0x50] sm:$0xff]
    %v1646 = vld [vmem:[%s1634 + $0x58] sm:$0xff]
    %v1647 = vld [vmem:[%s1634 + $0x60] sm:$0xff]
    %v1648 = vld [vmem:[%s1634 + $0x68] sm:$0xff]
    %v1649 = vld [vmem:[%s1634 + $0x70] sm:$0xff]
    %v1650 = vld [vmem:[%s1634 + $0x78] sm:$0xff]
    %v1651 = vld [vmem:[%s1634 + $0x80] sm:$0xff]
    %v1652 = vld [vmem:[%s1634 + $0x88] sm:$0xff]
    %v1653 = vld [vmem:[%s1634 + $0x90] sm:$0xff]
    %v1654 = vld [vmem:[%s1634 + $0x98] sm:$0xff]
    %v1655 = vld [vmem:[%s1634 + $0xa0] sm:$0xff]
    %v1656 = vld [vmem:[%s1634 + $0xa8] sm:$0xff]
    %v1657 = vld [vmem:[%s1634 + $0xb0] sm:$0xff]
    %v1658 = vld [vmem:[%s1634 + $0xb8] sm:$0xff]
    %v1659 = vld [vmem:[%s1634 + $0xc0] sm:$0xff]
    %v1660 = vld [vmem:[%s1634 + $0xc8] sm:$0xff]
    %v1661 = vld [vmem:[%s1634 + $0xd0] sm:$0xff]
    %v1662 = vld [vmem:[%s1634 + $0xd8] sm:$0xff]
    %v1663 = vld [vmem:[%s1634 + $0xe0] sm:$0xff]
    %v1664 = vld [vmem:[%s1634 + $0xe8] sm:$0xff]
    %v1665 = vld [vmem:[%s1634 + $0xf0] sm:$0xff]
    %v1666 = vld [vmem:[%s1634 + $0xf8] sm:$0xff]
    %v1667 = vld [vmem:[%s1634 + $0x100] sm:$0xff]
    %v1668 = vld [vmem:[%s1634 + $0x108] sm:$0xff]
    %v1669 = vld [vmem:[%s1634 + $0x110] sm:$0xff]
    %v1670 = vld [vmem:[%s1634 + $0x118] sm:$0xff]
    %v1671 = vld [vmem:[%s1634 + $0x120] sm:$0xff]
    %v1672 = vld [vmem:[%s1634 + $0x128] sm:$0xff]
    %v1673 = vld [vmem:[%s1634 + $0x130] sm:$0xff]
    %v1674 = vld [vmem:[%s1634 + $0x138] sm:$0xff]
    %v1675 = vld [vmem:[%s1634 + $0x140] sm:$0xff]
    %v1676 = vld [vmem:[%s1634 + $0x148] sm:$0xff]
    %v1677 = vld [vmem:[%s1634 + $0x150] sm:$0xff]
    %v1678 = vld [vmem:[%s1634 + $0x158] sm:$0xff]
    %v1679 = vld [vmem:[%s1634 + $0x160] sm:$0xff]
    %v1680 = vld [vmem:[%s1634 + $0x168] sm:$0xff]
    %v1681 = vld [vmem:[%s1634 + $0x170] sm:$0xff]
    %v1682 = vld [vmem:[%s1634 + $0x178] sm:$0xff]
    %v1683 = vld [vmem:[%s1634 + $0x180] sm:$0xff]
    %v1684 = vld [vmem:[%s1634 + $0x188] sm:$0xff]
    %v1685 = vld [vmem:[%s1634 + $0x190] sm:$0xff]
    %v1686 = vld [vmem:[%s1634 + $0x198] sm:$0xff]
    %v1687 = vld [vmem:[%s1634 + $0x1a0] sm:$0xff]
    %v1688 = vld [vmem:[%s1634 + $0x1a8] sm:$0xff]
    %v1689 = vld [vmem:[%s1634 + $0x1b0] sm:$0xff]
    %v1690 = vld [vmem:[%s1634 + $0x1b8] sm:$0xff]
    %v1691 = vld [vmem:[%s1634 + $0x1c0] sm:$0xff]
    %v1692 = vld [vmem:[%s1634 + $0x1c8] sm:$0xff]
    %v1693 = vld [vmem:[%s1634 + $0x1d0] sm:$0xff]
    %v1694 = vld [vmem:[%s1634 + $0x1d8] sm:$0xff]
    %v1695 = vld [vmem:[%s1634 + $0x1e0] sm:$0xff]
    %v1696 = vld [vmem:[%s1634 + $0x1e8] sm:$0xff]
    %v1697 = vld [vmem:[%s1634 + $0x1f0] sm:$0xff]
    %v1698 = vld [vmem:[%s1634 + $0x1f8] sm:$0xff]
    %v1699 = vld [vmem:[%s1634 + $0x200] sm:$0xff]
    %v1700 = vld [vmem:[%s1634 + $0x208] sm:$0xff]
    %v1701 = vld [vmem:[%s1634 + $0x210] sm:$0xff]
    %v1702 = vld [vmem:[%s1634 + $0x218] sm:$0xff]
    %v1703 = vld [vmem:[%s1634 + $0x220] sm:$0xff]
    %v1704 = vld [vmem:[%s1634 + $0x228] sm:$0xff]
    %v1705 = vld [vmem:[%s1634 + $0x230] sm:$0xff]
    %v1706 = vld [vmem:[%s1634 + $0x238] sm:$0xff]
    %v1707 = vld [vmem:[%s1634 + $0x240] sm:$0xff]
    %v1708 = vld [vmem:[%s1634 + $0x248] sm:$0xff]
    %v1709 = vld [vmem:[%s1634 + $0x250] sm:$0xff]
    %v1710 = vld [vmem:[%s1634 + $0x258] sm:$0xff]
    %v1711 = vld [vmem:[%s1634 + $0x260] sm:$0xff]
    %v1712 = vld [vmem:[%s1634 + $0x268] sm:$0xff]
    %v1713 = vld [vmem:[%s1634 + $0x270] sm:$0xff]
    %v1714 = vld [vmem:[%s1634 + $0x278] sm:$0xff]
    %v1715 = vld [vmem:[%s1634 + $0x280] sm:$0xff]
    %v1716 = vld [vmem:[%s1634 + $0x288] sm:$0xff]
    %v1717 = vld [vmem:[%s1634 + $0x290] sm:$0xff]
    %v1718 = vld [vmem:[%s1634 + $0x298] sm:$0xff]
    %v1719 = vld [vmem:[%s1634 + $0x2a0] sm:$0xff]
    %v1720 = vld [vmem:[%s1634 + $0x2a8] sm:$0xff]
    %v1721 = vld [vmem:[%s1634 + $0x2b0] sm:$0xff]
    %v1722 = vld [vmem:[%s1634 + $0x2b8] sm:$0xff]
    %v1723 = vld [vmem:[%s1634 + $0x2c0] sm:$0xff]
    %v1724 = vld [vmem:[%s1634 + $0x2c8] sm:$0xff]
    %v1725 = vld [vmem:[%s1634 + $0x2d0] sm:$0xff]
    %v1726 = vld [vmem:[%s1634 + $0x2d8] sm:$0xff]
    %v1727 = vld [vmem:[%s1634 + $0x2e0] sm:$0xff]
    %v1728 = vld [vmem:[%s1634 + $0x2e8] sm:$0xff]
    %v1729 = vld [vmem:[%s1634 + $0x2f0] sm:$0xff]
    %v1730 = vld [vmem:[%s1634 + $0x2f8] sm:$0xff]
    %v1731 = vld [vmem:[%s1634 + $0x300] sm:$0xff]
    %v1732 = vld [vmem:[%s1634 + $0x308] sm:$0xff]
    %v1733 = vld [vmem:[%s1634 + $0x310] sm:$0xff]
    %v1734 = vld [vmem:[%s1634 + $0x318] sm:$0xff]
    %v1735 = vld [vmem:[%s1634 + $0x320] sm:$0xff]
    %v1736 = vld [vmem:[%s1634 + $0x328] sm:$0xff]
    %v1737 = vld [vmem:[%s1634 + $0x330] sm:$0xff]
    %v1738 = vld [vmem:[%s1634 + $0x338] sm:$0xff]
    %v1739 = vld [vmem:[%s1634 + $0x340] sm:$0xff]
    %v1740 = vld [vmem:[%s1634 + $0x348] sm:$0xff]
    %v1741 = vld [vmem:[%s1634 + $0x350] sm:$0xff]
    %v1742 = vld [vmem:[%s1634 + $0x358] sm:$0xff]
    %v1743 = vld [vmem:[%s1634 + $0x360] sm:$0xff]
    %v1744 = vld [vmem:[%s1634 + $0x368] sm:$0xff]
    %v1745 = vld [vmem:[%s1634 + $0x370] sm:$0xff]
    %v1746 = vld [vmem:[%s1634 + $0x378] sm:$0xff]
    %v1747 = vld [vmem:[%s1634 + $0x380] sm:$0xff]
    %v1748 = vld [vmem:[%s1634 + $0x388] sm:$0xff]
    %v1749 = vld [vmem:[%s1634 + $0x390] sm:$0xff]
    %v1750 = vld [vmem:[%s1634 + $0x398] sm:$0xff]
    %v1751 = vld [vmem:[%s1634 + $0x3a0] sm:$0xff]
    %v1752 = vld [vmem:[%s1634 + $0x3a8] sm:$0xff]
    %v1753 = vld [vmem:[%s1634 + $0x3b0] sm:$0xff]
    %v1754 = vld [vmem:[%s1634 + $0x3b8] sm:$0xff]
    %v1755 = vld [vmem:[%s1634 + $0x3c0] sm:$0xff]
    %v1756 = vld [vmem:[%s1634 + $0x3c8] sm:$0xff]
    %v1757 = vld [vmem:[%s1634 + $0x3d0] sm:$0xff]
    %v1758 = vld [vmem:[%s1634 + $0x3d8] sm:$0xff]
    %v1759 = vld [vmem:[%s1634 + $0x3e0] sm:$0xff]
    %v1760 = vld [vmem:[%s1634 + $0x3e8] sm:$0xff]
    %v1761 = vld [vmem:[%s1634 + $0x3f0] sm:$0xff]
    %v1762 = vld [vmem:[%s1634 + $0x3f8] sm:$0xff]
    %v1763 = vpack.c.bf16 %v1637, %v1635
    %v1764 = vpack.c.bf16 %v1638, %v1636
    %v1765 = vpack.c.bf16 %v1641, %v1639
    %v1766 = vpack.c.bf16 %v1642, %v1640
    %v1767 = vpack.c.bf16 %v1645, %v1643
    %v1768 = vpack.c.bf16 %v1646, %v1644
    %v1769 = vpack.c.bf16 %v1649, %v1647
    %v1770 = vpack.c.bf16 %v1650, %v1648
    %v1771 = vpack.c.bf16 %v1653, %v1651
    %v1772 = vpack.c.bf16 %v1654, %v1652
    %v1773 = vpack.c.bf16 %v1657, %v1655
    %v1774 = vpack.c.bf16 %v1658, %v1656
    %v1775 = vpack.c.bf16 %v1661, %v1659
    %v1776 = vpack.c.bf16 %v1662, %v1660
    %v1777 = vpack.c.bf16 %v1665, %v1663
    %v1778 = vpack.c.bf16 %v1666, %v1664
    %v1779 = vpack.c.bf16 %v1669, %v1667
    %v1780 = vpack.c.bf16 %v1670, %v1668
    %v1781 = vpack.c.bf16 %v1673, %v1671
    %v1782 = vpack.c.bf16 %v1674, %v1672
    %v1783 = vpack.c.bf16 %v1677, %v1675
    %v1784 = vpack.c.bf16 %v1678, %v1676
    %v1785 = vpack.c.bf16 %v1681, %v1679
    %v1786 = vpack.c.bf16 %v1682, %v1680
    %v1787 = vpack.c.bf16 %v1685, %v1683
    %v1788 = vpack.c.bf16 %v1686, %v1684
    %v1789 = vpack.c.bf16 %v1689, %v1687
    %v1790 = vpack.c.bf16 %v1690, %v1688
    %v1791 = vpack.c.bf16 %v1693, %v1691
    %v1792 = vpack.c.bf16 %v1694, %v1692
    %v1793 = vpack.c.bf16 %v1697, %v1695
    %v1794 = vpack.c.bf16 %v1698, %v1696
    %v1795 = vpack.c.bf16 %v1701, %v1699
    %v1796 = vpack.c.bf16 %v1702, %v1700
    %v1797 = vpack.c.bf16 %v1705, %v1703
    %v1798 = vpack.c.bf16 %v1706, %v1704
    %v1799 = vpack.c.bf16 %v1709, %v1707
    %v1800 = vpack.c.bf16 %v1710, %v1708
    %v1801 = vpack.c.bf16 %v1713, %v1711
    %v1802 = vpack.c.bf16 %v1714, %v1712
    %v1803 = vpack.c.bf16 %v1717, %v1715
    %v1804 = vpack.c.bf16 %v1718, %v1716
    %v1805 = vpack.c.bf16 %v1721, %v1719
    %v1806 = vpack.c.bf16 %v1722, %v1720
    %v1807 = vpack.c.bf16 %v1725, %v1723
    %v1808 = vpack.c.bf16 %v1726, %v1724
    %v1809 = vpack.c.bf16 %v1729, %v1727
    %v1810 = vpack.c.bf16 %v1730, %v1728
    %v1811 = vpack.c.bf16 %v1733, %v1731
    %v1812 = vpack.c.bf16 %v1734, %v1732
    %v1813 = vpack.c.bf16 %v1737, %v1735
    %v1814 = vpack.c.bf16 %v1738, %v1736
    %v1815 = vpack.c.bf16 %v1741, %v1739
    %v1816 = vpack.c.bf16 %v1742, %v1740
    %v1817 = vpack.c.bf16 %v1745, %v1743
    %v1818 = vpack.c.bf16 %v1746, %v1744
    %v1819 = vpack.c.bf16 %v1749, %v1747
    %v1820 = vpack.c.bf16 %v1750, %v1748
    %v1821 = vpack.c.bf16 %v1753, %v1751
    %v1822 = vpack.c.bf16 %v1754, %v1752
    %v1823 = vpack.c.bf16 %v1757, %v1755
    %v1824 = vpack.c.bf16 %v1758, %v1756
    %v1825 = vpack.c.bf16 %v1761, %v1759
    %v1826 = vpack.c.bf16 %v1762, %v1760
    %v1827 = vld [vmem:[#allocation7] sm:$0xff]
    %v1828 = vld [vmem:[#allocation7 + $0x8] sm:$0xff]
    %v1829 = vld [vmem:[#allocation7 + $0x10] sm:$0xff]
    %v1830 = vld [vmem:[#allocation7 + $0x18] sm:$0xff]
    %v1831 = vld [vmem:[#allocation7 + $0x20] sm:$0xff]
    %v1832 = vld [vmem:[#allocation7 + $0x28] sm:$0xff]
    %v1833 = vld [vmem:[#allocation7 + $0x30] sm:$0xff]
    %v1834 = vld [vmem:[#allocation7 + $0x38] sm:$0xff]
    %v1835 = vld [vmem:[#allocation7 + $0x40] sm:$0xff]
    %v1836 = vld [vmem:[#allocation7 + $0x48] sm:$0xff]
    %v1837 = vld [vmem:[#allocation7 + $0x50] sm:$0xff]
    %v1838 = vld [vmem:[#allocation7 + $0x58] sm:$0xff]
    %v1839 = vld [vmem:[#allocation7 + $0x60] sm:$0xff]
    %v1840 = vld [vmem:[#allocation7 + $0x68] sm:$0xff]
    %v1841 = vld [vmem:[#allocation7 + $0x70] sm:$0xff]
    %v1842 = vld [vmem:[#allocation7 + $0x78] sm:$0xff]
    %v1843 = vld [vmem:[#allocation7 + $0x80] sm:$0xff]
    %v1844 = vld [vmem:[#allocation7 + $0x88] sm:$0xff]
    %v1845 = vld [vmem:[#allocation7 + $0x90] sm:$0xff]
    %v1846 = vld [vmem:[#allocation7 + $0x98] sm:$0xff]
    %v1847 = vld [vmem:[#allocation7 + $0xa0] sm:$0xff]
    %v1848 = vld [vmem:[#allocation7 + $0xa8] sm:$0xff]
    %v1849 = vld [vmem:[#allocation7 + $0xb0] sm:$0xff]
    %v1850 = vld [vmem:[#allocation7 + $0xb8] sm:$0xff]
    %v1851 = vld [vmem:[#allocation7 + $0xc0] sm:$0xff]
    %v1852 = vld [vmem:[#allocation7 + $0xc8] sm:$0xff]
    %v1853 = vld [vmem:[#allocation7 + $0xd0] sm:$0xff]
    %v1854 = vld [vmem:[#allocation7 + $0xd8] sm:$0xff]
    %v1855 = vld [vmem:[#allocation7 + $0xe0] sm:$0xff]
    %v1856 = vld [vmem:[#allocation7 + $0xe8] sm:$0xff]
    %v1857 = vld [vmem:[#allocation7 + $0xf0] sm:$0xff]
    %v1858 = vld [vmem:[#allocation7 + $0xf8] sm:$0xff]
    %v1859 = vld [vmem:[#allocation7 + $0x100] sm:$0xff]
    %v1860 = vld [vmem:[#allocation7 + $0x108] sm:$0xff]
    %v1861 = vld [vmem:[#allocation7 + $0x110] sm:$0xff]
    %v1862 = vld [vmem:[#allocation7 + $0x118] sm:$0xff]
    %v1863 = vld [vmem:[#allocation7 + $0x120] sm:$0xff]
    %v1864 = vld [vmem:[#allocation7 + $0x128] sm:$0xff]
    %v1865 = vld [vmem:[#allocation7 + $0x130] sm:$0xff]
    %v1866 = vld [vmem:[#allocation7 + $0x138] sm:$0xff]
    %v1867 = vld [vmem:[#allocation7 + $0x140] sm:$0xff]
    %v1868 = vld [vmem:[#allocation7 + $0x148] sm:$0xff]
    %v1869 = vld [vmem:[#allocation7 + $0x150] sm:$0xff]
    %v1870 = vld [vmem:[#allocation7 + $0x158] sm:$0xff]
    %v1871 = vld [vmem:[#allocation7 + $0x160] sm:$0xff]
    %v1872 = vld [vmem:[#allocation7 + $0x168] sm:$0xff]
    %v1873 = vld [vmem:[#allocation7 + $0x170] sm:$0xff]
    %v1874 = vld [vmem:[#allocation7 + $0x178] sm:$0xff]
    %v1875 = vld [vmem:[#allocation7 + $0x180] sm:$0xff]
    %v1876 = vld [vmem:[#allocation7 + $0x188] sm:$0xff]
    %v1877 = vld [vmem:[#allocation7 + $0x190] sm:$0xff]
    %v1878 = vld [vmem:[#allocation7 + $0x198] sm:$0xff]
    %v1879 = vld [vmem:[#allocation7 + $0x1a0] sm:$0xff]
    %v1880 = vld [vmem:[#allocation7 + $0x1a8] sm:$0xff]
    %v1881 = vld [vmem:[#allocation7 + $0x1b0] sm:$0xff]
    %v1882 = vld [vmem:[#allocation7 + $0x1b8] sm:$0xff]
    %v1883 = vld [vmem:[#allocation7 + $0x1c0] sm:$0xff]
    %v1884 = vld [vmem:[#allocation7 + $0x1c8] sm:$0xff]
    %v1885 = vld [vmem:[#allocation7 + $0x1d0] sm:$0xff]
    %v1886 = vld [vmem:[#allocation7 + $0x1d8] sm:$0xff]
    %v1887 = vld [vmem:[#allocation7 + $0x1e0] sm:$0xff]
    %v1888 = vld [vmem:[#allocation7 + $0x1e8] sm:$0xff]
    %v1889 = vld [vmem:[#allocation7 + $0x1f0] sm:$0xff]
    %v1890 = vld [vmem:[#allocation7 + $0x1f8] sm:$0xff]
    %v1891 = vld [vmem:[%s2] sm:$0xff]
    %v1892 = vld [vmem:[%s2 + $0x8] sm:$0xff]
    %v1893 = vld [vmem:[%s2 + $0x10] sm:$0xff]
    %v1894 = vld [vmem:[%s2 + $0x18] sm:$0xff]
    %v1895 = vld [vmem:[%s2 + $0x20] sm:$0xff]
    %v1896 = vld [vmem:[%s2 + $0x28] sm:$0xff]
    %v1897 = vld [vmem:[%s2 + $0x30] sm:$0xff]
    %v1898 = vld [vmem:[%s2 + $0x38] sm:$0xff]
    %v1899 = vld [vmem:[%s2 + $0x40] sm:$0xff]
    %v1900 = vld [vmem:[%s2 + $0x48] sm:$0xff]
    %v1901 = vld [vmem:[%s2 + $0x50] sm:$0xff]
    %v1902 = vld [vmem:[%s2 + $0x58] sm:$0xff]
    %v1903 = vld [vmem:[%s2 + $0x60] sm:$0xff]
    %v1904 = vld [vmem:[%s2 + $0x68] sm:$0xff]
    %v1905 = vld [vmem:[%s2 + $0x70] sm:$0xff]
    %v1906 = vld [vmem:[%s2 + $0x78] sm:$0xff]
    %v1907 = vld [vmem:[%s2 + $0x80] sm:$0xff]
    %v1908 = vld [vmem:[%s2 + $0x88] sm:$0xff]
    %v1909 = vld [vmem:[%s2 + $0x90] sm:$0xff]
    %v1910 = vld [vmem:[%s2 + $0x98] sm:$0xff]
    %v1911 = vld [vmem:[%s2 + $0xa0] sm:$0xff]
    %v1912 = vld [vmem:[%s2 + $0xa8] sm:$0xff]
    %v1913 = vld [vmem:[%s2 + $0xb0] sm:$0xff]
    %v1914 = vld [vmem:[%s2 + $0xb8] sm:$0xff]
    %v1915 = vld [vmem:[%s2 + $0xc0] sm:$0xff]
    %v1916 = vld [vmem:[%s2 + $0xc8] sm:$0xff]
    %v1917 = vld [vmem:[%s2 + $0xd0] sm:$0xff]
    %v1918 = vld [vmem:[%s2 + $0xd8] sm:$0xff]
    %v1919 = vld [vmem:[%s2 + $0xe0] sm:$0xff]
    %v1920 = vld [vmem:[%s2 + $0xe8] sm:$0xff]
    %v1921 = vld [vmem:[%s2 + $0xf0] sm:$0xff]
    %v1922 = vld [vmem:[%s2 + $0xf8] sm:$0xff]
    %1924 = vset.pattern.permute.xlu0 0
    %1925 = vperm.xlu0 %1924, %v1891
    %v1926 = vpop.permute.xlu0 %1925
    %1929 = vset.pattern.permute.xlu0 0
    %1930 = vperm.xlu0 %1929, %v1892
    %v1931 = vpop.permute.xlu0 %1930
    %1934 = vset.pattern.permute.xlu0 0
    %1935 = vperm.xlu0 %1934, %v1893
    %v1936 = vpop.permute.xlu0 %1935
    %1939 = vset.pattern.permute.xlu0 0
    %1940 = vperm.xlu0 %1939, %v1894
    %v1941 = vpop.permute.xlu0 %1940
    %1944 = vset.pattern.permute.xlu0 0
    %1945 = vperm.xlu0 %1944, %v1895
    %v1946 = vpop.permute.xlu0 %1945
    %1949 = vset.pattern.permute.xlu0 0
    %1950 = vperm.xlu0 %1949, %v1896
    %v1951 = vpop.permute.xlu0 %1950
    %1954 = vset.pattern.permute.xlu0 0
    %1955 = vperm.xlu0 %1954, %v1897
    %v1956 = vpop.permute.xlu0 %1955
    %1959 = vset.pattern.permute.xlu0 0
    %1960 = vperm.xlu0 %1959, %v1898
    %v1961 = vpop.permute.xlu0 %1960
    %1964 = vset.pattern.permute.xlu0 0
    %1965 = vperm.xlu0 %1964, %v1899
    %v1966 = vpop.permute.xlu0 %1965
    %1969 = vset.pattern.permute.xlu0 0
    %1970 = vperm.xlu0 %1969, %v1900
    %v1971 = vpop.permute.xlu0 %1970
    %1974 = vset.pattern.permute.xlu0 0
    %1975 = vperm.xlu0 %1974, %v1901
    %v1976 = vpop.permute.xlu0 %1975
    %1979 = vset.pattern.permute.xlu0 0
    %1980 = vperm.xlu0 %1979, %v1902
    %v1981 = vpop.permute.xlu0 %1980
    %1984 = vset.pattern.permute.xlu0 0
    %1985 = vperm.xlu0 %1984, %v1903
    %v1986 = vpop.permute.xlu0 %1985
    %1989 = vset.pattern.permute.xlu0 0
    %1990 = vperm.xlu0 %1989, %v1904
    %v1991 = vpop.permute.xlu0 %1990
    %1994 = vset.pattern.permute.xlu0 0
    %1995 = vperm.xlu0 %1994, %v1905
    %v1996 = vpop.permute.xlu0 %1995
    %1999 = vset.pattern.permute.xlu0 0
    %2000 = vperm.xlu0 %1999, %v1906
    %v2001 = vpop.permute.xlu0 %2000
    %2004 = vset.pattern.permute.xlu0 0
    %2005 = vperm.xlu0 %2004, %v1907
    %v2006 = vpop.permute.xlu0 %2005
    %2009 = vset.pattern.permute.xlu0 0
    %2010 = vperm.xlu0 %2009, %v1908
    %v2011 = vpop.permute.xlu0 %2010
    %2014 = vset.pattern.permute.xlu0 0
    %2015 = vperm.xlu0 %2014, %v1909
    %v2016 = vpop.permute.xlu0 %2015
    %2019 = vset.pattern.permute.xlu0 0
    %2020 = vperm.xlu0 %2019, %v1910
    %v2021 = vpop.permute.xlu0 %2020
    %2024 = vset.pattern.permute.xlu0 0
    %2025 = vperm.xlu0 %2024, %v1911
    %v2026 = vpop.permute.xlu0 %2025
    %2029 = vset.pattern.permute.xlu0 0
    %2030 = vperm.xlu0 %2029, %v1912
    %v2031 = vpop.permute.xlu0 %2030
    %2034 = vset.pattern.permute.xlu0 0
    %2035 = vperm.xlu0 %2034, %v1913
    %v2036 = vpop.permute.xlu0 %2035
    %2039 = vset.pattern.permute.xlu0 0
    %2040 = vperm.xlu0 %2039, %v1914
    %v2041 = vpop.permute.xlu0 %2040
    %2044 = vset.pattern.permute.xlu0 0
    %2045 = vperm.xlu0 %2044, %v1915
    %v2046 = vpop.permute.xlu0 %2045
    %2049 = vset.pattern.permute.xlu0 0
    %2050 = vperm.xlu0 %2049, %v1916
    %v2051 = vpop.permute.xlu0 %2050
    %2054 = vset.pattern.permute.xlu0 0
    %2055 = vperm.xlu0 %2054, %v1917
    %v2056 = vpop.permute.xlu0 %2055
    %2059 = vset.pattern.permute.xlu0 0
    %2060 = vperm.xlu0 %2059, %v1918
    %v2061 = vpop.permute.xlu0 %2060
    %2064 = vset.pattern.permute.xlu0 0
    %2065 = vperm.xlu0 %2064, %v1919
    %v2066 = vpop.permute.xlu0 %2065
    %2069 = vset.pattern.permute.xlu0 0
    %2070 = vperm.xlu0 %2069, %v1920
    %v2071 = vpop.permute.xlu0 %2070
    %2074 = vset.pattern.permute.xlu0 0
    %2075 = vperm.xlu0 %2074, %v1921
    %v2076 = vpop.permute.xlu0 %2075
    %2079 = vset.pattern.permute.xlu0 0
    %2080 = vperm.xlu0 %2079, %v1922
    %v2081 = vpop.permute.xlu0 %2080
    %v2147 = vunpack.c.l.b16 %v1827
    %v2148 = vunpack.c.h.b16 %v1827
    %v2149 = vunpack.c.l.b16 %v1828
    %v2150 = vunpack.c.h.b16 %v1828
    %v2151 = vunpack.c.l.b16 %v1829
    %v2152 = vunpack.c.h.b16 %v1829
    %v2153 = vunpack.c.l.b16 %v1830
    %v2154 = vunpack.c.h.b16 %v1830
    %v2155 = vunpack.c.l.b16 %v1831
    %v2156 = vunpack.c.h.b16 %v1831
    %v2157 = vunpack.c.l.b16 %v1832
    %v2158 = vunpack.c.h.b16 %v1832
    %v2159 = vunpack.c.l.b16 %v1833
    %v2160 = vunpack.c.h.b16 %v1833
    %v2161 = vunpack.c.l.b16 %v1834
    %v2162 = vunpack.c.h.b16 %v1834
    %v2163 = vunpack.c.l.b16 %v1835
    %v2164 = vunpack.c.h.b16 %v1835
    %v2165 = vunpack.c.l.b16 %v1836
    %v2166 = vunpack.c.h.b16 %v1836
    %v2167 = vunpack.c.l.b16 %v1837
    %v2168 = vunpack.c.h.b16 %v1837
    %v2169 = vunpack.c.l.b16 %v1838
    %v2170 = vunpack.c.h.b16 %v1838
    %v2171 = vunpack.c.l.b16 %v1839
    %v2172 = vunpack.c.h.b16 %v1839
    %v2173 = vunpack.c.l.b16 %v1840
    %v2174 = vunpack.c.h.b16 %v1840
    %v2175 = vunpack.c.l.b16 %v1841
    %v2176 = vunpack.c.h.b16 %v1841
    %v2177 = vunpack.c.l.b16 %v1842
    %v2178 = vunpack.c.h.b16 %v1842
    %v2179 = vunpack.c.l.b16 %v1843
    %v2180 = vunpack.c.h.b16 %v1843
    %v2181 = vunpack.c.l.b16 %v1844
    %v2182 = vunpack.c.h.b16 %v1844
    %v2183 = vunpack.c.l.b16 %v1845
    %v2184 = vunpack.c.h.b16 %v1845
    %v2185 = vunpack.c.l.b16 %v1846
    %v2186 = vunpack.c.h.b16 %v1846
    %v2187 = vunpack.c.l.b16 %v1847
    %v2188 = vunpack.c.h.b16 %v1847
    %v2189 = vunpack.c.l.b16 %v1848
    %v2190 = vunpack.c.h.b16 %v1848
    %v2191 = vunpack.c.l.b16 %v1849
    %v2192 = vunpack.c.h.b16 %v1849
    %v2193 = vunpack.c.l.b16 %v1850
    %v2194 = vunpack.c.h.b16 %v1850
    %v2195 = vunpack.c.l.b16 %v1851
    %v2196 = vunpack.c.h.b16 %v1851
    %v2197 = vunpack.c.l.b16 %v1852
    %v2198 = vunpack.c.h.b16 %v1852
    %v2199 = vunpack.c.l.b16 %v1853
    %v2200 = vunpack.c.h.b16 %v1853
    %v2201 = vunpack.c.l.b16 %v1854
    %v2202 = vunpack.c.h.b16 %v1854
    %v2203 = vunpack.c.l.b16 %v1855
    %v2204 = vunpack.c.h.b16 %v1855
    %v2205 = vunpack.c.l.b16 %v1856
    %v2206 = vunpack.c.h.b16 %v1856
    %v2207 = vunpack.c.l.b16 %v1857
    %v2208 = vunpack.c.h.b16 %v1857
    %v2209 = vunpack.c.l.b16 %v1858
    %v2210 = vunpack.c.h.b16 %v1858
    %v2211 = vunpack.c.l.b16 %v1859
    %v2212 = vunpack.c.h.b16 %v1859
    %v2213 = vunpack.c.l.b16 %v1860
    %v2214 = vunpack.c.h.b16 %v1860
    %v2215 = vunpack.c.l.b16 %v1861
    %v2216 = vunpack.c.h.b16 %v1861
    %v2217 = vunpack.c.l.b16 %v1862
    %v2218 = vunpack.c.h.b16 %v1862
    %v2219 = vunpack.c.l.b16 %v1863
    %v2220 = vunpack.c.h.b16 %v1863
    %v2221 = vunpack.c.l.b16 %v1864
    %v2222 = vunpack.c.h.b16 %v1864
    %v2223 = vunpack.c.l.b16 %v1865
    %v2224 = vunpack.c.h.b16 %v1865
    %v2225 = vunpack.c.l.b16 %v1866
    %v2226 = vunpack.c.h.b16 %v1866
    %v2227 = vunpack.c.l.b16 %v1867
    %v2228 = vunpack.c.h.b16 %v1867
    %v2229 = vunpack.c.l.b16 %v1868
    %v2230 = vunpack.c.h.b16 %v1868
    %v2231 = vunpack.c.l.b16 %v1869
    %v2232 = vunpack.c.h.b16 %v1869
    %v2233 = vunpack.c.l.b16 %v1870
    %v2234 = vunpack.c.h.b16 %v1870
    %v2235 = vunpack.c.l.b16 %v1871
    %v2236 = vunpack.c.h.b16 %v1871
    %v2237 = vunpack.c.l.b16 %v1872
    %v2238 = vunpack.c.h.b16 %v1872
    %v2239 = vunpack.c.l.b16 %v1873
    %v2240 = vunpack.c.h.b16 %v1873
    %v2241 = vunpack.c.l.b16 %v1874
    %v2242 = vunpack.c.h.b16 %v1874
    %v2243 = vunpack.c.l.b16 %v1875
    %v2244 = vunpack.c.h.b16 %v1875
    %v2245 = vunpack.c.l.b16 %v1876
    %v2246 = vunpack.c.h.b16 %v1876
    %v2247 = vunpack.c.l.b16 %v1877
    %v2248 = vunpack.c.h.b16 %v1877
    %v2249 = vunpack.c.l.b16 %v1878
    %v2250 = vunpack.c.h.b16 %v1878
    %v2251 = vunpack.c.l.b16 %v1879
    %v2252 = vunpack.c.h.b16 %v1879
    %v2253 = vunpack.c.l.b16 %v1880
    %v2254 = vunpack.c.h.b16 %v1880
    %v2255 = vunpack.c.l.b16 %v1881
    %v2256 = vunpack.c.h.b16 %v1881
    %v2257 = vunpack.c.l.b16 %v1882
    %v2258 = vunpack.c.h.b16 %v1882
    %v2259 = vunpack.c.l.b16 %v1883
    %v2260 = vunpack.c.h.b16 %v1883
    %v2261 = vunpack.c.l.b16 %v1884
    %v2262 = vunpack.c.h.b16 %v1884
    %v2263 = vunpack.c.l.b16 %v1885
    %v2264 = vunpack.c.h.b16 %v1885
    %v2265 = vunpack.c.l.b16 %v1886
    %v2266 = vunpack.c.h.b16 %v1886
    %v2267 = vunpack.c.l.b16 %v1887
    %v2268 = vunpack.c.h.b16 %v1887
    %v2269 = vunpack.c.l.b16 %v1888
    %v2270 = vunpack.c.h.b16 %v1888
    %v2271 = vunpack.c.l.b16 %v1889
    %v2272 = vunpack.c.h.b16 %v1889
    %v2273 = vunpack.c.l.b16 %v1890
    %v2274 = vunpack.c.h.b16 %v1890
    %v2275 = vpack.c.b16 %v2151, %v2147
    %v2276 = vpack.c.b16 %v2152, %v2148
    %v2277 = vpack.c.b16 %v2153, %v2149
    %v2278 = vpack.c.b16 %v2154, %v2150
    %v2279 = vpack.c.b16 %v2159, %v2155
    %v2280 = vpack.c.b16 %v2160, %v2156
    %v2281 = vpack.c.b16 %v2161, %v2157
    %v2282 = vpack.c.b16 %v2162, %v2158
    %v2283 = vpack.c.b16 %v2167, %v2163
    %v2284 = vpack.c.b16 %v2168, %v2164
    %v2285 = vpack.c.b16 %v2169, %v2165
    %v2286 = vpack.c.b16 %v2170, %v2166
    %v2287 = vpack.c.b16 %v2175, %v2171
    %v2288 = vpack.c.b16 %v2176, %v2172
    %v2289 = vpack.c.b16 %v2177, %v2173
    %v2290 = vpack.c.b16 %v2178, %v2174
    %v2291 = vpack.c.b16 %v2183, %v2179
    %v2292 = vpack.c.b16 %v2184, %v2180
    %v2293 = vpack.c.b16 %v2185, %v2181
    %v2294 = vpack.c.b16 %v2186, %v2182
    %v2295 = vpack.c.b16 %v2191, %v2187
    %v2296 = vpack.c.b16 %v2192, %v2188
    %v2297 = vpack.c.b16 %v2193, %v2189
    %v2298 = vpack.c.b16 %v2194, %v2190
    %v2299 = vpack.c.b16 %v2199, %v2195
    %v2300 = vpack.c.b16 %v2200, %v2196
    %v2301 = vpack.c.b16 %v2201, %v2197
    %v2302 = vpack.c.b16 %v2202, %v2198
    %v2303 = vpack.c.b16 %v2207, %v2203
    %v2304 = vpack.c.b16 %v2208, %v2204
    %v2305 = vpack.c.b16 %v2209, %v2205
    %v2306 = vpack.c.b16 %v2210, %v2206
    %v2307 = vpack.c.b16 %v2215, %v2211
    %v2308 = vpack.c.b16 %v2216, %v2212
    %v2309 = vpack.c.b16 %v2217, %v2213
    %v2310 = vpack.c.b16 %v2218, %v2214
    %v2311 = vpack.c.b16 %v2223, %v2219
    %v2312 = vpack.c.b16 %v2224, %v2220
    %v2313 = vpack.c.b16 %v2225, %v2221
    %v2314 = vpack.c.b16 %v2226, %v2222
    %v2315 = vpack.c.b16 %v2231, %v2227
    %v2316 = vpack.c.b16 %v2232, %v2228
    %v2317 = vpack.c.b16 %v2233, %v2229
    %v2318 = vpack.c.b16 %v2234, %v2230
    %v2319 = vpack.c.b16 %v2239, %v2235
    %v2320 = vpack.c.b16 %v2240, %v2236
    %v2321 = vpack.c.b16 %v2241, %v2237
    %v2322 = vpack.c.b16 %v2242, %v2238
    %v2323 = vpack.c.b16 %v2247, %v2243
    %v2324 = vpack.c.b16 %v2248, %v2244
    %v2325 = vpack.c.b16 %v2249, %v2245
    %v2326 = vpack.c.b16 %v2250, %v2246
    %v2327 = vpack.c.b16 %v2255, %v2251
    %v2328 = vpack.c.b16 %v2256, %v2252
    %v2329 = vpack.c.b16 %v2257, %v2253
    %v2330 = vpack.c.b16 %v2258, %v2254
    %v2331 = vpack.c.b16 %v2263, %v2259
    %v2332 = vpack.c.b16 %v2264, %v2260
    %v2333 = vpack.c.b16 %v2265, %v2261
    %v2334 = vpack.c.b16 %v2266, %v2262
    %v2335 = vpack.c.b16 %v2271, %v2267
    %v2336 = vpack.c.b16 %v2272, %v2268
    %v2337 = vpack.c.b16 %v2273, %v2269
    %v2338 = vpack.c.b16 %v2274, %v2270
    %2403 = vmatprep.subr.bf16.mxu0 %v1764
    %2404 = vmatpush1.bf16.msra.mxu0 %v1763
    %2405 = vmatprep.subr.bf16.mxu0 %v1766
    %2406 = vmatpush1.bf16.msra.mxu0 %v1765
    %2407 = vmatprep.subr.bf16.mxu0 %v1768
    %2408 = vmatpush1.bf16.msra.mxu0 %v1767
    %2409 = vmatprep.subr.bf16.mxu0 %v1770
    %2410 = vmatpush1.bf16.msra.mxu0 %v1769
    %2411 = vmatprep.subr.bf16.mxu0 %v1772
    %2412 = vmatpush1.bf16.msra.mxu0 %v1771
    %2413 = vmatprep.subr.bf16.mxu0 %v1774
    %2414 = vmatpush1.bf16.msra.mxu0 %v1773
    %2415 = vmatprep.subr.bf16.mxu0 %v1776
    %2416 = vmatpush1.bf16.msra.mxu0 %v1775
    %2417 = vmatprep.subr.bf16.mxu0 %v1778
    %2418 = vmatpush1.bf16.msra.mxu0 %v1777
    %2419 = vmatprep.subr.bf16.mxu0 %v1780
    %2420 = vmatpush1.bf16.msra.mxu0 %v1779
    %2421 = vmatprep.subr.bf16.mxu0 %v1782
    %2422 = vmatpush1.bf16.msra.mxu0 %v1781
    %2423 = vmatprep.subr.bf16.mxu0 %v1784
    %2424 = vmatpush1.bf16.msra.mxu0 %v1783
    %2425 = vmatprep.subr.bf16.mxu0 %v1786
    %2426 = vmatpush1.bf16.msra.mxu0 %v1785
    %2427 = vmatprep.subr.bf16.mxu0 %v1788
    %2428 = vmatpush1.bf16.msra.mxu0 %v1787
    %2429 = vmatprep.subr.bf16.mxu0 %v1790
    %2430 = vmatpush1.bf16.msra.mxu0 %v1789
    %2431 = vmatprep.subr.bf16.mxu0 %v1792
    %2432 = vmatpush1.bf16.msra.mxu0 %v1791
    %2433 = vmatprep.subr.bf16.mxu0 %v1794
    %2434 = vmatpush1.bf16.msra.mxu0 %v1793
    %2435 = vmatprep.mubr.bf16.mxu0 %v2276
    %2436 = vmatmul.mubr.bf16.gmra.mrb[0].mxu0 %v2275
    %v2437 = vpop.f32.mrb[0].mxu0
    %v2438 = vadd.f32 %v1926, %v2437
    %v2439 = vpop.f32.mrb[0].mxu0
    %v2440 = vadd.f32 %v1926, %v2439
    %v2441 = vpop.f32.mrb[0].mxu0
    %v2442 = vadd.f32 %v1931, %v2441
    %v2443 = vpop.f32.mrb[0].mxu0
    %v2444 = vadd.f32 %v1931, %v2443
    %2445 = vmatprep.mubr.bf16.mxu0 %v2280
    %2446 = vmatmul.mubr.bf16.gmra.mrb[0].mxu0 %v2279
    %v2447 = vpop.f32.mrb[0].mxu0
    %v2448 = vadd.f32 %v1936, %v2447
    %v2449 = vpop.f32.mrb[0].mxu0
    %v2450 = vadd.f32 %v1936, %v2449
    %v2451 = vpop.f32.mrb[0].mxu0
    %v2452 = vadd.f32 %v1941, %v2451
    %v2453 = vpop.f32.mrb[0].mxu0
    %v2454 = vadd.f32 %v1941, %v2453
    %2455 = vmatprep.mubr.bf16.mxu0 %v2284
    %2456 = vmatmul.mubr.bf16.gmra.mrb[0].mxu0 %v2283
    %v2457 = vpop.f32.mrb[0].mxu0
    %v2458 = vadd.f32 %v1946, %v2457
    %v2459 = vpop.f32.mrb[0].mxu0
    %v2460 = vadd.f32 %v1946, %v2459
    %v2461 = vpop.f32.mrb[0].mxu0
    %v2462 = vadd.f32 %v1951, %v2461
    %v2463 = vpop.f32.mrb[0].mxu0
    %v2464 = vadd.f32 %v1951, %v2463
    %2465 = vmatprep.mubr.bf16.mxu0 %v2288
    %2466 = vmatmul.mubr.bf16.gmra.mrb[0].mxu0 %v2287
    %v2467 = vpop.f32.mrb[0].mxu0
    %v2468 = vadd.f32 %v1956, %v2467
    %v2469 = vpop.f32.mrb[0].mxu0
    %v2470 = vadd.f32 %v1956, %v2469
    %v2471 = vpop.f32.mrb[0].mxu0
    %v2472 = vadd.f32 %v1961, %v2471
    %v2473 = vpop.f32.mrb[0].mxu0
    %v2474 = vadd.f32 %v1961, %v2473
    %2475 = vmatprep.mubr.bf16.mxu0 %v2292
    %2476 = vmatmul.mubr.bf16.gmra.mrb[0].mxu0 %v2291
    %v2477 = vpop.f32.mrb[0].mxu0
    %v2478 = vadd.f32 %v1966, %v2477
    %v2479 = vpop.f32.mrb[0].mxu0
    %v2480 = vadd.f32 %v1966, %v2479
    %v2481 = vpop.f32.mrb[0].mxu0
    %v2482 = vadd.f32 %v1971, %v2481
    %v2483 = vpop.f32.mrb[0].mxu0
    %v2484 = vadd.f32 %v1971, %v2483
    %2485 = vmatprep.mubr.bf16.mxu0 %v2296
    %2486 = vmatmul.mubr.bf16.gmra.mrb[0].mxu0 %v2295
    %v2487 = vpop.f32.mrb[0].mxu0
    %v2488 = vadd.f32 %v1976, %v2487
    %v2489 = vpop.f32.mrb[0].mxu0
    %v2490 = vadd.f32 %v1976, %v2489
    %v2491 = vpop.f32.mrb[0].mxu0
    %v2492 = vadd.f32 %v1981, %v2491
    %v2493 = vpop.f32.mrb[0].mxu0
    %v2494 = vadd.f32 %v1981, %v2493
    %2495 = vmatprep.mubr.bf16.mxu0 %v2300
    %2496 = vmatmul.mubr.bf16.gmra.mrb[0].mxu0 %v2299
    %v2497 = vpop.f32.mrb[0].mxu0
    %v2498 = vadd.f32 %v1986, %v2497
    %v2499 = vpop.f32.mrb[0].mxu0
    %v2500 = vadd.f32 %v1986, %v2499
    %v2501 = vpop.f32.mrb[0].mxu0
    %v2502 = vadd.f32 %v1991, %v2501
    %v2503 = vpop.f32.mrb[0].mxu0
    %v2504 = vadd.f32 %v1991, %v2503
    %2505 = vmatprep.mubr.bf16.mxu0 %v2304
    %2506 = vmatmul.mubr.bf16.gmra.mrb[0].mxu0 %v2303
    %v2507 = vpop.f32.mrb[0].mxu0
    %v2508 = vadd.f32 %v1996, %v2507
    %v2509 = vpop.f32.mrb[0].mxu0
    %v2510 = vadd.f32 %v1996, %v2509
    %v2511 = vpop.f32.mrb[0].mxu0
    %v2512 = vadd.f32 %v2001, %v2511
    %v2513 = vpop.f32.mrb[0].mxu0
    %v2514 = vadd.f32 %v2001, %v2513
    %2515 = vmatprep.mubr.bf16.mxu0 %v2308
    %2516 = vmatmul.mubr.bf16.gmra.mrb[0].mxu0 %v2307
    %v2517 = vpop.f32.mrb[0].mxu0
    %v2518 = vadd.f32 %v2006, %v2517
    %v2519 = vpop.f32.mrb[0].mxu0
    %v2520 = vadd.f32 %v2006, %v2519
    %v2521 = vpop.f32.mrb[0].mxu0
    %v2522 = vadd.f32 %v2011, %v2521
    %v2523 = vpop.f32.mrb[0].mxu0
    %v2524 = vadd.f32 %v2011, %v2523
    %2525 = vmatprep.mubr.bf16.mxu0 %v2312
    %2526 = vmatmul.mubr.bf16.gmra.mrb[0].mxu0 %v2311
    %v2527 = vpop.f32.mrb[0].mxu0
    %v2528 = vadd.f32 %v2016, %v2527
    %v2529 = vpop.f32.mrb[0].mxu0
    %v2530 = vadd.f32 %v2016, %v2529
    %v2531 = vpop.f32.mrb[0].mxu0
    %v2532 = vadd.f32 %v2021, %v2531
    %v2533 = vpop.f32.mrb[0].mxu0
    %v2534 = vadd.f32 %v2021, %v2533
    %2535 = vmatprep.mubr.bf16.mxu0 %v2316
    %2536 = vmatmul.mubr.bf16.gmra.mrb[0].mxu0 %v2315
    %v2537 = vpop.f32.mrb[0].mxu0
    %v2538 = vadd.f32 %v2026, %v2537
    %v2539 = vpop.f32.mrb[0].mxu0
    %v2540 = vadd.f32 %v2026, %v2539
    %v2541 = vpop.f32.mrb[0].mxu0
    %v2542 = vadd.f32 %v2031, %v2541
    %v2543 = vpop.f32.mrb[0].mxu0
    %v2544 = vadd.f32 %v2031, %v2543
    %2545 = vmatprep.mubr.bf16.mxu0 %v2320
    %2546 = vmatmul.mubr.bf16.gmra.mrb[0].mxu0 %v2319
    %v2547 = vpop.f32.mrb[0].mxu0
    %v2548 = vadd.f32 %v2036, %v2547
    %v2549 = vpop.f32.mrb[0].mxu0
    %v2550 = vadd.f32 %v2036, %v2549
    %v2551 = vpop.f32.mrb[0].mxu0
    %v2552 = vadd.f32 %v2041, %v2551
    %v2553 = vpop.f32.mrb[0].mxu0
    %v2554 = vadd.f32 %v2041, %v2553
    %2555 = vmatprep.mubr.bf16.mxu0 %v2324
    %2556 = vmatmul.mubr.bf16.gmra.mrb[0].mxu0 %v2323
    %v2557 = vpop.f32.mrb[0].mxu0
    %v2558 = vadd.f32 %v2046, %v2557
    %v2559 = vpop.f32.mrb[0].mxu0
    %v2560 = vadd.f32 %v2046, %v2559
    %v2561 = vpop.f32.mrb[0].mxu0
    %v2562 = vadd.f32 %v2051, %v2561
    %v2563 = vpop.f32.mrb[0].mxu0
    %v2564 = vadd.f32 %v2051, %v2563
    %2565 = vmatprep.mubr.bf16.mxu0 %v2328
    %2566 = vmatmul.mubr.bf16.gmra.mrb[0].mxu0 %v2327
    %v2567 = vpop.f32.mrb[0].mxu0
    %v2568 = vadd.f32 %v2056, %v2567
    %v2569 = vpop.f32.mrb[0].mxu0
    %v2570 = vadd.f32 %v2056, %v2569
    %v2571 = vpop.f32.mrb[0].mxu0
    %v2572 = vadd.f32 %v2061, %v2571
    %v2573 = vpop.f32.mrb[0].mxu0
    %v2574 = vadd.f32 %v2061, %v2573
    %2575 = vmatprep.mubr.bf16.mxu0 %v2332
    %2576 = vmatmul.mubr.bf16.gmra.mrb[0].mxu0 %v2331
    %v2577 = vpop.f32.mrb[0].mxu0
    %v2578 = vadd.f32 %v2066, %v2577
    %v2579 = vpop.f32.mrb[0].mxu0
    %v2580 = vadd.f32 %v2066, %v2579
    %v2581 = vpop.f32.mrb[0].mxu0
    %v2582 = vadd.f32 %v2071, %v2581
    %v2583 = vpop.f32.mrb[0].mxu0
    %v2584 = vadd.f32 %v2071, %v2583
    %2585 = vmatprep.mubr.bf16.mxu0 %v2336
    %2586 = vmatmul.mubr.bf16.gmra.mrb[0].mxu0 %v2335
    %v2587 = vpop.f32.mrb[0].mxu0
    %v2588 = vadd.f32 %v2076, %v2587
    %v2589 = vpop.f32.mrb[0].mxu0
    %v2590 = vadd.f32 %v2076, %v2589
    %v2591 = vpop.f32.mrb[0].mxu0
    %v2592 = vadd.f32 %v2081, %v2591
    %v2593 = vpop.f32.mrb[0].mxu0
    %v2594 = vadd.f32 %v2081, %v2593
    %2595 = vdwg.mxu0
    %2596 = vmatprep.subr.bf16.mxu0 %v1796
    %2597 = vmatpush1.bf16.msra.mxu0 %v1795
    %2598 = vmatprep.subr.bf16.mxu0 %v1798
    %2599 = vmatpush1.bf16.msra.mxu0 %v1797
    %2600 = vmatprep.subr.bf16.mxu0 %v1800
    %2601 = vmatpush1.bf16.msra.mxu0 %v1799
    %2602 = vmatprep.subr.bf16.mxu0 %v1802
    %2603 = vmatpush1.bf16.msra.mxu0 %v1801
    %2604 = vmatprep.subr.bf16.mxu0 %v1804
    %2605 = vmatpush1.bf16.msra.mxu0 %v1803
    %2606 = vmatprep.subr.bf16.mxu0 %v1806
    %2607 = vmatpush1.bf16.msra.mxu0 %v1805
    %2608 = vmatprep.subr.bf16.mxu0 %v1808
    %2609 = vmatpush1.bf16.msra.mxu0 %v1807
    %2610 = vmatprep.subr.bf16.mxu0 %v1810
    %2611 = vmatpush1.bf16.msra.mxu0 %v1809
    %2612 = vmatprep.subr.bf16.mxu0 %v1812
    %2613 = vmatpush1.bf16.msra.mxu0 %v1811
    %2614 = vmatprep.subr.bf16.mxu0 %v1814
    %2615 = vmatpush1.bf16.msra.mxu0 %v1813
    %2616 = vmatprep.subr.bf16.mxu0 %v1816
    %2617 = vmatpush1.bf16.msra.mxu0 %v1815
    %2618 = vmatprep.subr.bf16.mxu0 %v1818
    %2619 = vmatpush1.bf16.msra.mxu0 %v1817
    %2620 = vmatprep.subr.bf16.mxu0 %v1820
    %2621 = vmatpush1.bf16.msra.mxu0 %v1819
    %2622 = vmatprep.subr.bf16.mxu0 %v1822
    %2623 = vmatpush1.bf16.msra.mxu0 %v1821
    %2624 = vmatprep.subr.bf16.mxu0 %v1824
    %2625 = vmatpush1.bf16.msra.mxu0 %v1823
    %2626 = vmatprep.subr.bf16.mxu0 %v1826
    %2627 = vmatpush1.bf16.msra.mxu0 %v1825
    %2628 = vmatprep.mubr.bf16.mxu0 %v2278
    %2629 = vmatmul.mubr.bf16.gmra.mrb[0].mxu0 %v2277
    %v2630 = vpop.f32.mrb[0].mxu0
    %v2631 = vadd.f32 %v2438, %v2630
    %v2632 = vpop.f32.mrb[0].mxu0
    %v2633 = vadd.f32 %v2440, %v2632
    %v2634 = vpop.f32.mrb[0].mxu0
    %v2635 = vadd.f32 %v2442, %v2634
    %v2636 = vpop.f32.mrb[0].mxu0
    %v2637 = vadd.f32 %v2444, %v2636
    %2638 = vmatprep.mubr.bf16.mxu0 %v2282
    %2639 = vmatmul.mubr.bf16.gmra.mrb[0].mxu0 %v2281
    %v2640 = vpop.f32.mrb[0].mxu0
    %v2641 = vadd.f32 %v2448, %v2640
    %v2642 = vpop.f32.mrb[0].mxu0
    %v2643 = vadd.f32 %v2450, %v2642
    %v2644 = vpop.f32.mrb[0].mxu0
    %v2645 = vadd.f32 %v2452, %v2644
    %v2646 = vpop.f32.mrb[0].mxu0
    %v2647 = vadd.f32 %v2454, %v2646
    %2648 = vmatprep.mubr.bf16.mxu0 %v2286
    %2649 = vmatmul.mubr.bf16.gmra.mrb[0].mxu0 %v2285
    %v2650 = vpop.f32.mrb[0].mxu0
    %v2651 = vadd.f32 %v2458, %v2650
    %v2652 = vpop.f32.mrb[0].mxu0
    %v2653 = vadd.f32 %v2460, %v2652
    %v2654 = vpop.f32.mrb[0].mxu0
    %v2655 = vadd.f32 %v2462, %v2654
    %v2656 = vpop.f32.mrb[0].mxu0
    %v2657 = vadd.f32 %v2464, %v2656
    %2658 = vmatprep.mubr.bf16.mxu0 %v2290
    %2659 = vmatmul.mubr.bf16.gmra.mrb[0].mxu0 %v2289
    %v2660 = vpop.f32.mrb[0].mxu0
    %v2661 = vadd.f32 %v2468, %v2660
    %v2662 = vpop.f32.mrb[0].mxu0
    %v2663 = vadd.f32 %v2470, %v2662
    %v2664 = vpop.f32.mrb[0].mxu0
    %v2665 = vadd.f32 %v2472, %v2664
    %v2666 = vpop.f32.mrb[0].mxu0
    %v2667 = vadd.f32 %v2474, %v2666
    %2668 = vmatprep.mubr.bf16.mxu0 %v2294
    %2669 = vmatmul.mubr.bf16.gmra.mrb[0].mxu0 %v2293
    %v2670 = vpop.f32.mrb[0].mxu0
    %v2671 = vadd.f32 %v2478, %v2670
    %v2672 = vpop.f32.mrb[0].mxu0
    %v2673 = vadd.f32 %v2480, %v2672
    %v2674 = vpop.f32.mrb[0].mxu0
    %v2675 = vadd.f32 %v2482, %v2674
    %v2676 = vpop.f32.mrb[0].mxu0
    %v2677 = vadd.f32 %v2484, %v2676
    %2678 = vmatprep.mubr.bf16.mxu0 %v2298
    %2679 = vmatmul.mubr.bf16.gmra.mrb[0].mxu0 %v2297
    %v2680 = vpop.f32.mrb[0].mxu0
    %v2681 = vadd.f32 %v2488, %v2680
    %v2682 = vpop.f32.mrb[0].mxu0
    %v2683 = vadd.f32 %v2490, %v2682
    %v2684 = vpop.f32.mrb[0].mxu0
    %v2685 = vadd.f32 %v2492, %v2684
    %v2686 = vpop.f32.mrb[0].mxu0
    %v2687 = vadd.f32 %v2494, %v2686
    %2688 = vmatprep.mubr.bf16.mxu0 %v2302
    %2689 = vmatmul.mubr.bf16.gmra.mrb[0].mxu0 %v2301
    %v2690 = vpop.f32.mrb[0].mxu0
    %v2691 = vadd.f32 %v2498, %v2690
    %v2692 = vpop.f32.mrb[0].mxu0
    %v2693 = vadd.f32 %v2500, %v2692
    %v2694 = vpop.f32.mrb[0].mxu0
    %v2695 = vadd.f32 %v2502, %v2694
    %v2696 = vpop.f32.mrb[0].mxu0
    %v2697 = vadd.f32 %v2504, %v2696
    %2698 = vmatprep.mubr.bf16.mxu0 %v2306
    %2699 = vmatmul.mubr.bf16.gmra.mrb[0].mxu0 %v2305
    %v2700 = vpop.f32.mrb[0].mxu0
    %v2701 = vadd.f32 %v2508, %v2700
    %v2702 = vpop.f32.mrb[0].mxu0
    %v2703 = vadd.f32 %v2510, %v2702
    %v2704 = vpop.f32.mrb[0].mxu0
    %v2705 = vadd.f32 %v2512, %v2704
    %v2706 = vpop.f32.mrb[0].mxu0
    %v2707 = vadd.f32 %v2514, %v2706
    %2708 = vmatprep.mubr.bf16.mxu0 %v2310
    %2709 = vmatmul.mubr.bf16.gmra.mrb[0].mxu0 %v2309
    %v2710 = vpop.f32.mrb[0].mxu0
    %v2711 = vadd.f32 %v2518, %v2710
    %v2712 = vpop.f32.mrb[0].mxu0
    %v2713 = vadd.f32 %v2520, %v2712
    %v2714 = vpop.f32.mrb[0].mxu0
    %v2715 = vadd.f32 %v2522, %v2714
    %v2716 = vpop.f32.mrb[0].mxu0
    %v2717 = vadd.f32 %v2524, %v2716
    %2718 = vmatprep.mubr.bf16.mxu0 %v2314
    %2719 = vmatmul.mubr.bf16.gmra.mrb[0].mxu0 %v2313
    %v2720 = vpop.f32.mrb[0].mxu0
    %v2721 = vadd.f32 %v2528, %v2720
    %v2722 = vpop.f32.mrb[0].mxu0
    %v2723 = vadd.f32 %v2530, %v2722
    %v2724 = vpop.f32.mrb[0].mxu0
    %v2725 = vadd.f32 %v2532, %v2724
    %v2726 = vpop.f32.mrb[0].mxu0
    %v2727 = vadd.f32 %v2534, %v2726
    %2728 = vmatprep.mubr.bf16.mxu0 %v2318
    %2729 = vmatmul.mubr.bf16.gmra.mrb[0].mxu0 %v2317
    %v2730 = vpop.f32.mrb[0].mxu0
    %v2731 = vadd.f32 %v2538, %v2730
    %v2732 = vpop.f32.mrb[0].mxu0
    %v2733 = vadd.f32 %v2540, %v2732
    %v2734 = vpop.f32.mrb[0].mxu0
    %v2735 = vadd.f32 %v2542, %v2734
    %v2736 = vpop.f32.mrb[0].mxu0
    %v2737 = vadd.f32 %v2544, %v2736
    %2738 = vmatprep.mubr.bf16.mxu0 %v2322
    %2739 = vmatmul.mubr.bf16.gmra.mrb[0].mxu0 %v2321
    %v2740 = vpop.f32.mrb[0].mxu0
    %v2741 = vadd.f32 %v2548, %v2740
    %v2742 = vpop.f32.mrb[0].mxu0
    %v2743 = vadd.f32 %v2550, %v2742
    %v2744 = vpop.f32.mrb[0].mxu0
    %v2745 = vadd.f32 %v2552, %v2744
    %v2746 = vpop.f32.mrb[0].mxu0
    %v2747 = vadd.f32 %v2554, %v2746
    %2748 = vmatprep.mubr.bf16.mxu0 %v2326
    %2749 = vmatmul.mubr.bf16.gmra.mrb[0].mxu0 %v2325
    %v2750 = vpop.f32.mrb[0].mxu0
    %v2751 = vadd.f32 %v2558, %v2750
    %v2752 = vpop.f32.mrb[0].mxu0
    %v2753 = vadd.f32 %v2560, %v2752
    %v2754 = vpop.f32.mrb[0].mxu0
    %v2755 = vadd.f32 %v2562, %v2754
    %v2756 = vpop.f32.mrb[0].mxu0
    %v2757 = vadd.f32 %v2564, %v2756
    %2758 = vmatprep.mubr.bf16.mxu0 %v2330
    %2759 = vmatmul.mubr.bf16.gmra.mrb[0].mxu0 %v2329
    %v2760 = vpop.f32.mrb[0].mxu0
    %v2761 = vadd.f32 %v2568, %v2760
    %v2762 = vpop.f32.mrb[0].mxu0
    %v2763 = vadd.f32 %v2570, %v2762
    %v2764 = vpop.f32.mrb[0].mxu0
    %v2765 = vadd.f32 %v2572, %v2764
    %v2766 = vpop.f32.mrb[0].mxu0
    %v2767 = vadd.f32 %v2574, %v2766
    %2768 = vmatprep.mubr.bf16.mxu0 %v2334
    %2769 = vmatmul.mubr.bf16.gmra.mrb[0].mxu0 %v2333
    %v2770 = vpop.f32.mrb[0].mxu0
    %v2771 = vadd.f32 %v2578, %v2770
    %v2772 = vpop.f32.mrb[0].mxu0
    %v2773 = vadd.f32 %v2580, %v2772
    %v2774 = vpop.f32.mrb[0].mxu0
    %v2775 = vadd.f32 %v2582, %v2774
    %v2776 = vpop.f32.mrb[0].mxu0
    %v2777 = vadd.f32 %v2584, %v2776
    %2778 = vmatprep.mubr.bf16.mxu0 %v2338
    %2779 = vmatmul.mubr.bf16.gmra.mrb[0].mxu0 %v2337
    %v2780 = vpop.f32.mrb[0].mxu0
    %v2781 = vadd.f32 %v2588, %v2780
    %v2782 = vpop.f32.mrb[0].mxu0
    %v2783 = vadd.f32 %v2590, %v2782
    %v2784 = vpop.f32.mrb[0].mxu0
    %v2785 = vadd.f32 %v2592, %v2784
    %v2786 = vpop.f32.mrb[0].mxu0
    %v2787 = vadd.f32 %v2594, %v2786
    %2788 = vdwg.mxu0
    %v2789 = vmax.f32 %v2631, 0.0
    %v2790 = vmax.f32 %v2633, 0.0
    %v2791 = vmax.f32 %v2635, 0.0
    %v2792 = vmax.f32 %v2637, 0.0
    %v2793 = vmax.f32 %v2641, 0.0
    %v2794 = vmax.f32 %v2643, 0.0
    %v2795 = vmax.f32 %v2645, 0.0
    %v2796 = vmax.f32 %v2647, 0.0
    %v2797 = vmax.f32 %v2651, 0.0
    %v2798 = vmax.f32 %v2653, 0.0
    %v2799 = vmax.f32 %v2655, 0.0
    %v2800 = vmax.f32 %v2657, 0.0
    %v2801 = vmax.f32 %v2661, 0.0
    %v2802 = vmax.f32 %v2663, 0.0
    %v2803 = vmax.f32 %v2665, 0.0
    %v2804 = vmax.f32 %v2667, 0.0
    %v2805 = vmax.f32 %v2671, 0.0
    %v2806 = vmax.f32 %v2673, 0.0
    %v2807 = vmax.f32 %v2675, 0.0
    %v2808 = vmax.f32 %v2677, 0.0
    %v2809 = vmax.f32 %v2681, 0.0
    %v2810 = vmax.f32 %v2683, 0.0
    %v2811 = vmax.f32 %v2685, 0.0
    %v2812 = vmax.f32 %v2687, 0.0
    %v2813 = vmax.f32 %v2691, 0.0
    %v2814 = vmax.f32 %v2693, 0.0
    %v2815 = vmax.f32 %v2695, 0.0
    %v2816 = vmax.f32 %v2697, 0.0
    %v2817 = vmax.f32 %v2701, 0.0
    %v2818 = vmax.f32 %v2703, 0.0
    %v2819 = vmax.f32 %v2705, 0.0
    %v2820 = vmax.f32 %v2707, 0.0
    %v2821 = vmax.f32 %v2711, 0.0
    %v2822 = vmax.f32 %v2713, 0.0
    %v2823 = vmax.f32 %v2715, 0.0
    %v2824 = vmax.f32 %v2717, 0.0
    %v2825 = vmax.f32 %v2721, 0.0
    %v2826 = vmax.f32 %v2723, 0.0
    %v2827 = vmax.f32 %v2725, 0.0
    %v2828 = vmax.f32 %v2727, 0.0
    %v2829 = vmax.f32 %v2731, 0.0
    %v2830 = vmax.f32 %v2733, 0.0
    %v2831 = vmax.f32 %v2735, 0.0
    %v2832 = vmax.f32 %v2737, 0.0
    %v2833 = vmax.f32 %v2741, 0.0
    %v2834 = vmax.f32 %v2743, 0.0
    %v2835 = vmax.f32 %v2745, 0.0
    %v2836 = vmax.f32 %v2747, 0.0
    %v2837 = vmax.f32 %v2751, 0.0
    %v2838 = vmax.f32 %v2753, 0.0
    %v2839 = vmax.f32 %v2755, 0.0
    %v2840 = vmax.f32 %v2757, 0.0
    %v2841 = vmax.f32 %v2761, 0.0
    %v2842 = vmax.f32 %v2763, 0.0
    %v2843 = vmax.f32 %v2765, 0.0
    %v2844 = vmax.f32 %v2767, 0.0
    %v2845 = vmax.f32 %v2771, 0.0
    %v2846 = vmax.f32 %v2773, 0.0
    %v2847 = vmax.f32 %v2775, 0.0
    %v2848 = vmax.f32 %v2777, 0.0
    %v2849 = vmax.f32 %v2781, 0.0
    %v2850 = vmax.f32 %v2783, 0.0
    %v2851 = vmax.f32 %v2785, 0.0
    %v2852 = vmax.f32 %v2787, 0.0
    %v2853 = vld [vmem:[%s3] sm:$0xff]
    %v2854 = vld [vmem:[%s3 + $0x8] sm:$0xff]
    %v2855 = vld [vmem:[%s3 + $0x10] sm:$0xff]
    %v2856 = vld [vmem:[%s3 + $0x18] sm:$0xff]
    %v2857 = vld [vmem:[%s3 + $0x20] sm:$0xff]
    %v2858 = vld [vmem:[%s3 + $0x28] sm:$0xff]
    %v2859 = vld [vmem:[%s3 + $0x30] sm:$0xff]
    %v2860 = vld [vmem:[%s3 + $0x38] sm:$0xff]
    %v2861 = vpack.c.bf16 %v2791, %v2789
    %v2862 = vpack.c.bf16 %v2792, %v2790
    %v2863 = vpack.c.bf16 %v2795, %v2793
    %v2864 = vpack.c.bf16 %v2796, %v2794
    %v2865 = vpack.c.bf16 %v2799, %v2797
    %v2866 = vpack.c.bf16 %v2800, %v2798
    %v2867 = vpack.c.bf16 %v2803, %v2801
    %v2868 = vpack.c.bf16 %v2804, %v2802
    %v2869 = vpack.c.bf16 %v2807, %v2805
    %v2870 = vpack.c.bf16 %v2808, %v2806
    %v2871 = vpack.c.bf16 %v2811, %v2809
    %v2872 = vpack.c.bf16 %v2812, %v2810
    %v2873 = vpack.c.bf16 %v2815, %v2813
    %v2874 = vpack.c.bf16 %v2816, %v2814
    %v2875 = vpack.c.bf16 %v2819, %v2817
    %v2876 = vpack.c.bf16 %v2820, %v2818
    %v2877 = vpack.c.bf16 %v2823, %v2821
    %v2878 = vpack.c.bf16 %v2824, %v2822
    %v2879 = vpack.c.bf16 %v2827, %v2825
    %v2880 = vpack.c.bf16 %v2828, %v2826
    %v2881 = vpack.c.bf16 %v2831, %v2829
    %v2882 = vpack.c.bf16 %v2832, %v2830
    %v2883 = vpack.c.bf16 %v2835, %v2833
    %v2884 = vpack.c.bf16 %v2836, %v2834
    %v2885 = vpack.c.bf16 %v2839, %v2837
    %v2886 = vpack.c.bf16 %v2840, %v2838
    %v2887 = vpack.c.bf16 %v2843, %v2841
    %v2888 = vpack.c.bf16 %v2844, %v2842
    %v2889 = vpack.c.bf16 %v2847, %v2845
    %v2890 = vpack.c.bf16 %v2848, %v2846
    %v2891 = vpack.c.bf16 %v2851, %v2849
    %v2892 = vpack.c.bf16 %v2852, %v2850
    %v2893 = vld [vmem:[%s4] sm:$0xff]
    %v2894 = vld [vmem:[%s4 + $0x8] sm:$0xff]
    %v2895 = vld [vmem:[%s4 + $0x10] sm:$0xff]
    %v2896 = vld [vmem:[%s4 + $0x18] sm:$0xff]
    %v2897 = vld [vmem:[%s4 + $0x20] sm:$0xff]
    %v2898 = vld [vmem:[%s4 + $0x28] sm:$0xff]
    %v2899 = vld [vmem:[%s4 + $0x30] sm:$0xff]
    %v2900 = vld [vmem:[%s4 + $0x38] sm:$0xff]
    %2902 = vset.pattern.permute.xlu0 0
    %2903 = vperm.xlu0 %2902, %v2893
    %v2904 = vpop.permute.xlu0 %2903
    %2907 = vset.pattern.permute.xlu0 0
    %2908 = vperm.xlu0 %2907, %v2894
    %v2909 = vpop.permute.xlu0 %2908
    %2912 = vset.pattern.permute.xlu0 0
    %2913 = vperm.xlu0 %2912, %v2895
    %v2914 = vpop.permute.xlu0 %2913
    %2917 = vset.pattern.permute.xlu0 0
    %2918 = vperm.xlu0 %2917, %v2896
    %v2919 = vpop.permute.xlu0 %2918
    %2922 = vset.pattern.permute.xlu0 0
    %2923 = vperm.xlu0 %2922, %v2897
    %v2924 = vpop.permute.xlu0 %2923
    %2927 = vset.pattern.permute.xlu0 0
    %2928 = vperm.xlu0 %2927, %v2898
    %v2929 = vpop.permute.xlu0 %2928
    %2932 = vset.pattern.permute.xlu0 0
    %2933 = vperm.xlu0 %2932, %v2899
    %v2934 = vpop.permute.xlu0 %2933
    %2937 = vset.pattern.permute.xlu0 0
    %2938 = vperm.xlu0 %2937, %v2900
    %v2939 = vpop.permute.xlu0 %2938
    %v2949 = vunpack.c.l.b16 %v2853
    %v2950 = vunpack.c.h.b16 %v2853
    %v2951 = vunpack.c.l.b16 %v2854
    %v2952 = vunpack.c.h.b16 %v2854
    %v2953 = vunpack.c.l.b16 %v2855
    %v2954 = vunpack.c.h.b16 %v2855
    %v2955 = vunpack.c.l.b16 %v2856
    %v2956 = vunpack.c.h.b16 %v2856
    %v2957 = vunpack.c.l.b16 %v2857
    %v2958 = vunpack.c.h.b16 %v2857
    %v2959 = vunpack.c.l.b16 %v2858
    %v2960 = vunpack.c.h.b16 %v2858
    %v2961 = vunpack.c.l.b16 %v2859
    %v2962 = vunpack.c.h.b16 %v2859
    %v2963 = vunpack.c.l.b16 %v2860
    %v2964 = vunpack.c.h.b16 %v2860
    %v2965 = vpack.c.b16 %v2951, %v2949
    %v2966 = vpack.c.b16 %v2952, %v2950
    %v2967 = vpack.c.b16 %v2955, %v2953
    %v2968 = vpack.c.b16 %v2956, %v2954
    %v2969 = vpack.c.b16 %v2959, %v2957
    %v2970 = vpack.c.b16 %v2960, %v2958
    %v2971 = vpack.c.b16 %v2963, %v2961
    %v2972 = vpack.c.b16 %v2964, %v2962
    %2981 = vmatprep.subr.bf16.mxu0 %v2862
    %2982 = vmatpush1.bf16.msra.mxu0 %v2861
    %2983 = vmatprep.subr.bf16.mxu0 %v2864
    %2984 = vmatpush1.bf16.msra.mxu0 %v2863
    %2985 = vmatprep.subr.bf16.mxu0 %v2866
    %2986 = vmatpush1.bf16.msra.mxu0 %v2865
    %2987 = vmatprep.subr.bf16.mxu0 %v2868
    %2988 = vmatpush1.bf16.msra.mxu0 %v2867
    %2989 = vmatprep.subr.bf16.mxu0 %v2870
    %2990 = vmatpush1.bf16.msra.mxu0 %v2869
    %2991 = vmatprep.subr.bf16.mxu0 %v2872
    %2992 = vmatpush1.bf16.msra.mxu0 %v2871
    %2993 = vmatprep.subr.bf16.mxu0 %v2874
    %2994 = vmatpush1.bf16.msra.mxu0 %v2873
    %2995 = vmatprep.subr.bf16.mxu0 %v2876
    %2996 = vmatpush1.bf16.msra.mxu0 %v2875
    %2997 = vmatprep.subr.bf16.mxu0 %v2878
    %2998 = vmatpush1.bf16.msra.mxu0 %v2877
    %2999 = vmatprep.subr.bf16.mxu0 %v2880
    %3000 = vmatpush1.bf16.msra.mxu0 %v2879
    %3001 = vmatprep.subr.bf16.mxu0 %v2882
    %3002 = vmatpush1.bf16.msra.mxu0 %v2881
    %3003 = vmatprep.subr.bf16.mxu0 %v2884
    %3004 = vmatpush1.bf16.msra.mxu0 %v2883
    %3005 = vmatprep.subr.bf16.mxu0 %v2886
    %3006 = vmatpush1.bf16.msra.mxu0 %v2885
    %3007 = vmatprep.subr.bf16.mxu0 %v2888
    %3008 = vmatpush1.bf16.msra.mxu0 %v2887
    %3009 = vmatprep.subr.bf16.mxu0 %v2890
    %3010 = vmatpush1.bf16.msra.mxu0 %v2889
    %3011 = vmatprep.subr.bf16.mxu0 %v2892
    %3012 = vmatpush1.bf16.msra.mxu0 %v2891
    %3013 = vmatprep.mubr.bf16.mxu0 %v2966
    %3014 = vmatmul.mubr.bf16.gmra.mrb[0].mxu0 %v2965
    %v3015 = vpop.f32.mrb[0].mxu0
    %v3016 = vadd.f32 %v2904, %v3015
    %v3017 = vpop.f32.mrb[0].mxu0
    %v3018 = vadd.f32 %v2904, %v3017
    %v3019 = vpop.f32.mrb[0].mxu0
    %v3020 = vadd.f32 %v2909, %v3019
    %v3021 = vpop.f32.mrb[0].mxu0
    %v3022 = vadd.f32 %v2909, %v3021
    %3023 = vmatprep.mubr.bf16.mxu0 %v2968
    %3024 = vmatmul.mubr.bf16.gmra.mrb[0].mxu0 %v2967
    %v3025 = vpop.f32.mrb[0].mxu0
    %v3026 = vadd.f32 %v2914, %v3025
    %v3027 = vpop.f32.mrb[0].mxu0
    %v3028 = vadd.f32 %v2914, %v3027
    %v3029 = vpop.f32.mrb[0].mxu0
    %v3030 = vadd.f32 %v2919, %v3029
    %v3031 = vpop.f32.mrb[0].mxu0
    %v3032 = vadd.f32 %v2919, %v3031
    %3033 = vmatprep.mubr.bf16.mxu0 %v2970
    %3034 = vmatmul.mubr.bf16.gmra.mrb[0].mxu0 %v2969
    %v3035 = vpop.f32.mrb[0].mxu0
    %v3036 = vadd.f32 %v2924, %v3035
    %v3037 = vpop.f32.mrb[0].mxu0
    %v3038 = vadd.f32 %v2924, %v3037
    %v3039 = vpop.f32.mrb[0].mxu0
    %v3040 = vadd.f32 %v2929, %v3039
    %v3041 = vpop.f32.mrb[0].mxu0
    %v3042 = vadd.f32 %v2929, %v3041
    %3043 = vmatprep.mubr.bf16.mxu0 %v2972
    %3044 = vmatmul.mubr.bf16.gmra.mrb[0].mxu0 %v2971
    %v3045 = vpop.f32.mrb[0].mxu0
    %v3046 = vadd.f32 %v2934, %v3045
    %v3047 = vpop.f32.mrb[0].mxu0
    %v3048 = vadd.f32 %v2934, %v3047
    %v3049 = vpop.f32.mrb[0].mxu0
    %v3050 = vadd.f32 %v2939, %v3049
    %v3051 = vpop.f32.mrb[0].mxu0
    %v3052 = vadd.f32 %v2939, %v3051
    %3053 = vdwg.mxu0
    %v3054 = vmax.f32 %v3016, 0.0
    %v3055 = vmax.f32 %v3018, 0.0
    %v3056 = vmax.f32 %v3020, 0.0
    %v3057 = vmax.f32 %v3022, 0.0
    %v3058 = vmax.f32 %v3026, 0.0
    %v3059 = vmax.f32 %v3028, 0.0
    %v3060 = vmax.f32 %v3030, 0.0
    %v3061 = vmax.f32 %v3032, 0.0
    %v3062 = vmax.f32 %v3036, 0.0
    %v3063 = vmax.f32 %v3038, 0.0
    %v3064 = vmax.f32 %v3040, 0.0
    %v3065 = vmax.f32 %v3042, 0.0
    %v3066 = vmax.f32 %v3046, 0.0
    %v3067 = vmax.f32 %v3048, 0.0
    %v3068 = vmax.f32 %v3050, 0.0
    %v3069 = vmax.f32 %v3052, 0.0
    %v3070 = vld [vmem:[%s5] sm:$0xff]
    %v3071 = vld [vmem:[%s5 + $0x8] sm:$0xff]
    %v3072 = vld [vmem:[%s5 + $0x10] sm:$0xff]
    %v3073 = vld [vmem:[%s5 + $0x18] sm:$0xff]
    %v3074 = vld [vmem:[%s5 + $0x20] sm:$0xff]
    %v3075 = vld [vmem:[%s5 + $0x28] sm:$0xff]
    %v3076 = vld [vmem:[%s5 + $0x30] sm:$0xff]
    %v3077 = vld [vmem:[%s5 + $0x38] sm:$0xff]
    %3079 = vset.pattern.permute.xlu0 0
    %3080 = vperm.xlu0 %3079, %v3070
    %v3081 = vpop.permute.xlu0 %3080
    %3084 = vset.pattern.permute.xlu0 0
    %3085 = vperm.xlu0 %3084, %v3071
    %v3086 = vpop.permute.xlu0 %3085
    %3089 = vset.pattern.permute.xlu0 0
    %3090 = vperm.xlu0 %3089, %v3072
    %v3091 = vpop.permute.xlu0 %3090
    %3094 = vset.pattern.permute.xlu0 0
    %3095 = vperm.xlu0 %3094, %v3073
    %v3096 = vpop.permute.xlu0 %3095
    %3099 = vset.pattern.permute.xlu0 0
    %3100 = vperm.xlu0 %3099, %v3074
    %v3101 = vpop.permute.xlu0 %3100
    %3104 = vset.pattern.permute.xlu0 0
    %3105 = vperm.xlu0 %3104, %v3075
    %v3106 = vpop.permute.xlu0 %3105
    %3109 = vset.pattern.permute.xlu0 0
    %3110 = vperm.xlu0 %3109, %v3076
    %v3111 = vpop.permute.xlu0 %3110
    %3114 = vset.pattern.permute.xlu0 0
    %3115 = vperm.xlu0 %3114, %v3077
    %v3116 = vpop.permute.xlu0 %3115
    %v3118 = vmul.f32 %v3054, %v3081
    %v3119 = vmul.f32 %v3055, %v3081
    %v3120 = vmul.f32 %v3056, %v3086
    %v3121 = vmul.f32 %v3057, %v3086
    %v3122 = vmul.f32 %v3058, %v3091
    %v3123 = vmul.f32 %v3059, %v3091
    %v3124 = vmul.f32 %v3060, %v3096
    %v3125 = vmul.f32 %v3061, %v3096
    %v3126 = vmul.f32 %v3062, %v3101
    %v3127 = vmul.f32 %v3063, %v3101
    %v3128 = vmul.f32 %v3064, %v3106
    %v3129 = vmul.f32 %v3065, %v3106
    %v3130 = vmul.f32 %v3066, %v3111
    %v3131 = vmul.f32 %v3067, %v3111
    %v3132 = vmul.f32 %v3068, %v3116
    %v3133 = vmul.f32 %v3069, %v3116
    %v3134 = vadd.f32 %v3118, %v3120
    %v3135 = vadd.f32 %v3134, %v3122
    %v3136 = vadd.f32 %v3135, %v3124
    %v3137 = vadd.f32 %v3136, %v3126
    %v3138 = vadd.f32 %v3137, %v3128
    %v3139 = vadd.f32 %v3138, %v3130
    %v3140 = vadd.f32 %v3139, %v3132
    %v3141 = vrot.slane %v3140, 4
    %v3142 = vadd.f32 %v3140, %v3141
    %v3143 = vrot.slane %v3142, 2
    %v3144 = vadd.f32 %v3142, %v3143
    %v3145 = vrot.slane %v3144, 1
    %v3146 = vadd.f32 %v3144, %v3145
    %v3147 = vadd.f32 %v3119, %v3121
    %v3148 = vadd.f32 %v3147, %v3123
    %v3149 = vadd.f32 %v3148, %v3125
    %v3150 = vadd.f32 %v3149, %v3127
    %v3151 = vadd.f32 %v3150, %v3129
    %v3152 = vadd.f32 %v3151, %v3131
    %v3153 = vadd.f32 %v3152, %v3133
    %v3154 = vrot.slane %v3153, 4
    %v3155 = vadd.f32 %v3153, %v3154
    %v3156 = vrot.slane %v3155, 2
    %v3157 = vadd.f32 %v3155, %v3156
    %v3158 = vrot.slane %v3157, 1
    %v3159 = vadd.f32 %v3157, %v3158
    %v3160 = vld [vmem:[#allocation3] sm:$0x1]
    %3162 = vset.pattern.permute.xlu0 0
    %3163 = vperm.xlu0 %3162, %v3160
    %v3164 = vpop.permute.xlu0 %3163
    %v3166 = vlaneseq
    %v3167 = vshrl.u32 %v3166, 7
    %v3168 = vsub.s32 0, %v3167
    %v3169 = vrot.slane %v3164, %v3168
    %v3170 = vadd.f32 %v3146, %v3169
    %v3171 = vadd.f32 %v3159, %v3169
    %v3172 = vmax.f32 %v3170, 0.0
    %v3173 = vmax.f32 %v3171, 0.0
    %s3174 = scalar_lea.vmem [#allocation2], 1
    %v3175 = vld [vmem:[%s3174] ss:$8 sm:$0x3]
    %v3178 = vcombine.low %v3172, %v3173
    %v3180 = vunpack.c.l.s4 1966171168
    %v3181 = vunpack.c.0.s8 %v3180
    %v3182 = vlaneseq
    %v3183 = vshrl.u32 %v3182, 7
    %v3184 = vsub.s32 %v3181, %v3183
    %v3185 = vrot.slane %v3178, %v3184
    %v3187 = vunpack.c.l.s4 1966171168
    %v3188 = vunpack.c.0.s8 %v3187
    %v3189 = vlaneseq
    %v3190 = vshrl.u32 %v3189, 7
    %v3191 = vsub.s32 %v3188, %v3190
    %v3192 = vrot.slane %v3185, %v3191
    %v3194 = vadd.f32 %v3175, %v3192
    %3195 = vst.msk [vmem:[%s3174] ss:$8 sm:$0x3] %vm1631, %v3194
    %3196 = vst.msk [vmem:[%s3174] ss:$8 sm:$0x0] %vm1631, %v3194
    // Predicated region
    $region42: #{tpu_custom_call.1} parent=1 // pred_check
      %p3197 = pneg %p63
    $region43: #{tpu_custom_call.1} parent=1 // pred_check_branch
      %3199 = sbr.rel (%p3197) target = $region45
    $region44: #{tpu_custom_call.1} parent=1 // pred_region
      %v3200 = vld [vmem:[#allocation2] sm:$0xff]
      %v3201 = vld [vmem:[#allocation2 + $0x8] sm:$0xff]
      %v3202 = vadd.f32 %v3200, %v3201
      %3203 = vadd.xlane.f32.xlu0 %v3202
      %v3204 = vpop.xlane.xlu0 %3203
      %3205 = vst [vmem:[#allocation9] sm:$0xff] %v3204
    $region45: #{tpu_custom_call.1} parent=1 // pred_fallthru
      _
    // Predicated region
    $region46: #{tpu_custom_call.1} parent=1 // pred_check
      _
    $region47: #{tpu_custom_call.1} parent=1 // pred_check_branch
      %3207 = sbr.rel (0) target = $region49
    $region48: #{tpu_custom_call.1} parent=1 // pred_region
      %s3209 = ssub.s32 128, 128
      %3210 = vsyncadd [#allocation6], %s3209
      %s3212 = sshll.u32 [#allocation9], 4
      %s3213 = int_to_ptr.vmem [resolvable:$true] %s3212
      %3215 = dma.vmem_to_hbm [thread:$0]  %s3213, 128, %s7, [#allocation6]
    $region49: #{tpu_custom_call.1} parent=1 // pred_fallthru
      _
    // Predicated region
    $region50: #{tpu_custom_call.1} parent=1 // pred_check
      _
    $region51: #{tpu_custom_call.1} parent=1 // pred_check_branch
      %3217 = sbr.rel (0) target = $region53
    $region52: #{tpu_custom_call.1} parent=1 // pred_region
      %3218 = dma.done [#allocation6], 128
    $region53: #{tpu_custom_call.1} parent=1 // pred_fallthru
      _
    %3219 = vsyncpa [#allocation5], 1
    %3220 = vsyncpa [#allocation8], 1
    %3221 = vsyncpa [#allocation6], 1

</llo_original>
